<compile_context>
chip_gen: v7x
topology: tpu7x:2x2x1
jax: 0.10.0
libtpu: 0.0.40
codegen_flags: <defaults>
</compile_context>

<pallas_src>
import functools

import jax
import jax.numpy as jnp
from jax.experimental import pallas as pl
from jax.experimental.pallas import tpu as pltpu

NEG_SLOPE = 0.2      # leaky_relu_negative_slope
MASK_NEG = -1e30     # large finite negative; exp(MASK_NEG - m) underflows to exactly 0
TILE = 128           # query/key row tile (>= 2 query steps for moderate N -> v7x megacore)


def _round_up(x, m):
    return (x + m - 1) // m * m


def _vmem_limit_bytes():
    """~75% of physical VMEM: ~48 MiB on v7x (64 MiB/TC), ~96 MiB on v5e/v6e (128 MiB)."""
    cap = 64 * 1024 * 1024
    try:
        info = pltpu.get_tpu_info()
        cap = int(getattr(info, "vmem_capacity_bytes", cap)) or cap
    except Exception:  # API unavailable / not a TPU backend -> conservative default
        pass
    return min((cap * 3) // 4, 100 * 1024 * 1024)


# --------------------------------------------------------------------------- #
# Phase 1: fused projection  h @ [w_lin | w_src | w_dst] -> [tq, H*D + 2H]
# --------------------------------------------------------------------------- #
def project_kernel(h_ref, w_ref, gsd_ref):
    gsd_ref[...] = jnp.dot(
        h_ref[...], w_ref[...], preferred_element_type=jnp.float32
    ).astype(gsd_ref.dtype)


# --------------------------------------------------------------------------- #
# Phase 2: flash-style masked softmax + aggregation over key tiles.
# --------------------------------------------------------------------------- #
def attn_kernel(src_ref, dstT_ref, adj_ref, g_ref, out_ref, m_sc, acc_sc,
                *, n_heads, n_hidden):
    H, D = n_heads, n_hidden
    DP = D + 1                                   # per-head columns incl. folded denominator
    ki = pl.program_id(1)

    @pl.when(ki == 0)
    def _():
        m_sc[...] = jnp.full_like(m_sc, MASK_NEG)
        acc_sc[...] = jnp.zeros_like(acc_sc)

    adj_ok = adj_ref[...] != 0                   # [tq, tk] bool, shared across heads

    for hh in range(H):                          # static, unrolled (H is small)
        src_h = src_ref[:, hh:hh + 1]            # [tq, 1] query-side score (f32)
        dst_h = dstT_ref[hh:hh + 1, :]           # [1, tk] key-side score (f32)
        e = src_h + dst_h                        # [tq, tk]
        e = jnp.where(e >= 0, e, NEG_SLOPE * e)  # LeakyReLU(0.2)
        e = jnp.where(adj_ok, e, MASK_NEG)       # masked_fill(adj == 0, -inf)

        m_old = m_sc[:, hh:hh + 1]
        m_new = jnp.maximum(m_old, jnp.max(e, axis=-1, keepdims=True))
        alpha = jnp.exp(m_old - m_new)           # rescale of the running accumulator
        p = jnp.exp(e - m_new)                   # masked entries underflow to exactly 0

        # p @ [g_h | 1]: weighted sum AND softmax denominator in one MXU pass.
        g_h = g_ref[:, hh * DP:(hh + 1) * DP]    # [tk, D+1] bf16 (last column = 1)
        upd = jnp.dot(p.astype(g_h.dtype), g_h, preferred_element_type=jnp.float32)

        acc_sc[:, hh * DP:(hh + 1) * DP] = (
            alpha * acc_sc[:, hh * DP:(hh + 1) * DP] + upd)
        m_sc[:, hh:hh + 1] = m_new

        # TODO(synk): dropout on the attention coefficients omitted (eval-mode identity).

    @pl.when(ki == pl.num_programs(1) - 1)
    def _():
        for hh in range(H):
            acc_h = acc_sc[:, hh * DP:(hh + 1) * DP]     # [tq, D+1]
            denom = acc_h[:, D:D + 1]                    # folded sum_j p_ij
            # Rows with no edges (incl. padded rows) keep m == MASK_NEG -> force zero.
            has_edge = m_sc[:, hh:hh + 1] > 0.5 * MASK_NEG
            denom_safe = jnp.where(denom > 0.0, denom, 1.0)
            out_h = acc_h[:, :D] * pl.reciprocal(denom_safe, approx=True)
            out_ref[:, hh * D:(hh + 1) * D] = jnp.where(has_edge, out_h, 0.0)


@functools.partial(jax.jit, static_argnames=("n_heads", "n_hidden", "is_concat"))
def gat_forward(h, adj, w_lin, w_attn, *, n_heads, n_hidden, is_concat=True):
    N, F_in = h.shape
    H, D = n_heads, n_hidden
    HD = H * D
    DP = D + 1
    W = HD + 2 * H

    h = h.astype(jnp.float32)
    w_lin = w_lin.astype(jnp.float32)
    w_attn = w_attn.astype(jnp.float32)

    # Fold the attention-score projections into the main weight (fold in f32):
    #   src = g @ a_src = h @ (w_lin_h @ a_src), likewise dst.
    w3 = w_lin.reshape(F_in, H, D)
    a_src = w_attn[0, :D]
    a_dst = w_attn[0, D:]
    w_src = jnp.einsum("fhd,d->fh", w3, a_src)                       # [F_in, H]
    w_dst = jnp.einsum("fhd,d->fh", w3, a_dst)                       # [F_in, H]
    w_big = jnp.concatenate([w_lin, w_src, w_dst], axis=1).astype(jnp.bfloat16)

    # Pad node count to a tile multiple; padded rows/cols carry no edges.
    n_pad = _round_up(max(N, TILE), TILE)
    tq = tk = TILE
    h_pad = jnp.zeros((n_pad, F_in), jnp.bfloat16).at[:N].set(h.astype(jnp.bfloat16))
    adj_i8 = jnp.zeros((n_pad, n_pad), jnp.int8).at[:N, :N].set(
        (adj.reshape(N, N) != 0).astype(jnp.int8))
    # TODO(synk): for very large graphs on v5e, pack adjacency rows as uint32 bitmasks
    # and expand in-kernel (32x less HBM traffic for the [tq, N] operand).

    vmem_limit = _vmem_limit_bytes()

    # ---- Phase 1: fused lane-dense bf16 projection (single fused output) ----
    gsd = pl.pallas_call(
        project_kernel,
        out_shape=jax.ShapeDtypeStruct((n_pad, W), jnp.bfloat16),
        grid_spec=pltpu.PrefetchScalarGridSpec(
            num_scalar_prefetch=0,
            grid=(n_pad // tq,),
            in_specs=[
                pl.BlockSpec((tq, F_in), lambda i: (i, 0)),
                # Grid-invariant weight block: single buffer (no wasted double buffer).
                pl.BlockSpec((F_in, W), lambda i: (0, 0),
                             pipeline_mode=pl.Buffered(1)),
            ],
            out_specs=pl.BlockSpec((tq, W), lambda i: (i, 0)),
        ),
        compiler_params=pltpu.CompilerParams(
            dimension_semantics=("parallel",),
            vmem_limit_bytes=vmem_limit,
        ),
    )(h_pad, w_big)

    g = gsd[:, :HD]                               # bf16 [n_pad, HD]
    sd = gsd[:, HD:].astype(jnp.float32)          # f32  [n_pad, 2H]
    src = sd[:, :H]                               # [n_pad, H]  query-side scores
    dst_t = sd[:, H:].T                           # [H, n_pad]  key-side scores, row layout

    # Append a per-head ones column so the aggregation matmul also produces the
    # softmax denominator:  p @ [g_h | 1] -> [weighted-sum | sum(p)].
    ones_col = jnp.ones((n_pad, H, 1), jnp.bfloat16)
    g_aug = jnp.concatenate([g.reshape(n_pad, H, D), ones_col], axis=-1
                            ).reshape(n_pad, H * DP)

    # ---- Phase 2: flash-style masked softmax + aggregation over key tiles ----
    out_pad = pl.pallas_call(
        functools.partial(attn_kernel, n_heads=H, n_hidden=D),
        out_shape=jax.ShapeDtypeStruct((n_pad, HD), jnp.float32),
        grid_spec=pltpu.PrefetchScalarGridSpec(
            num_scalar_prefetch=0,
            grid=(n_pad // tq, n_pad // tk),
            in_specs=[
                pl.BlockSpec((tq, H), lambda qi, ki: (qi, 0)),        # query-side scores
                pl.BlockSpec((H, tk), lambda qi, ki: (0, ki)),        # key-side scores
                pl.BlockSpec((tq, tk), lambda qi, ki: (qi, ki)),      # adjacency tile (int8)
                pl.BlockSpec((tk, H * DP), lambda qi, ki: (ki, 0)),   # key features + ones
            ],
            out_specs=pl.BlockSpec((tq, HD), lambda qi, ki: (qi, 0)),
            scratch_shapes=[
                pltpu.VMEM((tq, H), jnp.float32),        # running max per head
                pltpu.VMEM((tq, H * DP), jnp.float32),   # accumulator (+ denom column)
            ],
        ),
        compiler_params=pltpu.CompilerParams(
            dimension_semantics=("parallel", "arbitrary"),
            vmem_limit_bytes=vmem_limit,
        ),
    )(src, dst_t, adj_i8, g_aug)

    out = out_pad[:N]
    if is_concat:
        return out                                # [N, H*D], lane-dense
    return out.reshape(N, H, D).mean(axis=1)      # [N, D]


def gat_reference(h, adj, w_lin, w_attn, n_heads, n_hidden, is_concat=True):
    """Pure-JAX f32 reference mirroring the PyTorch forward."""
    N = h.shape[0]
    g = (h @ w_lin).reshape(N, n_heads, n_hidden)
    a_src = w_attn[0, :n_hidden]
    a_dst = w_attn[0, n_hidden:]
    src = jnp.einsum("nhd,d->nh", g, a_src)
    dst = jnp.einsum("nhd,d->nh", g, a_dst)
    e = src[:, None, :] + dst[None, :, :]            # [N, N, H]
    e = jnp.where(e >= 0, e, NEG_SLOPE * e)
    mask = adj.reshape(N, N, 1) != 0
    e = jnp.where(mask, e, -jnp.inf)
    a = jax.nn.softmax(e, axis=1)
    attn_res = jnp.einsum("ijh,jhf->ihf", a, g)
    if is_concat:
        return attn_res.reshape(N, n_heads * n_hidden)
    return attn_res.mean(axis=1)


if __name__ == "__main__":
    # Small synthetic config: N nodes, F_in input features, F_out output features, H heads.
    N = 8
    F_IN = 16
    F_OUT = 32
    H = 4
    IS_CONCAT = True
    D = F_OUT // H if IS_CONCAT else F_OUT  # n_hidden

    key = jax.random.PRNGKey(0)
    k_h, k_w, k_a, k_adj = jax.random.split(key, 4)

    h = jax.random.normal(k_h, (N, F_IN), dtype=jnp.float32)

    # Deterministic parameter init (shapes from nn.Linear in __init__, bias=False).
    w_lin = jax.random.normal(k_w, (F_IN, H * D), dtype=jnp.float32) * 0.1   # linear.weight.T
    w_attn = jax.random.normal(k_a, (1, 2 * D), dtype=jnp.float32) * 0.1     # attn.weight

    # Adjacency [N, N, 1]: random edges plus self-loops (every row has >= 1 neighbour).
    rand_adj = (jax.random.uniform(k_adj, (N, N)) < 0.4).astype(jnp.float32)
    adj = jnp.maximum(rand_adj, jnp.eye(N, dtype=jnp.float32)).reshape(N, N, 1)

    out = gat_forward(h, adj, w_lin, w_attn,
                      n_heads=H, n_hidden=D, is_concat=IS_CONCAT)
    out = jax.block_until_ready(out)

    ref = gat_reference(h, adj, w_lin, w_attn, H, D, is_concat=IS_CONCAT)
    assert out.shape == (N, F_OUT), out.shape
    # bf16 MXU operands between the phases -> loosened tolerance vs the f32 reference.
    assert jnp.allclose(out, ref, atol=2e-2, rtol=2e-2), (
        float(jnp.max(jnp.abs(out - ref))))

    print("KERNEL_OK")
</pallas_src>

<mosaic_0001>
module attributes {stable_mosaic.version = 11 : i64} {
  func.func @project_kernel(%arg0: i32, %arg1: memref<128x16xbf16, #tpu.memory_space<vmem>>, %arg2: memref<16x40xbf16, #tpu.memory_space<vmem>>, %arg3: memref<128x40xbf16, #tpu.memory_space<vmem>>) attributes {dimension_semantics = [#tpu.dimension_semantics<parallel>], iteration_bounds = array<i64: 1>, scalar_prefetch = 0 : i64, scratch_operands = 0 : i64, tpu.core_type = #tpu.core_type<tc>, window_params = [{transform_indices = @transform_0, window_bounds = array<i64: 128, 16>}, {pipeline_mode = #tpu.pipeline_mode<synchronous>, transform_indices = @transform_1, window_bounds = array<i64: 16, 40>}, {transform_indices = @transform_2, window_bounds = array<i64: 128, 40>}]} {
    %c0 = arith.constant 0 : index
    %c0_0 = arith.constant 0 : index
    %0 = vector.load %arg1[%c0, %c0_0] : memref<128x16xbf16, #tpu.memory_space<vmem>>, vector<128x16xbf16>
    %c0_1 = arith.constant 0 : index
    %c0_2 = arith.constant 0 : index
    %1 = vector.load %arg2[%c0_1, %c0_2] : memref<16x40xbf16, #tpu.memory_space<vmem>>, vector<16x40xbf16>
    %cst = arith.constant dense<0.000000e+00> : vector<128x40xf32>
    %2 = tpu.matmul %0, %1, %cst {dimension_numbers = #tpu.dot_dimension_numbers<[1], [0], [0], [1], [0, 0, 1, 1], [], []>} : vector<128x16xbf16>, vector<16x40xbf16>, vector<128x40xf32> -> vector<128x40xf32>
    %3 = arith.truncf %2 : vector<128x40xf32> to vector<128x40xbf16>
    %c0_3 = arith.constant 0 : index
    %c0_4 = arith.constant 0 : index
    %4 = vector.load %arg3[%c0_3, %c0_4] : memref<128x40xbf16, #tpu.memory_space<vmem>>, vector<128x40xbf16>
    tpu.vector_store %arg3[%c0_3, %c0_4], %3 {strides = array<i32>} : memref<128x40xbf16, #tpu.memory_space<vmem>>, vector<128x40xbf16>,
    return
  }
  func.func @transform_0(%arg0: i32) -> (i32, i32) {
    %c0_i32 = arith.constant 0 : i32
    %c0_i32_0 = arith.constant 0 : i32
    return %arg0, %c0_i32 : i32, i32
  }
  func.func @transform_1(%arg0: i32) -> (i32, i32) {
    %c0_i32 = arith.constant 0 : i32
    %c0_i32_0 = arith.constant 0 : i32
    %c0_i32_1 = arith.constant 0 : i32
    return %c0_i32, %c0_i32_0 : i32, i32
  }
  func.func @transform_2(%arg0: i32) -> (i32, i32) {
    %c0_i32 = arith.constant 0 : i32
    %c0_i32_0 = arith.constant 0 : i32
    return %arg0, %c0_i32 : i32, i32
  }
}

module attributes {stable_mosaic.version = 11 : i64} {
  func.func @attn_kernel(%arg0: i32, %arg1: i32, %arg2: memref<128x4xf32, #tpu.memory_space<vmem>>, %arg3: memref<4x128xf32, #tpu.memory_space<vmem>>, %arg4: memref<128x128xi8, #tpu.memory_space<vmem>>, %arg5: memref<128x36xbf16, #tpu.memory_space<vmem>>, %arg6: memref<128x32xf32, #tpu.memory_space<vmem>>, %arg7: memref<128x4xf32, #tpu.memory_space<vmem>>, %arg8: memref<128x36xf32, #tpu.memory_space<vmem>>) attributes {dimension_semantics = [#tpu.dimension_semantics<parallel>, #tpu.dimension_semantics<arbitrary>], iteration_bounds = array<i64: 1, 1>, scalar_prefetch = 0 : i64, scratch_operands = 2 : i64, tpu.core_type = #tpu.core_type<tc>, window_params = [{transform_indices = @transform_0, window_bounds = array<i64: 128, 4>}, {transform_indices = @transform_1, window_bounds = array<i64: 4, 128>}, {transform_indices = @transform_2, window_bounds = array<i64: 128, 128>}, {transform_indices = @transform_3, window_bounds = array<i64: 128, 36>}, {transform_indices = @transform_4, window_bounds = array<i64: 128, 32>}]} {
    %c0_i32 = arith.constant 0 : i32
    %0 = arith.cmpi eq, %arg1, %c0_i32 : i32
    %1 = arith.extui %0 : i1 to i32
    %c0_i32_0 = arith.constant 0 : i32
    %2 = arith.cmpi ne, %1, %c0_i32_0 : i32
    scf.if %2 {
      %cst_73 = arith.constant -1.000000e+30 : f32
      %129 = vector.broadcast %cst_73 : f32 to vector<128x4xf32>
      %c0_74 = arith.constant 0 : index
      %c0_75 = arith.constant 0 : index
      %130 = vector.load %arg7[%c0_74, %c0_75] : memref<128x4xf32, #tpu.memory_space<vmem>>, vector<128x4xf32>
      tpu.vector_store %arg7[%c0_74, %c0_75], %129 {strides = array<i32>} : memref<128x4xf32, #tpu.memory_space<vmem>>, vector<128x4xf32>,
      %cst_76 = arith.constant 0.000000e+00 : f32
      %131 = vector.broadcast %cst_76 : f32 to vector<128x36xf32>
      %c0_77 = arith.constant 0 : index
      %c0_78 = arith.constant 0 : index
      %132 = vector.load %arg8[%c0_77, %c0_78] : memref<128x36xf32, #tpu.memory_space<vmem>>, vector<128x36xf32>
      tpu.vector_store %arg8[%c0_77, %c0_78], %131 {strides = array<i32>} : memref<128x36xf32, #tpu.memory_space<vmem>>, vector<128x36xf32>,
    } else {
    }
    %c0 = arith.constant 0 : index
    %c0_1 = arith.constant 0 : index
    %3 = vector.load %arg4[%c0, %c0_1] : memref<128x128xi8, #tpu.memory_space<vmem>>, vector<128x128xi8>
    %c0_i8 = arith.constant 0 : i8
    %4 = vector.broadcast %c0_i8 : i8 to vector<128x128xi8>
    %5 = arith.cmpi ne, %3, %4 : vector<128x128xi8>
    %c0_2 = arith.constant 0 : index
    %c0_3 = arith.constant 0 : index
    %6 = vector.load %arg2[%c0_2, %c0_3] : memref<128x4xf32, #tpu.memory_space<vmem>>, vector<128x1xf32>
    %c0_4 = arith.constant 0 : index
    %c0_5 = arith.constant 0 : index
    %7 = vector.load %arg3[%c0_4, %c0_5] : memref<4x128xf32, #tpu.memory_space<vmem>>, vector<1x128xf32>
    %8 = vector.broadcast %6 : vector<128x1xf32> to vector<128x128xf32>
    %9 = vector.broadcast %7 : vector<1x128xf32> to vector<128x128xf32>
    %10 = arith.addf %8, %9 : vector<128x128xf32>
    %cst = arith.constant 0.000000e+00 : f32
    %11 = vector.broadcast %cst : f32 to vector<128x128xf32>
    %12 = arith.cmpf oge, %10, %11 : vector<128x128xf32>
    %cst_6 = arith.constant 2.000000e-01 : f32
    %13 = vector.broadcast %cst_6 : f32 to vector<128x128xf32>
    %14 = arith.mulf %13, %10 : vector<128x128xf32>
    %15 = arith.select %12, %10, %14 : vector<128x128xi1>, vector<128x128xf32>
    %cst_7 = arith.constant -1.000000e+30 : f32
    %16 = vector.broadcast %cst_7 : f32 to vector<128x128xf32>
    %17 = arith.select %5, %15, %16 : vector<128x128xi1>, vector<128x128xf32>
    %c0_8 = arith.constant 0 : index
    %c0_9 = arith.constant 0 : index
    %18 = vector.load %arg7[%c0_8, %c0_9] : memref<128x4xf32, #tpu.memory_space<vmem>>, vector<128x1xf32>
    %cst_10 = arith.constant dense<0xFF800000> : vector<128xf32>
    %19 = vector.multi_reduction <maximumf>, %17, %cst_10 [1] : vector<128x128xf32> to vector<128xf32>
    %20 = vector.shape_cast %19 : vector<128xf32> to vector<128x1xf32>
    %21 = arith.maximumf %18, %20 : vector<128x1xf32>
    %22 = arith.subf %18, %21 : vector<128x1xf32>
    %23 = math.exp %22 : vector<128x1xf32>
    %24 = vector.broadcast %21 : vector<128x1xf32> to vector<128x128xf32>
    %25 = arith.subf %17, %24 : vector<128x128xf32>
    %26 = math.exp %25 : vector<128x128xf32>
    %c0_11 = arith.constant 0 : index
    %c0_12 = arith.constant 0 : index
    %27 = vector.load %arg5[%c0_11, %c0_12] : memref<128x36xbf16, #tpu.memory_space<vmem>>, vector<128x9xbf16>
    %28 = arith.truncf %26 : vector<128x128xf32> to vector<128x128xbf16>
    %cst_13 = arith.constant dense<0.000000e+00> : vector<128x9xf32>
    %29 = tpu.matmul %28, %27, %cst_13 {dimension_numbers = #tpu.dot_dimension_numbers<[1], [0], [0], [1], [0, 0, 1, 1], [], []>} : vector<128x128xbf16>, vector<128x9xbf16>, vector<128x9xf32> -> vector<128x9xf32>
    %c0_14 = arith.constant 0 : index
    %c0_15 = arith.constant 0 : index
    %30 = vector.load %arg8[%c0_14, %c0_15] : memref<128x36xf32, #tpu.memory_space<vmem>>, vector<128x9xf32>
    %31 = vector.broadcast %23 : vector<128x1xf32> to vector<128x9xf32>
    %32 = arith.mulf %31, %30 : vector<128x9xf32>
    %33 = arith.addf %32, %29 : vector<128x9xf32>
    %c0_16 = arith.constant 0 : index
    %c0_17 = arith.constant 0 : index
    %34 = vector.load %arg8[%c0_16, %c0_17] : memref<128x36xf32, #tpu.memory_space<vmem>>, vector<128x9xf32>
    tpu.vector_store %arg8[%c0_16, %c0_17], %33 {strides = array<i32>} : memref<128x36xf32, #tpu.memory_space<vmem>>, vector<128x9xf32>,
    %c0_18 = arith.constant 0 : index
    %c0_19 = arith.constant 0 : index
    %35 = vector.load %arg7[%c0_18, %c0_19] : memref<128x4xf32, #tpu.memory_space<vmem>>, vector<128x1xf32>
    tpu.vector_store %arg7[%c0_18, %c0_19], %21 {strides = array<i32>} : memref<128x4xf32, #tpu.memory_space<vmem>>, vector<128x1xf32>,
    %c0_20 = arith.constant 0 : index
    %c1 = arith.constant 1 : index
    %36 = vector.load %arg2[%c0_20, %c1] : memref<128x4xf32, #tpu.memory_space<vmem>>, vector<128x1xf32>
    %c1_21 = arith.constant 1 : index
    %c0_22 = arith.constant 0 : index
    %37 = vector.load %arg3[%c1_21, %c0_22] : memref<4x128xf32, #tpu.memory_space<vmem>>, vector<1x128xf32>
    %38 = vector.broadcast %36 : vector<128x1xf32> to vector<128x128xf32>
    %39 = vector.broadcast %37 : vector<1x128xf32> to vector<128x128xf32>
    %40 = arith.addf %38, %39 : vector<128x128xf32>
    %cst_23 = arith.constant 0.000000e+00 : f32
    %41 = vector.broadcast %cst_23 : f32 to vector<128x128xf32>
    %42 = arith.cmpf oge, %40, %41 : vector<128x128xf32>
    %cst_24 = arith.constant 2.000000e-01 : f32
    %43 = vector.broadcast %cst_24 : f32 to vector<128x128xf32>
    %44 = arith.mulf %43, %40 : vector<128x128xf32>
    %45 = arith.select %42, %40, %44 : vector<128x128xi1>, vector<128x128xf32>
    %cst_25 = arith.constant -1.000000e+30 : f32
    %46 = vector.broadcast %cst_25 : f32 to vector<128x128xf32>
    %47 = arith.select %5, %45, %46 : vector<128x128xi1>, vector<128x128xf32>
    %c0_26 = arith.constant 0 : index
    %c1_27 = arith.constant 1 : index
    %48 = vector.load %arg7[%c0_26, %c1_27] : memref<128x4xf32, #tpu.memory_space<vmem>>, vector<128x1xf32>
    %cst_28 = arith.constant dense<0xFF800000> : vector<128xf32>
    %49 = vector.multi_reduction <maximumf>, %47, %cst_28 [1] : vector<128x128xf32> to vector<128xf32>
    %50 = vector.shape_cast %49 : vector<128xf32> to vector<128x1xf32>
    %51 = arith.maximumf %48, %50 : vector<128x1xf32>
    %52 = arith.subf %48, %51 : vector<128x1xf32>
    %53 = math.exp %52 : vector<128x1xf32>
    %54 = vector.broadcast %51 : vector<128x1xf32> to vector<128x128xf32>
    %55 = arith.subf %47, %54 : vector<128x128xf32>
    %56 = math.exp %55 : vector<128x128xf32>
    %c0_29 = arith.constant 0 : index
    %c9 = arith.constant 9 : index
    %57 = vector.load %arg5[%c0_29, %c9] : memref<128x36xbf16, #tpu.memory_space<vmem>>, vector<128x9xbf16>
    %58 = arith.truncf %56 : vector<128x128xf32> to vector<128x128xbf16>
    %cst_30 = arith.constant dense<0.000000e+00> : vector<128x9xf32>
    %59 = tpu.matmul %58, %57, %cst_30 {dimension_numbers = #tpu.dot_dimension_numbers<[1], [0], [0], [1], [0, 0, 1, 1], [], []>} : vector<128x128xbf16>, vector<128x9xbf16>, vector<128x9xf32> -> vector<128x9xf32>
    %c0_31 = arith.constant 0 : index
    %c9_32 = arith.constant 9 : index
    %60 = vector.load %arg8[%c0_31, %c9_32] : memref<128x36xf32, #tpu.memory_space<vmem>>, vector<128x9xf32>
    %61 = vector.broadcast %53 : vector<128x1xf32> to vector<128x9xf32>
    %62 = arith.mulf %61, %60 : vector<128x9xf32>
    %63 = arith.addf %62, %59 : vector<128x9xf32>
    %c0_33 = arith.constant 0 : index
    %c9_34 = arith.constant 9 : index
    %64 = vector.load %arg8[%c0_33, %c9_34] : memref<128x36xf32, #tpu.memory_space<vmem>>, vector<128x9xf32>
    tpu.vector_store %arg8[%c0_33, %c9_34], %63 {strides = array<i32>} : memref<128x36xf32, #tpu.memory_space<vmem>>, vector<128x9xf32>,
    %c0_35 = arith.constant 0 : index
    %c1_36 = arith.constant 1 : index
    %65 = vector.load %arg7[%c0_35, %c1_36] : memref<128x4xf32, #tpu.memory_space<vmem>>, vector<128x1xf32>
    tpu.vector_store %arg7[%c0_35, %c1_36], %51 {strides = array<i32>} : memref<128x4xf32, #tpu.memory_space<vmem>>, vector<128x1xf32>,
    %c0_37 = arith.constant 0 : index
    %c2 = arith.constant 2 : index
    %66 = vector.load %arg2[%c0_37, %c2] : memref<128x4xf32, #tpu.memory_space<vmem>>, vector<128x1xf32>
    %c2_38 = arith.constant 2 : index
    %c0_39 = arith.constant 0 : index
    %67 = vector.load %arg3[%c2_38, %c0_39] : memref<4x128xf32, #tpu.memory_space<vmem>>, vector<1x128xf32>
    %68 = vector.broadcast %66 : vector<128x1xf32> to vector<128x128xf32>
    %69 = vector.broadcast %67 : vector<1x128xf32> to vector<128x128xf32>
    %70 = arith.addf %68, %69 : vector<128x128xf32>
    %cst_40 = arith.constant 0.000000e+00 : f32
    %71 = vector.broadcast %cst_40 : f32 to vector<128x128xf32>
    %72 = arith.cmpf oge, %70, %71 : vector<128x128xf32>
    %cst_41 = arith.constant 2.000000e-01 : f32
    %73 = vector.broadcast %cst_41 : f32 to vector<128x128xf32>
    %74 = arith.mulf %73, %70 : vector<128x128xf32>
    %75 = arith.select %72, %70, %74 : vector<128x128xi1>, vector<128x128xf32>
    %cst_42 = arith.constant -1.000000e+30 : f32
    %76 = vector.broadcast %cst_42 : f32 to vector<128x128xf32>
    %77 = arith.select %5, %75, %76 : vector<128x128xi1>, vector<128x128xf32>
    %c0_43 = arith.constant 0 : index
    %c2_44 = arith.constant 2 : index
    %78 = vector.load %arg7[%c0_43, %c2_44] : memref<128x4xf32, #tpu.memory_space<vmem>>, vector<128x1xf32>
    %cst_45 = arith.constant dense<0xFF800000> : vector<128xf32>
    %79 = vector.multi_reduction <maximumf>, %77, %cst_45 [1] : vector<128x128xf32> to vector<128xf32>
    %80 = vector.shape_cast %79 : vector<128xf32> to vector<128x1xf32>
    %81 = arith.maximumf %78, %80 : vector<128x1xf32>
    %82 = arith.subf %78, %81 : vector<128x1xf32>
    %83 = math.exp %82 : vector<128x1xf32>
    %84 = vector.broadcast %81 : vector<128x1xf32> to vector<128x128xf32>
    %85 = arith.subf %77, %84 : vector<128x128xf32>
    %86 = math.exp %85 : vector<128x128xf32>
    %c0_46 = arith.constant 0 : index
    %c18 = arith.constant 18 : index
    %87 = vector.load %arg5[%c0_46, %c18] : memref<128x36xbf16, #tpu.memory_space<vmem>>, vector<128x9xbf16>
    %88 = arith.truncf %86 : vector<128x128xf32> to vector<128x128xbf16>
    %cst_47 = arith.constant dense<0.000000e+00> : vector<128x9xf32>
    %89 = tpu.matmul %88, %87, %cst_47 {dimension_numbers = #tpu.dot_dimension_numbers<[1], [0], [0], [1], [0, 0, 1, 1], [], []>} : vector<128x128xbf16>, vector<128x9xbf16>, vector<128x9xf32> -> vector<128x9xf32>
    %c0_48 = arith.constant 0 : index
    %c18_49 = arith.constant 18 : index
    %90 = vector.load %arg8[%c0_48, %c18_49] : memref<128x36xf32, #tpu.memory_space<vmem>>, vector<128x9xf32>
    %91 = vector.broadcast %83 : vector<128x1xf32> to vector<128x9xf32>
    %92 = arith.mulf %91, %90 : vector<128x9xf32>
    %93 = arith.addf %92, %89 : vector<128x9xf32>
    %c0_50 = arith.constant 0 : index
    %c18_51 = arith.constant 18 : index
    %94 = vector.load %arg8[%c0_50, %c18_51] : memref<128x36xf32, #tpu.memory_space<vmem>>, vector<128x9xf32>
    tpu.vector_store %arg8[%c0_50, %c18_51], %93 {strides = array<i32>} : memref<128x36xf32, #tpu.memory_space<vmem>>, vector<128x9xf32>,
    %c0_52 = arith.constant 0 : index
    %c2_53 = arith.constant 2 : index
    %95 = vector.load %arg7[%c0_52, %c2_53] : memref<128x4xf32, #tpu.memory_space<vmem>>, vector<128x1xf32>
    tpu.vector_store %arg7[%c0_52, %c2_53], %81 {strides = array<i32>} : memref<128x4xf32, #tpu.memory_space<vmem>>, vector<128x1xf32>,
    %c0_54 = arith.constant 0 : index
    %c3 = arith.constant 3 : index
    %96 = vector.load %arg2[%c0_54, %c3] : memref<128x4xf32, #tpu.memory_space<vmem>>, vector<128x1xf32>
    %c3_55 = arith.constant 3 : index
    %c0_56 = arith.constant 0 : index
    %97 = vector.load %arg3[%c3_55, %c0_56] : memref<4x128xf32, #tpu.memory_space<vmem>>, vector<1x128xf32>
    %98 = vector.broadcast %96 : vector<128x1xf32> to vector<128x128xf32>
    %99 = vector.broadcast %97 : vector<1x128xf32> to vector<128x128xf32>
    %100 = arith.addf %98, %99 : vector<128x128xf32>
    %cst_57 = arith.constant 0.000000e+00 : f32
    %101 = vector.broadcast %cst_57 : f32 to vector<128x128xf32>
    %102 = arith.cmpf oge, %100, %101 : vector<128x128xf32>
    %cst_58 = arith.constant 2.000000e-01 : f32
    %103 = vector.broadcast %cst_58 : f32 to vector<128x128xf32>
    %104 = arith.mulf %103, %100 : vector<128x128xf32>
    %105 = arith.select %102, %100, %104 : vector<128x128xi1>, vector<128x128xf32>
    %cst_59 = arith.constant -1.000000e+30 : f32
    %106 = vector.broadcast %cst_59 : f32 to vector<128x128xf32>
    %107 = arith.select %5, %105, %106 : vector<128x128xi1>, vector<128x128xf32>
    %c0_60 = arith.constant 0 : index
    %c3_61 = arith.constant 3 : index
    %108 = vector.load %arg7[%c0_60, %c3_61] : memref<128x4xf32, #tpu.memory_space<vmem>>, vector<128x1xf32>
    %cst_62 = arith.constant dense<0xFF800000> : vector<128xf32>
    %109 = vector.multi_reduction <maximumf>, %107, %cst_62 [1] : vector<128x128xf32> to vector<128xf32>
    %110 = vector.shape_cast %109 : vector<128xf32> to vector<128x1xf32>
    %111 = arith.maximumf %108, %110 : vector<128x1xf32>
    %112 = arith.subf %108, %111 : vector<128x1xf32>
    %113 = math.exp %112 : vector<128x1xf32>
    %114 = vector.broadcast %111 : vector<128x1xf32> to vector<128x128xf32>
    %115 = arith.subf %107, %114 : vector<128x128xf32>
    %116 = math.exp %115 : vector<128x128xf32>
    %c0_63 = arith.constant 0 : index
    %c27 = arith.constant 27 : index
    %117 = vector.load %arg5[%c0_63, %c27] : memref<128x36xbf16, #tpu.memory_space<vmem>>, vector<128x9xbf16>
    %118 = arith.truncf %116 : vector<128x128xf32> to vector<128x128xbf16>
    %cst_64 = arith.constant dense<0.000000e+00> : vector<128x9xf32>
    %119 = tpu.matmul %118, %117, %cst_64 {dimension_numbers = #tpu.dot_dimension_numbers<[1], [0], [0], [1], [0, 0, 1, 1], [], []>} : vector<128x128xbf16>, vector<128x9xbf16>, vector<128x9xf32> -> vector<128x9xf32>
    %c0_65 = arith.constant 0 : index
    %c27_66 = arith.constant 27 : index
    %120 = vector.load %arg8[%c0_65, %c27_66] : memref<128x36xf32, #tpu.memory_space<vmem>>, vector<128x9xf32>
    %121 = vector.broadcast %113 : vector<128x1xf32> to vector<128x9xf32>
    %122 = arith.mulf %121, %120 : vector<128x9xf32>
    %123 = arith.addf %122, %119 : vector<128x9xf32>
    %c0_67 = arith.constant 0 : index
    %c27_68 = arith.constant 27 : index
    %124 = vector.load %arg8[%c0_67, %c27_68] : memref<128x36xf32, #tpu.memory_space<vmem>>, vector<128x9xf32>
    tpu.vector_store %arg8[%c0_67, %c27_68], %123 {strides = array<i32>} : memref<128x36xf32, #tpu.memory_space<vmem>>, vector<128x9xf32>,
    %c0_69 = arith.constant 0 : index
    %c3_70 = arith.constant 3 : index
    %125 = vector.load %arg7[%c0_69, %c3_70] : memref<128x4xf32, #tpu.memory_space<vmem>>, vector<128x1xf32>
    tpu.vector_store %arg7[%c0_69, %c3_70], %111 {strides = array<i32>} : memref<128x4xf32, #tpu.memory_space<vmem>>, vector<128x1xf32>,
    %c0_i32_71 = arith.constant 0 : i32
    %126 = arith.cmpi eq, %arg1, %c0_i32_71 : i32
    %127 = arith.extui %126 : i1 to i32
    %c0_i32_72 = arith.constant 0 : i32
    %128 = arith.cmpi ne, %127, %c0_i32_72 : i32
    scf.if %128 {
      %c0_73 = arith.constant 0 : index
      %c0_74 = arith.constant 0 : index
      %129 = vector.load %arg8[%c0_73, %c0_74] : memref<128x36xf32, #tpu.memory_space<vmem>>, vector<128x9xf32>
      %130 = vector.extract_strided_slice %129 {offsets = [0, 8], sizes = [128, 1], strides = [1, 1]} : vector<128x9xf32> to vector<128x1xf32>
      %c0_75 = arith.constant 0 : index
      %c0_76 = arith.constant 0 : index
      %131 = vector.load %arg7[%c0_75, %c0_76] : memref<128x4xf32, #tpu.memory_space<vmem>>, vector<128x1xf32>
      %cst_77 = arith.constant -5.000000e+29 : f32
      %132 = vector.broadcast %cst_77 : f32 to vector<128x1xf32>
      %133 = arith.cmpf ogt, %131, %132 : vector<128x1xf32>
      %cst_78 = arith.constant 0.000000e+00 : f32
      %134 = vector.broadcast %cst_78 : f32 to vector<128x1xf32>
      %135 = arith.cmpf ogt, %130, %134 : vector<128x1xf32>
      %cst_79 = arith.constant 1.000000e+00 : f32
      %136 = vector.broadcast %cst_79 : f32 to vector<128x1xf32>
      %137 = arith.select %135, %130, %136 : vector<128x1xi1>, vector<128x1xf32>
      %138 = vector.extract_strided_slice %129 {offsets = [0, 0], sizes = [128, 8], strides = [1, 1]} : vector<128x9xf32> to vector<128x8xf32>
      %139 = tpu.reciprocal %137 {approx = true} : vector<128x1xf32> -> vector<128x1xf32>
      %140 = vector.broadcast %139 : vector<128x1xf32> to vector<128x8xf32>
      %141 = arith.mulf %138, %140 : vector<128x8xf32>
      %cst_80 = arith.constant 0.000000e+00 : f32
      %142 = vector.shape_cast %133 : vector<128x1xi1> to vector<128x1xi1>
      %143 = vector.broadcast %142 : vector<128x1xi1> to vector<128x8xi1>
      %144 = vector.broadcast %cst_80 : f32 to vector<128x8xf32>
      %145 = arith.select %143, %141, %144 : vector<128x8xi1>, vector<128x8xf32>
      %c0_81 = arith.constant 0 : index
      %c0_82 = arith.constant 0 : index
      %146 = vector.load %arg6[%c0_81, %c0_82] : memref<128x32xf32, #tpu.memory_space<vmem>>, vector<128x8xf32>
      tpu.vector_store %arg6[%c0_81, %c0_82], %145 {strides = array<i32>} : memref<128x32xf32, #tpu.memory_space<vmem>>, vector<128x8xf32>,
      %c0_83 = arith.constant 0 : index
      %c9_84 = arith.constant 9 : index
      %147 = vector.load %arg8[%c0_83, %c9_84] : memref<128x36xf32, #tpu.memory_space<vmem>>, vector<128x9xf32>
      %148 = vector.extract_strided_slice %147 {offsets = [0, 8], sizes = [128, 1], strides = [1, 1]} : vector<128x9xf32> to vector<128x1xf32>
      %c0_85 = arith.constant 0 : index
      %c1_86 = arith.constant 1 : index
      %149 = vector.load %arg7[%c0_85, %c1_86] : memref<128x4xf32, #tpu.memory_space<vmem>>, vector<128x1xf32>
      %cst_87 = arith.constant -5.000000e+29 : f32
      %150 = vector.broadcast %cst_87 : f32 to vector<128x1xf32>
      %151 = arith.cmpf ogt, %149, %150 : vector<128x1xf32>
      %cst_88 = arith.constant 0.000000e+00 : f32
      %152 = vector.broadcast %cst_88 : f32 to vector<128x1xf32>
      %153 = arith.cmpf ogt, %148, %152 : vector<128x1xf32>
      %cst_89 = arith.constant 1.000000e+00 : f32
      %154 = vector.broadcast %cst_89 : f32 to vector<128x1xf32>
      %155 = arith.select %153, %148, %154 : vector<128x1xi1>, vector<128x1xf32>
      %156 = vector.extract_strided_slice %147 {offsets = [0, 0], sizes = [128, 8], strides = [1, 1]} : vector<128x9xf32> to vector<128x8xf32>
      %157 = tpu.reciprocal %155 {approx = true} : vector<128x1xf32> -> vector<128x1xf32>
      %158 = vector.broadcast %157 : vector<128x1xf32> to vector<128x8xf32>
      %159 = arith.mulf %156, %158 : vector<128x8xf32>
      %cst_90 = arith.constant 0.000000e+00 : f32
      %160 = vector.shape_cast %151 : vector<128x1xi1> to vector<128x1xi1>
      %161 = vector.broadcast %160 : vector<128x1xi1> to vector<128x8xi1>
      %162 = vector.broadcast %cst_90 : f32 to vector<128x8xf32>
      %163 = arith.select %161, %159, %162 : vector<128x8xi1>, vector<128x8xf32>
      %c0_91 = arith.constant 0 : index
      %c8 = arith.constant 8 : index
      %164 = vector.load %arg6[%c0_91, %c8] : memref<128x32xf32, #tpu.memory_space<vmem>>, vector<128x8xf32>
      tpu.vector_store %arg6[%c0_91, %c8], %163 {strides = array<i32>} : memref<128x32xf32, #tpu.memory_space<vmem>>, vector<128x8xf32>,
      %c0_92 = arith.constant 0 : index
      %c18_93 = arith.constant 18 : index
      %165 = vector.load %arg8[%c0_92, %c18_93] : memref<128x36xf32, #tpu.memory_space<vmem>>, vector<128x9xf32>
      %166 = vector.extract_strided_slice %165 {offsets = [0, 8], sizes = [128, 1], strides = [1, 1]} : vector<128x9xf32> to vector<128x1xf32>
      %c0_94 = arith.constant 0 : index
      %c2_95 = arith.constant 2 : index
      %167 = vector.load %arg7[%c0_94, %c2_95] : memref<128x4xf32, #tpu.memory_space<vmem>>, vector<128x1xf32>
      %cst_96 = arith.constant -5.000000e+29 : f32
      %168 = vector.broadcast %cst_96 : f32 to vector<128x1xf32>
      %169 = arith.cmpf ogt, %167, %168 : vector<128x1xf32>
      %cst_97 = arith.constant 0.000000e+00 : f32
      %170 = vector.broadcast %cst_97 : f32 to vector<128x1xf32>
      %171 = arith.cmpf ogt, %166, %170 : vector<128x1xf32>
      %cst_98 = arith.constant 1.000000e+00 : f32
      %172 = vector.broadcast %cst_98 : f32 to vector<128x1xf32>
      %173 = arith.select %171, %166, %172 : vector<128x1xi1>, vector<128x1xf32>
      %174 = vector.extract_strided_slice %165 {offsets = [0, 0], sizes = [128, 8], strides = [1, 1]} : vector<128x9xf32> to vector<128x8xf32>
      %175 = tpu.reciprocal %173 {approx = true} : vector<128x1xf32> -> vector<128x1xf32>
      %176 = vector.broadcast %175 : vector<128x1xf32> to vector<128x8xf32>
      %177 = arith.mulf %174, %176 : vector<128x8xf32>
      %cst_99 = arith.constant 0.000000e+00 : f32
      %178 = vector.shape_cast %169 : vector<128x1xi1> to vector<128x1xi1>
      %179 = vector.broadcast %178 : vector<128x1xi1> to vector<128x8xi1>
      %180 = vector.broadcast %cst_99 : f32 to vector<128x8xf32>
      %181 = arith.select %179, %177, %180 : vector<128x8xi1>, vector<128x8xf32>
      %c0_100 = arith.constant 0 : index
      %c16 = arith.constant 16 : index
      %182 = vector.load %arg6[%c0_100, %c16] : memref<128x32xf32, #tpu.memory_space<vmem>>, vector<128x8xf32>
      tpu.vector_store %arg6[%c0_100, %c16], %181 {strides = array<i32>} : memref<128x32xf32, #tpu.memory_space<vmem>>, vector<128x8xf32>,
      %c0_101 = arith.constant 0 : index
      %c27_102 = arith.constant 27 : index
      %183 = vector.load %arg8[%c0_101, %c27_102] : memref<128x36xf32, #tpu.memory_space<vmem>>, vector<128x9xf32>
      %184 = vector.extract_strided_slice %183 {offsets = [0, 8], sizes = [128, 1], strides = [1, 1]} : vector<128x9xf32> to vector<128x1xf32>
      %c0_103 = arith.constant 0 : index
      %c3_104 = arith.constant 3 : index
      %185 = vector.load %arg7[%c0_103, %c3_104] : memref<128x4xf32, #tpu.memory_space<vmem>>, vector<128x1xf32>
      %cst_105 = arith.constant -5.000000e+29 : f32
      %186 = vector.broadcast %cst_105 : f32 to vector<128x1xf32>
      %187 = arith.cmpf ogt, %185, %186 : vector<128x1xf32>
      %cst_106 = arith.constant 0.000000e+00 : f32
      %188 = vector.broadcast %cst_106 : f32 to vector<128x1xf32>
      %189 = arith.cmpf ogt, %184, %188 : vector<128x1xf32>
      %cst_107 = arith.constant 1.000000e+00 : f32
      %190 = vector.broadcast %cst_107 : f32 to vector<128x1xf32>
      %191 = arith.select %189, %184, %190 : vector<128x1xi1>, vector<128x1xf32>
      %192 = vector.extract_strided_slice %183 {offsets = [0, 0], sizes = [128, 8], strides = [1, 1]} : vector<128x9xf32> to vector<128x8xf32>
      %193 = tpu.reciprocal %191 {approx = true} : vector<128x1xf32> -> vector<128x1xf32>
      %194 = vector.broadcast %193 : vector<128x1xf32> to vector<128x8xf32>
      %195 = arith.mulf %192, %194 : vector<128x8xf32>
      %cst_108 = arith.constant 0.000000e+00 : f32
      %196 = vector.shape_cast %187 : vector<128x1xi1> to vector<128x1xi1>
      %197 = vector.broadcast %196 : vector<128x1xi1> to vector<128x8xi1>
      %198 = vector.broadcast %cst_108 : f32 to vector<128x8xf32>
      %199 = arith.select %197, %195, %198 : vector<128x8xi1>, vector<128x8xf32>
      %c0_109 = arith.constant 0 : index
      %c24 = arith.constant 24 : index
      %200 = vector.load %arg6[%c0_109, %c24] : memref<128x32xf32, #tpu.memory_space<vmem>>, vector<128x8xf32>
      tpu.vector_store %arg6[%c0_109, %c24], %199 {strides = array<i32>} : memref<128x32xf32, #tpu.memory_space<vmem>>, vector<128x8xf32>,
    } else {
    }
    return
  }
  func.func @transform_0(%arg0: i32, %arg1: i32) -> (i32, i32) {
    %c0_i32 = arith.constant 0 : i32
    %c0_i32_0 = arith.constant 0 : i32
    return %arg0, %c0_i32 : i32, i32
  }
  func.func @transform_1(%arg0: i32, %arg1: i32) -> (i32, i32) {
    %c0_i32 = arith.constant 0 : i32
    %c0_i32_0 = arith.constant 0 : i32
    return %c0_i32, %arg1 : i32, i32
  }
  func.func @transform_2(%arg0: i32, %arg1: i32) -> (i32, i32) {
    %c0_i32 = arith.constant 0 : i32
    return %arg0, %arg1 : i32, i32
  }
  func.func @transform_3(%arg0: i32, %arg1: i32) -> (i32, i32) {
    %c0_i32 = arith.constant 0 : i32
    %c0_i32_0 = arith.constant 0 : i32
    return %arg1, %c0_i32 : i32, i32
  }
  func.func @transform_4(%arg0: i32, %arg1: i32) -> (i32, i32) {
    %c0_i32 = arith.constant 0 : i32
    %c0_i32_0 = arith.constant 0 : i32
    return %arg0, %c0_i32 : i32, i32
  }
}

</mosaic_0001>

<llo_original>
// kernel: gat_forward.2
$region0: #{gat_forward.2}
  #allocation0 [shape = 'u32[]', space=smem, size = 0x4, offset = 0x4, fixed_abs, tag = 'smem constant byte address 0x4 - core index']
  #allocation1 [shape = 'u32[144,128]{1,0:T(1,128)}', space=vmem, size = 0x12000, scoped, tag = 'internal scratch']
  %s0 = inlined_call_operand.vmem [shape: bf16[128,16], index: 0, kind: input, shape index: {}]
  %s1 = inlined_call_operand.vmem [shape: bf16[16,40], index: 1, kind: input, shape index: {}]
  %s2 = inlined_call_operand.vmem [shape: bf16[128,40], index: 2, kind: output, shape index: {}]
  %s3 = sld [smem:[#allocation0]]
  $region18: #{gat_forward.2} parent=0
    _
  %s5 = ssub.s32 1, %s3
  %s6 = scalar_select 0, %s5, %s3
  // Predicated region
  $region2: #{gat_forward.2} parent=0 // pred_check
    _
  $region3: #{gat_forward.2} parent=0 // pred_check_branch
    %8 = sbr.rel (0) target = $region5
  $region4: #{gat_forward.2} parent=0 // pred_region
    _
  $region5: #{gat_forward.2} parent=0 // pred_fallthru
    _
  // Predicated region
  $region6: #{gat_forward.2} parent=0 // pred_check
    _
  $region7: #{gat_forward.2} parent=0 // pred_check_branch
    %10 = sbr.rel (0) target = $region9
  $region8: #{gat_forward.2} parent=0 // pred_region
    _
  $region9: #{gat_forward.2} parent=0 // pred_fallthru
    _
  %v12 = vld [vmem:[%s0] sm:$0xf]
  %v13 = vld [vmem:[%s0 + $0x4] sm:$0xf]
  %v14 = vld [vmem:[%s0 + $0x8] sm:$0xf]
  %v15 = vld [vmem:[%s0 + $0xc] sm:$0xf]
  %v16 = vld [vmem:[%s0 + $0x10] sm:$0xf]
  %v17 = vld [vmem:[%s0 + $0x14] sm:$0xf]
  %v18 = vld [vmem:[%s0 + $0x18] sm:$0xf]
  %v19 = vld [vmem:[%s0 + $0x1c] sm:$0xf]
  %v20 = vld [vmem:[%s0 + $0x20] sm:$0xf]
  %v21 = vld [vmem:[%s0 + $0x24] sm:$0xf]
  %v22 = vld [vmem:[%s0 + $0x28] sm:$0xf]
  %v23 = vld [vmem:[%s0 + $0x2c] sm:$0xf]
  %v24 = vld [vmem:[%s0 + $0x30] sm:$0xf]
  %v25 = vld [vmem:[%s0 + $0x34] sm:$0xf]
  %v26 = vld [vmem:[%s0 + $0x38] sm:$0xf]
  %v27 = vld [vmem:[%s0 + $0x3c] sm:$0xf]
  %v28 = vld [vmem:[%s1] sm:$0xf]
  %v29 = vld [vmem:[%s1 + $0x4] sm:$0xf]
  %v46 = vunpack.c.l.b16 %v12
  %v47 = vunpack.c.l.b16 %v13
  %v48 = vunpack.c.l.b16 %v14
  %v49 = vunpack.c.l.b16 %v15
  %v50 = vunpack.c.l.b16 %v16
  %v51 = vunpack.c.l.b16 %v17
  %v52 = vunpack.c.l.b16 %v18
  %v53 = vunpack.c.l.b16 %v19
  %v54 = vunpack.c.l.b16 %v20
  %v55 = vunpack.c.l.b16 %v21
  %v56 = vunpack.c.l.b16 %v22
  %v57 = vunpack.c.l.b16 %v23
  %v58 = vunpack.c.l.b16 %v24
  %v59 = vunpack.c.l.b16 %v25
  %v60 = vunpack.c.l.b16 %v26
  %v61 = vunpack.c.l.b16 %v27
  %v62 = vpack.c.b16 %v47, %v46
  %v63 = vpack.c.b16 %v49, %v48
  %v64 = vpack.c.b16 %v51, %v50
  %v65 = vpack.c.b16 %v53, %v52
  %v66 = vpack.c.b16 %v55, %v54
  %v67 = vpack.c.b16 %v57, %v56
  %v68 = vpack.c.b16 %v59, %v58
  %v69 = vpack.c.b16 %v61, %v60
  %v72 = vunpack.c.l.b16 %v28
  %v73 = vunpack.c.l.b16 %v29
  %v74 = vpack.c.b16 %v73, %v72
  %vm76 = vcmask 130048
  %v78 = vsel %vm76, %v62, 0
  %v81 = vsel %vm76, %v63, 0
  %v84 = vsel %vm76, %v64, 0
  %v87 = vsel %vm76, %v65, 0
  %v90 = vsel %vm76, %v66, 0
  %v93 = vsel %vm76, %v67, 0
  %v96 = vsel %vm76, %v68, 0
  %v99 = vsel %vm76, %v69, 0
  %101 = vmatprep.subr.bf16.mxu0 0
  %102 = vmatpush1.bf16.msra.mxu0 %v74
  %103 = vmatprep.subr.bf16.mxu0 0
  %104 = vmatpush1.bf16.msra.mxu0 0
  %105 = vmatprep.subr.bf16.mxu0 0
  %106 = vmatpush1.bf16.msra.mxu0 0
  %107 = vmatprep.subr.bf16.mxu0 0
  %108 = vmatpush1.bf16.msra.mxu0 0
  %109 = vmatprep.subr.bf16.mxu0 0
  %110 = vmatpush1.bf16.msra.mxu0 0
  %111 = vmatprep.subr.bf16.mxu0 0
  %112 = vmatpush1.bf16.msra.mxu0 0
  %113 = vmatprep.subr.bf16.mxu0 0
  %114 = vmatpush1.bf16.msra.mxu0 0
  %115 = vmatprep.subr.bf16.mxu0 0
  %116 = vmatpush1.bf16.msra.mxu0 0
  %117 = vmatprep.subr.bf16.mxu0 0
  %118 = vmatpush1.bf16.msra.mxu0 0
  %119 = vmatprep.subr.bf16.mxu0 0
  %120 = vmatpush1.bf16.msra.mxu0 0
  %121 = vmatprep.subr.bf16.mxu0 0
  %122 = vmatpush1.bf16.msra.mxu0 0
  %123 = vmatprep.subr.bf16.mxu0 0
  %124 = vmatpush1.bf16.msra.mxu0 0
  %125 = vmatprep.subr.bf16.mxu0 0
  %126 = vmatpush1.bf16.msra.mxu0 0
  %127 = vmatprep.subr.bf16.mxu0 0
  %128 = vmatpush1.bf16.msra.mxu0 0
  %129 = vmatprep.subr.bf16.mxu0 0
  %130 = vmatpush1.bf16.msra.mxu0 0
  %131 = vmatprep.subr.bf16.mxu0 0
  %132 = vmatpush1.bf16.msra.mxu0 0
  %133 = vmatprep.mubr.bf16.mxu0 0
  %134 = vmatmul.mubr.bf16.gmra.mrb[0].mxu0 %v78
  %v135 = vpop.f32.mrb[0].mxu0
  %v136 = vadd.f32 0.0, %v135
  %v137 = vpop.f32.mrb[0].mxu0
  %v138 = vpop.f32.mrb[0].mxu0
  %v139 = vadd.f32 0.0, %v138
  %v140 = vpop.f32.mrb[0].mxu0
  %141 = vmatprep.mubr.bf16.mxu0 0
  %142 = vmatmul.mubr.bf16.gmra.mrb[0].mxu0 %v81
  %v143 = vpop.f32.mrb[0].mxu0
  %v144 = vadd.f32 0.0, %v143
  %v145 = vpop.f32.mrb[0].mxu0
  %v146 = vpop.f32.mrb[0].mxu0
  %v147 = vadd.f32 0.0, %v146
  %v148 = vpop.f32.mrb[0].mxu0
  %149 = vmatprep.mubr.bf16.mxu0 0
  %150 = vmatmul.mubr.bf16.gmra.mrb[0].mxu0 %v84
  %v151 = vpop.f32.mrb[0].mxu0
  %v152 = vadd.f32 0.0, %v151
  %v153 = vpop.f32.mrb[0].mxu0
  %v154 = vpop.f32.mrb[0].mxu0
  %v155 = vadd.f32 0.0, %v154
  %v156 = vpop.f32.mrb[0].mxu0
  %157 = vmatprep.mubr.bf16.mxu0 0
  %158 = vmatmul.mubr.bf16.gmra.mrb[0].mxu0 %v87
  %v159 = vpop.f32.mrb[0].mxu0
  %v160 = vadd.f32 0.0, %v159
  %v161 = vpop.f32.mrb[0].mxu0
  %v162 = vpop.f32.mrb[0].mxu0
  %v163 = vadd.f32 0.0, %v162
  %v164 = vpop.f32.mrb[0].mxu0
  %165 = vmatprep.mubr.bf16.mxu0 0
  %166 = vmatmul.mubr.bf16.gmra.mrb[0].mxu0 %v90
  %v167 = vpop.f32.mrb[0].mxu0
  %v168 = vadd.f32 0.0, %v167
  %v169 = vpop.f32.mrb[0].mxu0
  %v170 = vpop.f32.mrb[0].mxu0
  %v171 = vadd.f32 0.0, %v170
  %v172 = vpop.f32.mrb[0].mxu0
  %173 = vmatprep.mubr.bf16.mxu0 0
  %174 = vmatmul.mubr.bf16.gmra.mrb[0].mxu0 %v93
  %v175 = vpop.f32.mrb[0].mxu0
  %v176 = vadd.f32 0.0, %v175
  %v177 = vpop.f32.mrb[0].mxu0
  %v178 = vpop.f32.mrb[0].mxu0
  %v179 = vadd.f32 0.0, %v178
  %v180 = vpop.f32.mrb[0].mxu0
  %181 = vmatprep.mubr.bf16.mxu0 0
  %182 = vmatmul.mubr.bf16.gmra.mrb[0].mxu0 %v96
  %v183 = vpop.f32.mrb[0].mxu0
  %v184 = vadd.f32 0.0, %v183
  %v185 = vpop.f32.mrb[0].mxu0
  %v186 = vpop.f32.mrb[0].mxu0
  %v187 = vadd.f32 0.0, %v186
  %v188 = vpop.f32.mrb[0].mxu0
  %189 = vmatprep.mubr.bf16.mxu0 0
  %190 = vmatmul.mubr.bf16.gmra.mrb[0].mxu0 %v99
  %v191 = vpop.f32.mrb[0].mxu0
  %v192 = vadd.f32 0.0, %v191
  %v193 = vpop.f32.mrb[0].mxu0
  %v194 = vpop.f32.mrb[0].mxu0
  %v195 = vadd.f32 0.0, %v194
  %v196 = vpop.f32.mrb[0].mxu0
  %197 = vdwg.mxu0
  %v198 = vpack.c.bf16 %v139, %v136
  %v199 = vpack.c.bf16 %v147, %v144
  %v200 = vpack.c.bf16 %v155, %v152
  %v201 = vpack.c.bf16 %v163, %v160
  %v202 = vpack.c.bf16 %v171, %v168
  %v203 = vpack.c.bf16 %v179, %v176
  %v204 = vpack.c.bf16 %v187, %v184
  %v205 = vpack.c.bf16 %v195, %v192
  %v214 = vunpack.c.l.b16 %v198
  %v215 = vunpack.c.h.b16 %v198
  %v216 = vunpack.c.l.b16 %v199
  %v217 = vunpack.c.h.b16 %v199
  %v218 = vunpack.c.l.b16 %v200
  %v219 = vunpack.c.h.b16 %v200
  %v220 = vunpack.c.l.b16 %v201
  %v221 = vunpack.c.h.b16 %v201
  %v222 = vunpack.c.l.b16 %v202
  %v223 = vunpack.c.h.b16 %v202
  %v224 = vunpack.c.l.b16 %v203
  %v225 = vunpack.c.h.b16 %v203
  %v226 = vunpack.c.l.b16 %v204
  %v227 = vunpack.c.h.b16 %v204
  %v228 = vunpack.c.l.b16 %v205
  %v229 = vunpack.c.h.b16 %v205
  %v230 = vpack.c.b16 %v214, %v214
  %v231 = vpack.c.b16 %v215, %v215
  %v232 = vpack.c.b16 %v216, %v216
  %v233 = vpack.c.b16 %v217, %v217
  %v234 = vpack.c.b16 %v218, %v218
  %v235 = vpack.c.b16 %v219, %v219
  %v236 = vpack.c.b16 %v220, %v220
  %v237 = vpack.c.b16 %v221, %v221
  %v238 = vpack.c.b16 %v222, %v222
  %v239 = vpack.c.b16 %v223, %v223
  %v240 = vpack.c.b16 %v224, %v224
  %v241 = vpack.c.b16 %v225, %v225
  %v242 = vpack.c.b16 %v226, %v226
  %v243 = vpack.c.b16 %v227, %v227
  %v244 = vpack.c.b16 %v228, %v228
  %v245 = vpack.c.b16 %v229, %v229
  %vm262 = vcmask 322560
  %263 = vst.msk [vmem:[%s2] sm:$0xf] %vm262, %v230
  %264 = vst.msk [vmem:[%s2 + $0x4] sm:$0xf] %vm262, %v231
  %265 = vst.msk [vmem:[%s2 + $0x8] sm:$0xf] %vm262, %v232
  %266 = vst.msk [vmem:[%s2 + $0xc] sm:$0xf] %vm262, %v233
  %267 = vst.msk [vmem:[%s2 + $0x10] sm:$0xf] %vm262, %v234
  %268 = vst.msk [vmem:[%s2 + $0x14] sm:$0xf] %vm262, %v235
  %269 = vst.msk [vmem:[%s2 + $0x18] sm:$0xf] %vm262, %v236
  %270 = vst.msk [vmem:[%s2 + $0x1c] sm:$0xf] %vm262, %v237
  %271 = vst.msk [vmem:[%s2 + $0x20] sm:$0xf] %vm262, %v238
  %272 = vst.msk [vmem:[%s2 + $0x24] sm:$0xf] %vm262, %v239
  %273 = vst.msk [vmem:[%s2 + $0x28] sm:$0xf] %vm262, %v240
  %274 = vst.msk [vmem:[%s2 + $0x2c] sm:$0xf] %vm262, %v241
  %275 = vst.msk [vmem:[%s2 + $0x30] sm:$0xf] %vm262, %v242
  %276 = vst.msk [vmem:[%s2 + $0x34] sm:$0xf] %vm262, %v243
  %277 = vst.msk [vmem:[%s2 + $0x38] sm:$0xf] %vm262, %v244
  %278 = vst.msk [vmem:[%s2 + $0x3c] sm:$0xf] %vm262, %v245
  // Predicated region
  $region10: #{gat_forward.2} parent=0 // pred_check
    _
  $region11: #{gat_forward.2} parent=0 // pred_check_branch
    %280 = sbr.rel (0) target = $region13
  $region12: #{gat_forward.2} parent=0 // pred_region
    _
  $region13: #{gat_forward.2} parent=0 // pred_fallthru
    _
  // Predicated region
  $region14: #{gat_forward.2} parent=0 // pred_check
    _
  $region15: #{gat_forward.2} parent=0 // pred_check_branch
    %282 = sbr.rel (0) target = $region17
  $region16: #{gat_forward.2} parent=0 // pred_region
    _
  $region17: #{gat_forward.2} parent=0 // pred_fallthru
    _

// kernel: gat_forward.3
$region0: #{gat_forward.3}
  #allocation0 [shape = 'u32[]', space=smem, size = 0x4, offset = 0x4, fixed_abs, tag = 'smem constant byte address 0x4 - core index']
  #allocation1 [shape = 'u32[144,128]{1,0:T(1,128)}', space=vmem, size = 0x12000, scoped, tag = 'internal scratch']
  #allocation2 [shape = 'f32[128,4]{1,0:T(8,128)}', space=vmem, size = 0x10000, scoped, tag = 'scratch operand']
  #allocation3 [shape = 'f32[128,36]{1,0:T(8,128)}', space=vmem, size = 0x10000, scoped, tag = 'scratch operand']
  %s0 = inlined_call_operand.vmem [shape: f32[128,4], index: 0, kind: input, shape index: {}]
  %s1 = inlined_call_operand.vmem [shape: f32[4,128], index: 1, kind: input, shape index: {}]
  %s2 = inlined_call_operand.vmem [shape: s8[128,128], index: 2, kind: input, shape index: {}]
  %s3 = inlined_call_operand.vmem [shape: bf16[128,36], index: 3, kind: input, shape index: {}]
  %s4 = inlined_call_operand.vmem [shape: f32[128,32], index: 4, kind: output, shape index: {}]
  %s5 = sld [smem:[#allocation0]]
  $region34: #{gat_forward.3} parent=0
    _
  %s7 = ssub.s32 1, %s5
  %s8 = scalar_select 0, %s7, %s5
  // Predicated region
  $region2: #{gat_forward.3} parent=0 // pred_check
    _
  $region3: #{gat_forward.3} parent=0 // pred_check_branch
    %10 = sbr.rel (0) target = $region5
  $region4: #{gat_forward.3} parent=0 // pred_region
    _
  $region5: #{gat_forward.3} parent=0 // pred_fallthru
    _
  // Predicated region
  $region6: #{gat_forward.3} parent=0 // pred_check
    _
  $region7: #{gat_forward.3} parent=0 // pred_check_branch
    %12 = sbr.rel (0) target = $region9
  $region8: #{gat_forward.3} parent=0 // pred_region
    _
  $region9: #{gat_forward.3} parent=0 // pred_fallthru
    _
  // Predicated region
  $region10: #{gat_forward.3} parent=0 // pred_check
    _
  $region11: #{gat_forward.3} parent=0 // pred_check_branch
    %14 = sbr.rel (0) target = $region13
  $region12: #{gat_forward.3} parent=0 // pred_region
    _
  $region13: #{gat_forward.3} parent=0 // pred_fallthru
    _
  // Predicated region
  $region14: #{gat_forward.3} parent=0 // pred_check
    _
  $region15: #{gat_forward.3} parent=0 // pred_check_branch
    %16 = sbr.rel (0) target = $region17
  $region16: #{gat_forward.3} parent=0 // pred_region
    _
  $region17: #{gat_forward.3} parent=0 // pred_fallthru
    _
  %p20 = scmp.eq.s32.totalorder 0, 0
  // Predicated region
  $region18: #{gat_forward.3} parent=0 // pred_check
    %p21 = pneg %p20
  $region19: #{gat_forward.3} parent=0 // pred_check_branch
    %23 = sbr.rel (%p21) target = $region21
  $region20: #{gat_forward.3} parent=0 // pred_region
    %vm24 = vcmask 31744
    %25 = vst.msk [vmem:[#allocation2] sm:$0xff] %vm24, -1e+30
    %26 = vst.msk [vmem:[#allocation2 + $0x8] sm:$0xff] %vm24, -1e+30
    %27 = vst.msk [vmem:[#allocation2 + $0x10] sm:$0xff] %vm24, -1e+30
    %28 = vst.msk [vmem:[#allocation2 + $0x18] sm:$0xff] %vm24, -1e+30
    %29 = vst.msk [vmem:[#allocation2 + $0x20] sm:$0xff] %vm24, -1e+30
    %30 = vst.msk [vmem:[#allocation2 + $0x28] sm:$0xff] %vm24, -1e+30
    %31 = vst.msk [vmem:[#allocation2 + $0x30] sm:$0xff] %vm24, -1e+30
    %32 = vst.msk [vmem:[#allocation2 + $0x38] sm:$0xff] %vm24, -1e+30
    %33 = vst.msk [vmem:[#allocation2 + $0x40] sm:$0xff] %vm24, -1e+30
    %34 = vst.msk [vmem:[#allocation2 + $0x48] sm:$0xff] %vm24, -1e+30
    %35 = vst.msk [vmem:[#allocation2 + $0x50] sm:$0xff] %vm24, -1e+30
    %36 = vst.msk [vmem:[#allocation2 + $0x58] sm:$0xff] %vm24, -1e+30
    %37 = vst.msk [vmem:[#allocation2 + $0x60] sm:$0xff] %vm24, -1e+30
    %38 = vst.msk [vmem:[#allocation2 + $0x68] sm:$0xff] %vm24, -1e+30
    %39 = vst.msk [vmem:[#allocation2 + $0x70] sm:$0xff] %vm24, -1e+30
    %40 = vst.msk [vmem:[#allocation2 + $0x78] sm:$0xff] %vm24, -1e+30
    %vm41 = vcmask 293888
    %42 = vst.msk [vmem:[#allocation3] sm:$0xff] %vm41, 0.0
    %43 = vst.msk [vmem:[#allocation3 + $0x8] sm:$0xff] %vm41, 0.0
    %44 = vst.msk [vmem:[#allocation3 + $0x10] sm:$0xff] %vm41, 0.0
    %45 = vst.msk [vmem:[#allocation3 + $0x18] sm:$0xff] %vm41, 0.0
    %46 = vst.msk [vmem:[#allocation3 + $0x20] sm:$0xff] %vm41, 0.0
    %47 = vst.msk [vmem:[#allocation3 + $0x28] sm:$0xff] %vm41, 0.0
    %48 = vst.msk [vmem:[#allocation3 + $0x30] sm:$0xff] %vm41, 0.0
    %49 = vst.msk [vmem:[#allocation3 + $0x38] sm:$0xff] %vm41, 0.0
    %50 = vst.msk [vmem:[#allocation3 + $0x40] sm:$0xff] %vm41, 0.0
    %51 = vst.msk [vmem:[#allocation3 + $0x48] sm:$0xff] %vm41, 0.0
    %52 = vst.msk [vmem:[#allocation3 + $0x50] sm:$0xff] %vm41, 0.0
    %53 = vst.msk [vmem:[#allocation3 + $0x58] sm:$0xff] %vm41, 0.0
    %54 = vst.msk [vmem:[#allocation3 + $0x60] sm:$0xff] %vm41, 0.0
    %55 = vst.msk [vmem:[#allocation3 + $0x68] sm:$0xff] %vm41, 0.0
    %56 = vst.msk [vmem:[#allocation3 + $0x70] sm:$0xff] %vm41, 0.0
    %57 = vst.msk [vmem:[#allocation3 + $0x78] sm:$0xff] %vm41, 0.0
  $region21: #{gat_forward.3} parent=0 // pred_fallthru
    _
  %v58 = vld [vmem:[%s2] sm:$0xff]
  %v59 = vld [vmem:[%s2 + $0x8] sm:$0xff]
  %v60 = vld [vmem:[%s2 + $0x10] sm:$0xff]
  %v61 = vld [vmem:[%s2 + $0x18] sm:$0xff]
  %vm62 = vnez %v58
  %vm63 = vnez %v59
  %vm64 = vnez %v60
  %vm65 = vnez %v61
  %v66 = vld [vmem:[%s0] sm:$0xff]
  %v67 = vld [vmem:[%s0 + $0x8] sm:$0xff]
  %v68 = vld [vmem:[%s0 + $0x10] sm:$0xff]
  %v69 = vld [vmem:[%s0 + $0x18] sm:$0xff]
  %v70 = vld [vmem:[%s0 + $0x20] sm:$0xff]
  %v71 = vld [vmem:[%s0 + $0x28] sm:$0xff]
  %v72 = vld [vmem:[%s0 + $0x30] sm:$0xff]
  %v73 = vld [vmem:[%s0 + $0x38] sm:$0xff]
  %v74 = vld [vmem:[%s0 + $0x40] sm:$0xff]
  %v75 = vld [vmem:[%s0 + $0x48] sm:$0xff]
  %v76 = vld [vmem:[%s0 + $0x50] sm:$0xff]
  %v77 = vld [vmem:[%s0 + $0x58] sm:$0xff]
  %v78 = vld [vmem:[%s0 + $0x60] sm:$0xff]
  %v79 = vld [vmem:[%s0 + $0x68] sm:$0xff]
  %v80 = vld [vmem:[%s0 + $0x70] sm:$0xff]
  %v81 = vld [vmem:[%s0 + $0x78] sm:$0xff]
  %v82 = vld [vmem:[%s1] sm:$0x1]
  %84 = vset.pattern.permute.xlu0 0
  %85 = vperm.xlu0 %84, %v66
  %v86 = vpop.permute.xlu0 %85
  %89 = vset.pattern.permute.xlu0 0
  %90 = vperm.xlu0 %89, %v67
  %v91 = vpop.permute.xlu0 %90
  %94 = vset.pattern.permute.xlu0 0
  %95 = vperm.xlu0 %94, %v68
  %v96 = vpop.permute.xlu0 %95
  %99 = vset.pattern.permute.xlu0 0
  %100 = vperm.xlu0 %99, %v69
  %v101 = vpop.permute.xlu0 %100
  %104 = vset.pattern.permute.xlu0 0
  %105 = vperm.xlu0 %104, %v70
  %v106 = vpop.permute.xlu0 %105
  %109 = vset.pattern.permute.xlu0 0
  %110 = vperm.xlu0 %109, %v71
  %v111 = vpop.permute.xlu0 %110
  %114 = vset.pattern.permute.xlu0 0
  %115 = vperm.xlu0 %114, %v72
  %v116 = vpop.permute.xlu0 %115
  %119 = vset.pattern.permute.xlu0 0
  %120 = vperm.xlu0 %119, %v73
  %v121 = vpop.permute.xlu0 %120
  %124 = vset.pattern.permute.xlu0 0
  %125 = vperm.xlu0 %124, %v74
  %v126 = vpop.permute.xlu0 %125
  %129 = vset.pattern.permute.xlu0 0
  %130 = vperm.xlu0 %129, %v75
  %v131 = vpop.permute.xlu0 %130
  %134 = vset.pattern.permute.xlu0 0
  %135 = vperm.xlu0 %134, %v76
  %v136 = vpop.permute.xlu0 %135
  %139 = vset.pattern.permute.xlu0 0
  %140 = vperm.xlu0 %139, %v77
  %v141 = vpop.permute.xlu0 %140
  %144 = vset.pattern.permute.xlu0 0
  %145 = vperm.xlu0 %144, %v78
  %v146 = vpop.permute.xlu0 %145
  %149 = vset.pattern.permute.xlu0 0
  %150 = vperm.xlu0 %149, %v79
  %v151 = vpop.permute.xlu0 %150
  %154 = vset.pattern.permute.xlu0 0
  %155 = vperm.xlu0 %154, %v80
  %v156 = vpop.permute.xlu0 %155
  %159 = vset.pattern.permute.xlu0 0
  %160 = vperm.xlu0 %159, %v81
  %v161 = vpop.permute.xlu0 %160
  %v163 = vlaneseq
  %v164 = vshrl.u32 %v163, 7
  %v165 = vsub.s32 0, %v164
  %v166 = vrot.slane %v82, %v165
  %v167 = vadd.f32 %v86, %v166
  %v168 = vadd.f32 %v91, %v166
  %v169 = vadd.f32 %v96, %v166
  %v170 = vadd.f32 %v101, %v166
  %v171 = vadd.f32 %v106, %v166
  %v172 = vadd.f32 %v111, %v166
  %v173 = vadd.f32 %v116, %v166
  %v174 = vadd.f32 %v121, %v166
  %v175 = vadd.f32 %v126, %v166
  %v176 = vadd.f32 %v131, %v166
  %v177 = vadd.f32 %v136, %v166
  %v178 = vadd.f32 %v141, %v166
  %v179 = vadd.f32 %v146, %v166
  %v180 = vadd.f32 %v151, %v166
  %v181 = vadd.f32 %v156, %v166
  %v182 = vadd.f32 %v161, %v166
  %vm183 = vcmp.ge.f32.partialorder %v167, 0.0
  %vm184 = vcmp.ge.f32.partialorder %v168, 0.0
  %vm185 = vcmp.ge.f32.partialorder %v169, 0.0
  %vm186 = vcmp.ge.f32.partialorder %v170, 0.0
  %vm187 = vcmp.ge.f32.partialorder %v171, 0.0
  %vm188 = vcmp.ge.f32.partialorder %v172, 0.0
  %vm189 = vcmp.ge.f32.partialorder %v173, 0.0
  %vm190 = vcmp.ge.f32.partialorder %v174, 0.0
  %vm191 = vcmp.ge.f32.partialorder %v175, 0.0
  %vm192 = vcmp.ge.f32.partialorder %v176, 0.0
  %vm193 = vcmp.ge.f32.partialorder %v177, 0.0
  %vm194 = vcmp.ge.f32.partialorder %v178, 0.0
  %vm195 = vcmp.ge.f32.partialorder %v179, 0.0
  %vm196 = vcmp.ge.f32.partialorder %v180, 0.0
  %vm197 = vcmp.ge.f32.partialorder %v181, 0.0
  %vm198 = vcmp.ge.f32.partialorder %v182, 0.0
  %v199 = vmul.f32 %v167, 0.2
  %v200 = vmul.f32 %v168, 0.2
  %v201 = vmul.f32 %v169, 0.2
  %v202 = vmul.f32 %v170, 0.2
  %v203 = vmul.f32 %v171, 0.2
  %v204 = vmul.f32 %v172, 0.2
  %v205 = vmul.f32 %v173, 0.2
  %v206 = vmul.f32 %v174, 0.2
  %v207 = vmul.f32 %v175, 0.2
  %v208 = vmul.f32 %v176, 0.2
  %v209 = vmul.f32 %v177, 0.2
  %v210 = vmul.f32 %v178, 0.2
  %v211 = vmul.f32 %v179, 0.2
  %v212 = vmul.f32 %v180, 0.2
  %v213 = vmul.f32 %v181, 0.2
  %v214 = vmul.f32 %v182, 0.2
  %v215 = vsel %vm183, %v167, %v199
  %v216 = vsel %vm184, %v168, %v200
  %v217 = vsel %vm185, %v169, %v201
  %v218 = vsel %vm186, %v170, %v202
  %v219 = vsel %vm187, %v171, %v203
  %v220 = vsel %vm188, %v172, %v204
  %v221 = vsel %vm189, %v173, %v205
  %v222 = vsel %vm190, %v174, %v206
  %v223 = vsel %vm191, %v175, %v207
  %v224 = vsel %vm192, %v176, %v208
  %v225 = vsel %vm193, %v177, %v209
  %v226 = vsel %vm194, %v178, %v210
  %v227 = vsel %vm195, %v179, %v211
  %v228 = vsel %vm196, %v180, %v212
  %v229 = vsel %vm197, %v181, %v213
  %v230 = vsel %vm198, %v182, %v214
  %v231 = vsel %vm62, 16843009, 0
  %v232 = vsel %vm63, 16843009, 0
  %v233 = vsel %vm64, 16843009, 0
  %v234 = vsel %vm65, 16843009, 0
  %v235 = vunpack.c.0.s8 %v231
  %v236 = vunpack.c.1.s8 %v231
  %v237 = vunpack.c.2.s8 %v231
  %v238 = vunpack.c.3.s8 %v231
  %v239 = vunpack.c.0.s8 %v232
  %v240 = vunpack.c.1.s8 %v232
  %v241 = vunpack.c.2.s8 %v232
  %v242 = vunpack.c.3.s8 %v232
  %v243 = vunpack.c.0.s8 %v233
  %v244 = vunpack.c.1.s8 %v233
  %v245 = vunpack.c.2.s8 %v233
  %v246 = vunpack.c.3.s8 %v233
  %v247 = vunpack.c.0.s8 %v234
  %v248 = vunpack.c.1.s8 %v234
  %v249 = vunpack.c.2.s8 %v234
  %v250 = vunpack.c.3.s8 %v234
  %v251 = vpack.c.b16 %v235, %v235
  %v252 = vpack.c.b8 %v251, %v251
  %v253 = vpack.c.b16 %v236, %v236
  %v254 = vpack.c.b8 %v253, %v253
  %v255 = vpack.c.b16 %v237, %v237
  %v256 = vpack.c.b8 %v255, %v255
  %v257 = vpack.c.b16 %v238, %v238
  %v258 = vpack.c.b8 %v257, %v257
  %v259 = vpack.c.b16 %v239, %v239
  %v260 = vpack.c.b8 %v259, %v259
  %v261 = vpack.c.b16 %v240, %v240
  %v262 = vpack.c.b8 %v261, %v261
  %v263 = vpack.c.b16 %v241, %v241
  %v264 = vpack.c.b8 %v263, %v263
  %v265 = vpack.c.b16 %v242, %v242
  %v266 = vpack.c.b8 %v265, %v265
  %v267 = vpack.c.b16 %v243, %v243
  %v268 = vpack.c.b8 %v267, %v267
  %v269 = vpack.c.b16 %v244, %v244
  %v270 = vpack.c.b8 %v269, %v269
  %v271 = vpack.c.b16 %v245, %v245
  %v272 = vpack.c.b8 %v271, %v271
  %v273 = vpack.c.b16 %v246, %v246
  %v274 = vpack.c.b8 %v273, %v273
  %v275 = vpack.c.b16 %v247, %v247
  %v276 = vpack.c.b8 %v275, %v275
  %v277 = vpack.c.b16 %v248, %v248
  %v278 = vpack.c.b8 %v277, %v277
  %v279 = vpack.c.b16 %v249, %v249
  %v280 = vpack.c.b8 %v279, %v279
  %v281 = vpack.c.b16 %v250, %v250
  %v282 = vpack.c.b8 %v281, %v281
  %vm283 = vnez %v252
  %vm284 = vnez %v254
  %vm285 = vnez %v256
  %vm286 = vnez %v258
  %vm287 = vnez %v260
  %vm288 = vnez %v262
  %vm289 = vnez %v264
  %vm290 = vnez %v266
  %vm291 = vnez %v268
  %vm292 = vnez %v270
  %vm293 = vnez %v272
  %vm294 = vnez %v274
  %vm295 = vnez %v276
  %vm296 = vnez %v278
  %vm297 = vnez %v280
  %vm298 = vnez %v282
  %v299 = vsel %vm283, 16843009, 0
  %v300 = vsel %vm284, 16843009, 0
  %v301 = vsel %vm285, 16843009, 0
  %v302 = vsel %vm286, 16843009, 0
  %v303 = vsel %vm287, 16843009, 0
  %v304 = vsel %vm288, 16843009, 0
  %v305 = vsel %vm289, 16843009, 0
  %v306 = vsel %vm290, 16843009, 0
  %v307 = vsel %vm291, 16843009, 0
  %v308 = vsel %vm292, 16843009, 0
  %v309 = vsel %vm293, 16843009, 0
  %v310 = vsel %vm294, 16843009, 0
  %v311 = vsel %vm295, 16843009, 0
  %v312 = vsel %vm296, 16843009, 0
  %v313 = vsel %vm297, 16843009, 0
  %v314 = vsel %vm298, 16843009, 0
  %v315 = vunpack.c.0.s8 %v299
  %v316 = vunpack.c.0.s8 %v300
  %v317 = vunpack.c.0.s8 %v301
  %v318 = vunpack.c.0.s8 %v302
  %v319 = vunpack.c.0.s8 %v303
  %v320 = vunpack.c.0.s8 %v304
  %v321 = vunpack.c.0.s8 %v305
  %v322 = vunpack.c.0.s8 %v306
  %v323 = vunpack.c.0.s8 %v307
  %v324 = vunpack.c.0.s8 %v308
  %v325 = vunpack.c.0.s8 %v309
  %v326 = vunpack.c.0.s8 %v310
  %v327 = vunpack.c.0.s8 %v311
  %v328 = vunpack.c.0.s8 %v312
  %v329 = vunpack.c.0.s8 %v313
  %v330 = vunpack.c.0.s8 %v314
  %vm331 = vcmp.ne.s32.totalorder %v315, 0
  %vm332 = vcmp.ne.s32.totalorder %v316, 0
  %vm333 = vcmp.ne.s32.totalorder %v317, 0
  %vm334 = vcmp.ne.s32.totalorder %v318, 0
  %vm335 = vcmp.ne.s32.totalorder %v319, 0
  %vm336 = vcmp.ne.s32.totalorder %v320, 0
  %vm337 = vcmp.ne.s32.totalorder %v321, 0
  %vm338 = vcmp.ne.s32.totalorder %v322, 0
  %vm339 = vcmp.ne.s32.totalorder %v323, 0
  %vm340 = vcmp.ne.s32.totalorder %v324, 0
  %vm341 = vcmp.ne.s32.totalorder %v325, 0
  %vm342 = vcmp.ne.s32.totalorder %v326, 0
  %vm343 = vcmp.ne.s32.totalorder %v327, 0
  %vm344 = vcmp.ne.s32.totalorder %v328, 0
  %vm345 = vcmp.ne.s32.totalorder %v329, 0
  %vm346 = vcmp.ne.s32.totalorder %v330, 0
  %v347 = vsel %vm331, %v215, -1e+30
  %v348 = vsel %vm332, %v216, -1e+30
  %v349 = vsel %vm333, %v217, -1e+30
  %v350 = vsel %vm334, %v218, -1e+30
  %v351 = vsel %vm335, %v219, -1e+30
  %v352 = vsel %vm336, %v220, -1e+30
  %v353 = vsel %vm337, %v221, -1e+30
  %v354 = vsel %vm338, %v222, -1e+30
  %v355 = vsel %vm339, %v223, -1e+30
  %v356 = vsel %vm340, %v224, -1e+30
  %v357 = vsel %vm341, %v225, -1e+30
  %v358 = vsel %vm342, %v226, -1e+30
  %v359 = vsel %vm343, %v227, -1e+30
  %v360 = vsel %vm344, %v228, -1e+30
  %v361 = vsel %vm345, %v229, -1e+30
  %v362 = vsel %vm346, %v230, -1e+30
  %v363 = vld [vmem:[#allocation2] sm:$0xff]
  %v364 = vld [vmem:[#allocation2 + $0x8] sm:$0xff]
  %v365 = vld [vmem:[#allocation2 + $0x10] sm:$0xff]
  %v366 = vld [vmem:[#allocation2 + $0x18] sm:$0xff]
  %v367 = vld [vmem:[#allocation2 + $0x20] sm:$0xff]
  %v368 = vld [vmem:[#allocation2 + $0x28] sm:$0xff]
  %v369 = vld [vmem:[#allocation2 + $0x30] sm:$0xff]
  %v370 = vld [vmem:[#allocation2 + $0x38] sm:$0xff]
  %v371 = vld [vmem:[#allocation2 + $0x40] sm:$0xff]
  %v372 = vld [vmem:[#allocation2 + $0x48] sm:$0xff]
  %v373 = vld [vmem:[#allocation2 + $0x50] sm:$0xff]
  %v374 = vld [vmem:[#allocation2 + $0x58] sm:$0xff]
  %v375 = vld [vmem:[#allocation2 + $0x60] sm:$0xff]
  %v376 = vld [vmem:[#allocation2 + $0x68] sm:$0xff]
  %v377 = vld [vmem:[#allocation2 + $0x70] sm:$0xff]
  %v378 = vld [vmem:[#allocation2 + $0x78] sm:$0xff]
  %379 = vmax.xlane.f32.xlu0 %v347
  %v380 = vpop.xlane.xlu0 %379
  %381 = vmax.xlane.f32.xlu0 %v348
  %v382 = vpop.xlane.xlu0 %381
  %383 = vmax.xlane.f32.xlu0 %v349
  %v384 = vpop.xlane.xlu0 %383
  %385 = vmax.xlane.f32.xlu0 %v350
  %v386 = vpop.xlane.xlu0 %385
  %387 = vmax.xlane.f32.xlu0 %v351
  %v388 = vpop.xlane.xlu0 %387
  %389 = vmax.xlane.f32.xlu0 %v352
  %v390 = vpop.xlane.xlu0 %389
  %391 = vmax.xlane.f32.xlu0 %v353
  %v392 = vpop.xlane.xlu0 %391
  %393 = vmax.xlane.f32.xlu0 %v354
  %v394 = vpop.xlane.xlu0 %393
  %395 = vmax.xlane.f32.xlu0 %v355
  %v396 = vpop.xlane.xlu0 %395
  %397 = vmax.xlane.f32.xlu0 %v356
  %v398 = vpop.xlane.xlu0 %397
  %399 = vmax.xlane.f32.xlu0 %v357
  %v400 = vpop.xlane.xlu0 %399
  %401 = vmax.xlane.f32.xlu0 %v358
  %v402 = vpop.xlane.xlu0 %401
  %403 = vmax.xlane.f32.xlu0 %v359
  %v404 = vpop.xlane.xlu0 %403
  %405 = vmax.xlane.f32.xlu0 %v360
  %v406 = vpop.xlane.xlu0 %405
  %407 = vmax.xlane.f32.xlu0 %v361
  %v408 = vpop.xlane.xlu0 %407
  %409 = vmax.xlane.f32.xlu0 %v362
  %v410 = vpop.xlane.xlu0 %409
  %v411 = vmax.f32 %v363, %v380
  %v412 = vmax.f32 %v364, %v382
  %v413 = vmax.f32 %v365, %v384
  %v414 = vmax.f32 %v366, %v386
  %v415 = vmax.f32 %v367, %v388
  %v416 = vmax.f32 %v368, %v390
  %v417 = vmax.f32 %v369, %v392
  %v418 = vmax.f32 %v370, %v394
  %v419 = vmax.f32 %v371, %v396
  %v420 = vmax.f32 %v372, %v398
  %v421 = vmax.f32 %v373, %v400
  %v422 = vmax.f32 %v374, %v402
  %v423 = vmax.f32 %v375, %v404
  %v424 = vmax.f32 %v376, %v406
  %v425 = vmax.f32 %v377, %v408
  %v426 = vmax.f32 %v378, %v410
  %v427 = vsub.f32 %v363, %v411
  %v428 = vsub.f32 %v364, %v412
  %v429 = vsub.f32 %v365, %v413
  %v430 = vsub.f32 %v366, %v414
  %v431 = vsub.f32 %v367, %v415
  %v432 = vsub.f32 %v368, %v416
  %v433 = vsub.f32 %v369, %v417
  %v434 = vsub.f32 %v370, %v418
  %v435 = vsub.f32 %v371, %v419
  %v436 = vsub.f32 %v372, %v420
  %v437 = vsub.f32 %v373, %v421
  %v438 = vsub.f32 %v374, %v422
  %v439 = vsub.f32 %v375, %v423
  %v440 = vsub.f32 %v376, %v424
  %v441 = vsub.f32 %v377, %v425
  %v442 = vsub.f32 %v378, %v426
  %v443 = vmul.f32 %v427, 1.442695
  %v444 = vpow.pop %v443
  %v445 = vmul.f32 %v428, 1.442695
  %v446 = vpow.pop %v445
  %v447 = vmul.f32 %v429, 1.442695
  %v448 = vpow.pop %v447
  %v449 = vmul.f32 %v430, 1.442695
  %v450 = vpow.pop %v449
  %v451 = vmul.f32 %v431, 1.442695
  %v452 = vpow.pop %v451
  %v453 = vmul.f32 %v432, 1.442695
  %v454 = vpow.pop %v453
  %v455 = vmul.f32 %v433, 1.442695
  %v456 = vpow.pop %v455
  %v457 = vmul.f32 %v434, 1.442695
  %v458 = vpow.pop %v457
  %v459 = vmul.f32 %v435, 1.442695
  %v460 = vpow.pop %v459
  %v461 = vmul.f32 %v436, 1.442695
  %v462 = vpow.pop %v461
  %v463 = vmul.f32 %v437, 1.442695
  %v464 = vpow.pop %v463
  %v465 = vmul.f32 %v438, 1.442695
  %v466 = vpow.pop %v465
  %v467 = vmul.f32 %v439, 1.442695
  %v468 = vpow.pop %v467
  %v469 = vmul.f32 %v440, 1.442695
  %v470 = vpow.pop %v469
  %v471 = vmul.f32 %v441, 1.442695
  %v472 = vpow.pop %v471
  %v473 = vmul.f32 %v442, 1.442695
  %v474 = vpow.pop %v473
  %476 = vset.pattern.permute.xlu0 0
  %477 = vperm.xlu0 %476, %v411
  %v478 = vpop.permute.xlu0 %477
  %481 = vset.pattern.permute.xlu0 0
  %482 = vperm.xlu0 %481, %v412
  %v483 = vpop.permute.xlu0 %482
  %486 = vset.pattern.permute.xlu0 0
  %487 = vperm.xlu0 %486, %v413
  %v488 = vpop.permute.xlu0 %487
  %491 = vset.pattern.permute.xlu0 0
  %492 = vperm.xlu0 %491, %v414
  %v493 = vpop.permute.xlu0 %492
  %496 = vset.pattern.permute.xlu0 0
  %497 = vperm.xlu0 %496, %v415
  %v498 = vpop.permute.xlu0 %497
  %501 = vset.pattern.permute.xlu0 0
  %502 = vperm.xlu0 %501, %v416
  %v503 = vpop.permute.xlu0 %502
  %506 = vset.pattern.permute.xlu0 0
  %507 = vperm.xlu0 %506, %v417
  %v508 = vpop.permute.xlu0 %507
  %511 = vset.pattern.permute.xlu0 0
  %512 = vperm.xlu0 %511, %v418
  %v513 = vpop.permute.xlu0 %512
  %516 = vset.pattern.permute.xlu0 0
  %517 = vperm.xlu0 %516, %v419
  %v518 = vpop.permute.xlu0 %517
  %521 = vset.pattern.permute.xlu0 0
  %522 = vperm.xlu0 %521, %v420
  %v523 = vpop.permute.xlu0 %522
  %526 = vset.pattern.permute.xlu0 0
  %527 = vperm.xlu0 %526, %v421
  %v528 = vpop.permute.xlu0 %527
  %531 = vset.pattern.permute.xlu0 0
  %532 = vperm.xlu0 %531, %v422
  %v533 = vpop.permute.xlu0 %532
  %536 = vset.pattern.permute.xlu0 0
  %537 = vperm.xlu0 %536, %v423
  %v538 = vpop.permute.xlu0 %537
  %541 = vset.pattern.permute.xlu0 0
  %542 = vperm.xlu0 %541, %v424
  %v543 = vpop.permute.xlu0 %542
  %546 = vset.pattern.permute.xlu0 0
  %547 = vperm.xlu0 %546, %v425
  %v548 = vpop.permute.xlu0 %547
  %551 = vset.pattern.permute.xlu0 0
  %552 = vperm.xlu0 %551, %v426
  %v553 = vpop.permute.xlu0 %552
  %v555 = vsub.f32 %v347, %v478
  %v556 = vsub.f32 %v348, %v483
  %v557 = vsub.f32 %v349, %v488
  %v558 = vsub.f32 %v350, %v493
  %v559 = vsub.f32 %v351, %v498
  %v560 = vsub.f32 %v352, %v503
  %v561 = vsub.f32 %v353, %v508
  %v562 = vsub.f32 %v354, %v513
  %v563 = vsub.f32 %v355, %v518
  %v564 = vsub.f32 %v356, %v523
  %v565 = vsub.f32 %v357, %v528
  %v566 = vsub.f32 %v358, %v533
  %v567 = vsub.f32 %v359, %v538
  %v568 = vsub.f32 %v360, %v543
  %v569 = vsub.f32 %v361, %v548
  %v570 = vsub.f32 %v362, %v553
  %v571 = vmul.f32 %v555, 1.442695
  %v572 = vpow.pop %v571
  %v573 = vmul.f32 %v556, 1.442695
  %v574 = vpow.pop %v573
  %v575 = vmul.f32 %v557, 1.442695
  %v576 = vpow.pop %v575
  %v577 = vmul.f32 %v558, 1.442695
  %v578 = vpow.pop %v577
  %v579 = vmul.f32 %v559, 1.442695
  %v580 = vpow.pop %v579
  %v581 = vmul.f32 %v560, 1.442695
  %v582 = vpow.pop %v581
  %v583 = vmul.f32 %v561, 1.442695
  %v584 = vpow.pop %v583
  %v585 = vmul.f32 %v562, 1.442695
  %v586 = vpow.pop %v585
  %v587 = vmul.f32 %v563, 1.442695
  %v588 = vpow.pop %v587
  %v589 = vmul.f32 %v564, 1.442695
  %v590 = vpow.pop %v589
  %v591 = vmul.f32 %v565, 1.442695
  %v592 = vpow.pop %v591
  %v593 = vmul.f32 %v566, 1.442695
  %v594 = vpow.pop %v593
  %v595 = vmul.f32 %v567, 1.442695
  %v596 = vpow.pop %v595
  %v597 = vmul.f32 %v568, 1.442695
  %v598 = vpow.pop %v597
  %v599 = vmul.f32 %v569, 1.442695
  %v600 = vpow.pop %v599
  %v601 = vmul.f32 %v570, 1.442695
  %v602 = vpow.pop %v601
  %v603 = vld [vmem:[%s3] sm:$0xf]
  %v604 = vld [vmem:[%s3 + $0x4] sm:$0xf]
  %v605 = vld [vmem:[%s3 + $0x8] sm:$0xf]
  %v606 = vld [vmem:[%s3 + $0xc] sm:$0xf]
  %v607 = vld [vmem:[%s3 + $0x10] sm:$0xf]
  %v608 = vld [vmem:[%s3 + $0x14] sm:$0xf]
  %v609 = vld [vmem:[%s3 + $0x18] sm:$0xf]
  %v610 = vld [vmem:[%s3 + $0x1c] sm:$0xf]
  %v611 = vld [vmem:[%s3 + $0x20] sm:$0xf]
  %v612 = vld [vmem:[%s3 + $0x24] sm:$0xf]
  %v613 = vld [vmem:[%s3 + $0x28] sm:$0xf]
  %v614 = vld [vmem:[%s3 + $0x2c] sm:$0xf]
  %v615 = vld [vmem:[%s3 + $0x30] sm:$0xf]
  %v616 = vld [vmem:[%s3 + $0x34] sm:$0xf]
  %v617 = vld [vmem:[%s3 + $0x38] sm:$0xf]
  %v618 = vld [vmem:[%s3 + $0x3c] sm:$0xf]
  %v619 = vpack.c.bf16 %v574, %v572
  %v620 = vpack.c.bf16 %v578, %v576
  %v621 = vpack.c.bf16 %v582, %v580
  %v622 = vpack.c.bf16 %v586, %v584
  %v623 = vpack.c.bf16 %v590, %v588
  %v624 = vpack.c.bf16 %v594, %v592
  %v625 = vpack.c.bf16 %v598, %v596
  %v626 = vpack.c.bf16 %v602, %v600
  %v643 = vunpack.c.l.b16 %v603
  %v644 = vunpack.c.l.b16 %v604
  %v645 = vunpack.c.l.b16 %v605
  %v646 = vunpack.c.l.b16 %v606
  %v647 = vunpack.c.l.b16 %v607
  %v648 = vunpack.c.l.b16 %v608
  %v649 = vunpack.c.l.b16 %v609
  %v650 = vunpack.c.l.b16 %v610
  %v651 = vunpack.c.l.b16 %v611
  %v652 = vunpack.c.l.b16 %v612
  %v653 = vunpack.c.l.b16 %v613
  %v654 = vunpack.c.l.b16 %v614
  %v655 = vunpack.c.l.b16 %v615
  %v656 = vunpack.c.l.b16 %v616
  %v657 = vunpack.c.l.b16 %v617
  %v658 = vunpack.c.l.b16 %v618
  %v659 = vpack.c.b16 %v644, %v643
  %v660 = vpack.c.b16 %v646, %v645
  %v661 = vpack.c.b16 %v648, %v647
  %v662 = vpack.c.b16 %v650, %v649
  %v663 = vpack.c.b16 %v652, %v651
  %v664 = vpack.c.b16 %v654, %v653
  %v665 = vpack.c.b16 %v656, %v655
  %v666 = vpack.c.b16 %v658, %v657
  %675 = vmatprep.subr.bf16.mxu0 0
  %676 = vmatpush1.bf16.msra.mxu0 %v659
  %677 = vmatprep.subr.bf16.mxu0 0
  %678 = vmatpush1.bf16.msra.mxu0 %v660
  %679 = vmatprep.subr.bf16.mxu0 0
  %680 = vmatpush1.bf16.msra.mxu0 %v661
  %681 = vmatprep.subr.bf16.mxu0 0
  %682 = vmatpush1.bf16.msra.mxu0 %v662
  %683 = vmatprep.subr.bf16.mxu0 0
  %684 = vmatpush1.bf16.msra.mxu0 %v663
  %685 = vmatprep.subr.bf16.mxu0 0
  %686 = vmatpush1.bf16.msra.mxu0 %v664
  %687 = vmatprep.subr.bf16.mxu0 0
  %688 = vmatpush1.bf16.msra.mxu0 %v665
  %689 = vmatprep.subr.bf16.mxu0 0
  %690 = vmatpush1.bf16.msra.mxu0 %v666
  %691 = vmatprep.subr.bf16.mxu0 0
  %692 = vmatpush1.bf16.msra.mxu0 0
  %693 = vmatprep.subr.bf16.mxu0 0
  %694 = vmatpush1.bf16.msra.mxu0 0
  %695 = vmatprep.subr.bf16.mxu0 0
  %696 = vmatpush1.bf16.msra.mxu0 0
  %697 = vmatprep.subr.bf16.mxu0 0
  %698 = vmatpush1.bf16.msra.mxu0 0
  %699 = vmatprep.subr.bf16.mxu0 0
  %700 = vmatpush1.bf16.msra.mxu0 0
  %701 = vmatprep.subr.bf16.mxu0 0
  %702 = vmatpush1.bf16.msra.mxu0 0
  %703 = vmatprep.subr.bf16.mxu0 0
  %704 = vmatpush1.bf16.msra.mxu0 0
  %705 = vmatprep.subr.bf16.mxu0 0
  %706 = vmatpush1.bf16.msra.mxu0 0
  %707 = vmatprep.mubr.bf16.mxu0 0
  %708 = vmatmul.mubr.bf16.gmra.mrb[0].mxu0 %v619
  %v709 = vpop.f32.mrb[0].mxu0
  %v710 = vadd.f32 0.0, %v709
  %v711 = vpop.f32.mrb[0].mxu0
  %v712 = vpop.f32.mrb[0].mxu0
  %v713 = vadd.f32 0.0, %v712
  %v714 = vpop.f32.mrb[0].mxu0
  %715 = vmatprep.mubr.bf16.mxu0 0
  %716 = vmatmul.mubr.bf16.gmra.mrb[0].mxu0 %v620
  %v717 = vpop.f32.mrb[0].mxu0
  %v718 = vadd.f32 0.0, %v717
  %v719 = vpop.f32.mrb[0].mxu0
  %v720 = vpop.f32.mrb[0].mxu0
  %v721 = vadd.f32 0.0, %v720
  %v722 = vpop.f32.mrb[0].mxu0
  %723 = vmatprep.mubr.bf16.mxu0 0
  %724 = vmatmul.mubr.bf16.gmra.mrb[0].mxu0 %v621
  %v725 = vpop.f32.mrb[0].mxu0
  %v726 = vadd.f32 0.0, %v725
  %v727 = vpop.f32.mrb[0].mxu0
  %v728 = vpop.f32.mrb[0].mxu0
  %v729 = vadd.f32 0.0, %v728
  %v730 = vpop.f32.mrb[0].mxu0
  %731 = vmatprep.mubr.bf16.mxu0 0
  %732 = vmatmul.mubr.bf16.gmra.mrb[0].mxu0 %v622
  %v733 = vpop.f32.mrb[0].mxu0
  %v734 = vadd.f32 0.0, %v733
  %v735 = vpop.f32.mrb[0].mxu0
  %v736 = vpop.f32.mrb[0].mxu0
  %v737 = vadd.f32 0.0, %v736
  %v738 = vpop.f32.mrb[0].mxu0
  %739 = vmatprep.mubr.bf16.mxu0 0
  %740 = vmatmul.mubr.bf16.gmra.mrb[0].mxu0 %v623
  %v741 = vpop.f32.mrb[0].mxu0
  %v742 = vadd.f32 0.0, %v741
  %v743 = vpop.f32.mrb[0].mxu0
  %v744 = vpop.f32.mrb[0].mxu0
  %v745 = vadd.f32 0.0, %v744
  %v746 = vpop.f32.mrb[0].mxu0
  %747 = vmatprep.mubr.bf16.mxu0 0
  %748 = vmatmul.mubr.bf16.gmra.mrb[0].mxu0 %v624
  %v749 = vpop.f32.mrb[0].mxu0
  %v750 = vadd.f32 0.0, %v749
  %v751 = vpop.f32.mrb[0].mxu0
  %v752 = vpop.f32.mrb[0].mxu0
  %v753 = vadd.f32 0.0, %v752
  %v754 = vpop.f32.mrb[0].mxu0
  %755 = vmatprep.mubr.bf16.mxu0 0
  %756 = vmatmul.mubr.bf16.gmra.mrb[0].mxu0 %v625
  %v757 = vpop.f32.mrb[0].mxu0
  %v758 = vadd.f32 0.0, %v757
  %v759 = vpop.f32.mrb[0].mxu0
  %v760 = vpop.f32.mrb[0].mxu0
  %v761 = vadd.f32 0.0, %v760
  %v762 = vpop.f32.mrb[0].mxu0
  %763 = vmatprep.mubr.bf16.mxu0 0
  %764 = vmatmul.mubr.bf16.gmra.mrb[0].mxu0 %v626
  %v765 = vpop.f32.mrb[0].mxu0
  %v766 = vadd.f32 0.0, %v765
  %v767 = vpop.f32.mrb[0].mxu0
  %v768 = vpop.f32.mrb[0].mxu0
  %v769 = vadd.f32 0.0, %v768
  %v770 = vpop.f32.mrb[0].mxu0
  %771 = vdwg.mxu0
  %v772 = vld [vmem:[#allocation3] sm:$0xff]
  %v773 = vld [vmem:[#allocation3 + $0x8] sm:$0xff]
  %v774 = vld [vmem:[#allocation3 + $0x10] sm:$0xff]
  %v775 = vld [vmem:[#allocation3 + $0x18] sm:$0xff]
  %v776 = vld [vmem:[#allocation3 + $0x20] sm:$0xff]
  %v777 = vld [vmem:[#allocation3 + $0x28] sm:$0xff]
  %v778 = vld [vmem:[#allocation3 + $0x30] sm:$0xff]
  %v779 = vld [vmem:[#allocation3 + $0x38] sm:$0xff]
  %v780 = vld [vmem:[#allocation3 + $0x40] sm:$0xff]
  %v781 = vld [vmem:[#allocation3 + $0x48] sm:$0xff]
  %v782 = vld [vmem:[#allocation3 + $0x50] sm:$0xff]
  %v783 = vld [vmem:[#allocation3 + $0x58] sm:$0xff]
  %v784 = vld [vmem:[#allocation3 + $0x60] sm:$0xff]
  %v785 = vld [vmem:[#allocation3 + $0x68] sm:$0xff]
  %v786 = vld [vmem:[#allocation3 + $0x70] sm:$0xff]
  %v787 = vld [vmem:[#allocation3 + $0x78] sm:$0xff]
  %789 = vset.pattern.permute.xlu0 0
  %790 = vperm.xlu0 %789, %v444
  %v791 = vpop.permute.xlu0 %790
  %794 = vset.pattern.permute.xlu0 0
  %795 = vperm.xlu0 %794, %v446
  %v796 = vpop.permute.xlu0 %795
  %799 = vset.pattern.permute.xlu0 0
  %800 = vperm.xlu0 %799, %v448
  %v801 = vpop.permute.xlu0 %800
  %804 = vset.pattern.permute.xlu0 0
  %805 = vperm.xlu0 %804, %v450
  %v806 = vpop.permute.xlu0 %805
  %809 = vset.pattern.permute.xlu0 0
  %810 = vperm.xlu0 %809, %v452
  %v811 = vpop.permute.xlu0 %810
  %814 = vset.pattern.permute.xlu0 0
  %815 = vperm.xlu0 %814, %v454
  %v816 = vpop.permute.xlu0 %815
  %819 = vset.pattern.permute.xlu0 0
  %820 = vperm.xlu0 %819, %v456
  %v821 = vpop.permute.xlu0 %820
  %824 = vset.pattern.permute.xlu0 0
  %825 = vperm.xlu0 %824, %v458
  %v826 = vpop.permute.xlu0 %825
  %829 = vset.pattern.permute.xlu0 0
  %830 = vperm.xlu0 %829, %v460
  %v831 = vpop.permute.xlu0 %830
  %834 = vset.pattern.permute.xlu0 0
  %835 = vperm.xlu0 %834, %v462
  %v836 = vpop.permute.xlu0 %835
  %839 = vset.pattern.permute.xlu0 0
  %840 = vperm.xlu0 %839, %v464
  %v841 = vpop.permute.xlu0 %840
  %844 = vset.pattern.permute.xlu0 0
  %845 = vperm.xlu0 %844, %v466
  %v846 = vpop.permute.xlu0 %845
  %849 = vset.pattern.permute.xlu0 0
  %850 = vperm.xlu0 %849, %v468
  %v851 = vpop.permute.xlu0 %850
  %854 = vset.pattern.permute.xlu0 0
  %855 = vperm.xlu0 %854, %v470
  %v856 = vpop.permute.xlu0 %855
  %859 = vset.pattern.permute.xlu0 0
  %860 = vperm.xlu0 %859, %v472
  %v861 = vpop.permute.xlu0 %860
  %864 = vset.pattern.permute.xlu0 0
  %865 = vperm.xlu0 %864, %v474
  %v866 = vpop.permute.xlu0 %865
  %v868 = vmul.f32 %v791, %v772
  %v869 = vmul.f32 %v796, %v773
  %v870 = vmul.f32 %v801, %v774
  %v871 = vmul.f32 %v806, %v775
  %v872 = vmul.f32 %v811, %v776
  %v873 = vmul.f32 %v816, %v777
  %v874 = vmul.f32 %v821, %v778
  %v875 = vmul.f32 %v826, %v779
  %v876 = vmul.f32 %v831, %v780
  %v877 = vmul.f32 %v836, %v781
  %v878 = vmul.f32 %v841, %v782
  %v879 = vmul.f32 %v846, %v783
  %v880 = vmul.f32 %v851, %v784
  %v881 = vmul.f32 %v856, %v785
  %v882 = vmul.f32 %v861, %v786
  %v883 = vmul.f32 %v866, %v787
  %v884 = vadd.f32 %v868, %v710
  %v885 = vadd.f32 %v869, %v713
  %v886 = vadd.f32 %v870, %v718
  %v887 = vadd.f32 %v871, %v721
  %v888 = vadd.f32 %v872, %v726
  %v889 = vadd.f32 %v873, %v729
  %v890 = vadd.f32 %v874, %v734
  %v891 = vadd.f32 %v875, %v737
  %v892 = vadd.f32 %v876, %v742
  %v893 = vadd.f32 %v877, %v745
  %v894 = vadd.f32 %v878, %v750
  %v895 = vadd.f32 %v879, %v753
  %v896 = vadd.f32 %v880, %v758
  %v897 = vadd.f32 %v881, %v761
  %v898 = vadd.f32 %v882, %v766
  %v899 = vadd.f32 %v883, %v769
  %vm900 = vcmask 72704
  %901 = vst.msk [vmem:[#allocation3] sm:$0xff] %vm900, %v884
  %902 = vst.msk [vmem:[#allocation3 + $0x8] sm:$0xff] %vm900, %v885
  %903 = vst.msk [vmem:[#allocation3 + $0x10] sm:$0xff] %vm900, %v886
  %904 = vst.msk [vmem:[#allocation3 + $0x18] sm:$0xff] %vm900, %v887
  %905 = vst.msk [vmem:[#allocation3 + $0x20] sm:$0xff] %vm900, %v888
  %906 = vst.msk [vmem:[#allocation3 + $0x28] sm:$0xff] %vm900, %v889
  %907 = vst.msk [vmem:[#allocation3 + $0x30] sm:$0xff] %vm900, %v890
  %908 = vst.msk [vmem:[#allocation3 + $0x38] sm:$0xff] %vm900, %v891
  %909 = vst.msk [vmem:[#allocation3 + $0x40] sm:$0xff] %vm900, %v892
  %910 = vst.msk [vmem:[#allocation3 + $0x48] sm:$0xff] %vm900, %v893
  %911 = vst.msk [vmem:[#allocation3 + $0x50] sm:$0xff] %vm900, %v894
  %912 = vst.msk [vmem:[#allocation3 + $0x58] sm:$0xff] %vm900, %v895
  %913 = vst.msk [vmem:[#allocation3 + $0x60] sm:$0xff] %vm900, %v896
  %914 = vst.msk [vmem:[#allocation3 + $0x68] sm:$0xff] %vm900, %v897
  %915 = vst.msk [vmem:[#allocation3 + $0x70] sm:$0xff] %vm900, %v898
  %916 = vst.msk [vmem:[#allocation3 + $0x78] sm:$0xff] %vm900, %v899
  %vm917 = vcmask 7168
  %918 = vst.msk [vmem:[#allocation2] sm:$0xff] %vm917, %v411
  %919 = vst.msk [vmem:[#allocation2 + $0x8] sm:$0xff] %vm917, %v412
  %920 = vst.msk [vmem:[#allocation2 + $0x10] sm:$0xff] %vm917, %v413
  %921 = vst.msk [vmem:[#allocation2 + $0x18] sm:$0xff] %vm917, %v414
  %922 = vst.msk [vmem:[#allocation2 + $0x20] sm:$0xff] %vm917, %v415
  %923 = vst.msk [vmem:[#allocation2 + $0x28] sm:$0xff] %vm917, %v416
  %924 = vst.msk [vmem:[#allocation2 + $0x30] sm:$0xff] %vm917, %v417
  %925 = vst.msk [vmem:[#allocation2 + $0x38] sm:$0xff] %vm917, %v418
  %926 = vst.msk [vmem:[#allocation2 + $0x40] sm:$0xff] %vm917, %v419
  %927 = vst.msk [vmem:[#allocation2 + $0x48] sm:$0xff] %vm917, %v420
  %928 = vst.msk [vmem:[#allocation2 + $0x50] sm:$0xff] %vm917, %v421
  %929 = vst.msk [vmem:[#allocation2 + $0x58] sm:$0xff] %vm917, %v422
  %930 = vst.msk [vmem:[#allocation2 + $0x60] sm:$0xff] %vm917, %v423
  %931 = vst.msk [vmem:[#allocation2 + $0x68] sm:$0xff] %vm917, %v424
  %932 = vst.msk [vmem:[#allocation2 + $0x70] sm:$0xff] %vm917, %v425
  %933 = vst.msk [vmem:[#allocation2 + $0x78] sm:$0xff] %vm917, %v426
  %v934 = vld [vmem:[%s0] sm:$0xff]
  %v935 = vld [vmem:[%s0 + $0x8] sm:$0xff]
  %v936 = vld [vmem:[%s0 + $0x10] sm:$0xff]
  %v937 = vld [vmem:[%s0 + $0x18] sm:$0xff]
  %v938 = vld [vmem:[%s0 + $0x20] sm:$0xff]
  %v939 = vld [vmem:[%s0 + $0x28] sm:$0xff]
  %v940 = vld [vmem:[%s0 + $0x30] sm:$0xff]
  %v941 = vld [vmem:[%s0 + $0x38] sm:$0xff]
  %v942 = vld [vmem:[%s0 + $0x40] sm:$0xff]
  %v943 = vld [vmem:[%s0 + $0x48] sm:$0xff]
  %v944 = vld [vmem:[%s0 + $0x50] sm:$0xff]
  %v945 = vld [vmem:[%s0 + $0x58] sm:$0xff]
  %v946 = vld [vmem:[%s0 + $0x60] sm:$0xff]
  %v947 = vld [vmem:[%s0 + $0x68] sm:$0xff]
  %v948 = vld [vmem:[%s0 + $0x70] sm:$0xff]
  %v949 = vld [vmem:[%s0 + $0x78] sm:$0xff]
  %v950 = vld [vmem:[%s1 + $0x1] sm:$0x1]
  %952 = vset.pattern.permute.xlu0 1
  %953 = vperm.xlu0 %952, %v934
  %v954 = vpop.permute.xlu0 %953
  %957 = vset.pattern.permute.xlu0 1
  %958 = vperm.xlu0 %957, %v935
  %v959 = vpop.permute.xlu0 %958
  %962 = vset.pattern.permute.xlu0 1
  %963 = vperm.xlu0 %962, %v936
  %v964 = vpop.permute.xlu0 %963
  %967 = vset.pattern.permute.xlu0 1
  %968 = vperm.xlu0 %967, %v937
  %v969 = vpop.permute.xlu0 %968
  %972 = vset.pattern.permute.xlu0 1
  %973 = vperm.xlu0 %972, %v938
  %v974 = vpop.permute.xlu0 %973
  %977 = vset.pattern.permute.xlu0 1
  %978 = vperm.xlu0 %977, %v939
  %v979 = vpop.permute.xlu0 %978
  %982 = vset.pattern.permute.xlu0 1
  %983 = vperm.xlu0 %982, %v940
  %v984 = vpop.permute.xlu0 %983
  %987 = vset.pattern.permute.xlu0 1
  %988 = vperm.xlu0 %987, %v941
  %v989 = vpop.permute.xlu0 %988
  %992 = vset.pattern.permute.xlu0 1
  %993 = vperm.xlu0 %992, %v942
  %v994 = vpop.permute.xlu0 %993
  %997 = vset.pattern.permute.xlu0 1
  %998 = vperm.xlu0 %997, %v943
  %v999 = vpop.permute.xlu0 %998
  %1002 = vset.pattern.permute.xlu0 1
  %1003 = vperm.xlu0 %1002, %v944
  %v1004 = vpop.permute.xlu0 %1003
  %1007 = vset.pattern.permute.xlu0 1
  %1008 = vperm.xlu0 %1007, %v945
  %v1009 = vpop.permute.xlu0 %1008
  %1012 = vset.pattern.permute.xlu0 1
  %1013 = vperm.xlu0 %1012, %v946
  %v1014 = vpop.permute.xlu0 %1013
  %1017 = vset.pattern.permute.xlu0 1
  %1018 = vperm.xlu0 %1017, %v947
  %v1019 = vpop.permute.xlu0 %1018
  %1022 = vset.pattern.permute.xlu0 1
  %1023 = vperm.xlu0 %1022, %v948
  %v1024 = vpop.permute.xlu0 %1023
  %1027 = vset.pattern.permute.xlu0 1
  %1028 = vperm.xlu0 %1027, %v949
  %v1029 = vpop.permute.xlu0 %1028
  %v1031 = vlaneseq
  %v1032 = vshrl.u32 %v1031, 7
  %v1033 = vsub.s32 0, %v1032
  %v1034 = vrot.slane %v950, %v1033
  %v1035 = vadd.f32 %v954, %v1034
  %v1036 = vadd.f32 %v959, %v1034
  %v1037 = vadd.f32 %v964, %v1034
  %v1038 = vadd.f32 %v969, %v1034
  %v1039 = vadd.f32 %v974, %v1034
  %v1040 = vadd.f32 %v979, %v1034
  %v1041 = vadd.f32 %v984, %v1034
  %v1042 = vadd.f32 %v989, %v1034
  %v1043 = vadd.f32 %v994, %v1034
  %v1044 = vadd.f32 %v999, %v1034
  %v1045 = vadd.f32 %v1004, %v1034
  %v1046 = vadd.f32 %v1009, %v1034
  %v1047 = vadd.f32 %v1014, %v1034
  %v1048 = vadd.f32 %v1019, %v1034
  %v1049 = vadd.f32 %v1024, %v1034
  %v1050 = vadd.f32 %v1029, %v1034
  %vm1051 = vcmp.ge.f32.partialorder %v1035, 0.0
  %vm1052 = vcmp.ge.f32.partialorder %v1036, 0.0
  %vm1053 = vcmp.ge.f32.partialorder %v1037, 0.0
  %vm1054 = vcmp.ge.f32.partialorder %v1038, 0.0
  %vm1055 = vcmp.ge.f32.partialorder %v1039, 0.0
  %vm1056 = vcmp.ge.f32.partialorder %v1040, 0.0
  %vm1057 = vcmp.ge.f32.partialorder %v1041, 0.0
  %vm1058 = vcmp.ge.f32.partialorder %v1042, 0.0
  %vm1059 = vcmp.ge.f32.partialorder %v1043, 0.0
  %vm1060 = vcmp.ge.f32.partialorder %v1044, 0.0
  %vm1061 = vcmp.ge.f32.partialorder %v1045, 0.0
  %vm1062 = vcmp.ge.f32.partialorder %v1046, 0.0
  %vm1063 = vcmp.ge.f32.partialorder %v1047, 0.0
  %vm1064 = vcmp.ge.f32.partialorder %v1048, 0.0
  %vm1065 = vcmp.ge.f32.partialorder %v1049, 0.0
  %vm1066 = vcmp.ge.f32.partialorder %v1050, 0.0
  %v1067 = vmul.f32 %v1035, 0.2
  %v1068 = vmul.f32 %v1036, 0.2
  %v1069 = vmul.f32 %v1037, 0.2
  %v1070 = vmul.f32 %v1038, 0.2
  %v1071 = vmul.f32 %v1039, 0.2
  %v1072 = vmul.f32 %v1040, 0.2
  %v1073 = vmul.f32 %v1041, 0.2
  %v1074 = vmul.f32 %v1042, 0.2
  %v1075 = vmul.f32 %v1043, 0.2
  %v1076 = vmul.f32 %v1044, 0.2
  %v1077 = vmul.f32 %v1045, 0.2
  %v1078 = vmul.f32 %v1046, 0.2
  %v1079 = vmul.f32 %v1047, 0.2
  %v1080 = vmul.f32 %v1048, 0.2
  %v1081 = vmul.f32 %v1049, 0.2
  %v1082 = vmul.f32 %v1050, 0.2
  %v1083 = vsel %vm1051, %v1035, %v1067
  %v1084 = vsel %vm1052, %v1036, %v1068
  %v1085 = vsel %vm1053, %v1037, %v1069
  %v1086 = vsel %vm1054, %v1038, %v1070
  %v1087 = vsel %vm1055, %v1039, %v1071
  %v1088 = vsel %vm1056, %v1040, %v1072
  %v1089 = vsel %vm1057, %v1041, %v1073
  %v1090 = vsel %vm1058, %v1042, %v1074
  %v1091 = vsel %vm1059, %v1043, %v1075
  %v1092 = vsel %vm1060, %v1044, %v1076
  %v1093 = vsel %vm1061, %v1045, %v1077
  %v1094 = vsel %vm1062, %v1046, %v1078
  %v1095 = vsel %vm1063, %v1047, %v1079
  %v1096 = vsel %vm1064, %v1048, %v1080
  %v1097 = vsel %vm1065, %v1049, %v1081
  %v1098 = vsel %vm1066, %v1050, %v1082
  %v1099 = vsel %vm331, %v1083, -1e+30
  %v1100 = vsel %vm332, %v1084, -1e+30
  %v1101 = vsel %vm333, %v1085, -1e+30
  %v1102 = vsel %vm334, %v1086, -1e+30
  %v1103 = vsel %vm335, %v1087, -1e+30
  %v1104 = vsel %vm336, %v1088, -1e+30
  %v1105 = vsel %vm337, %v1089, -1e+30
  %v1106 = vsel %vm338, %v1090, -1e+30
  %v1107 = vsel %vm339, %v1091, -1e+30
  %v1108 = vsel %vm340, %v1092, -1e+30
  %v1109 = vsel %vm341, %v1093, -1e+30
  %v1110 = vsel %vm342, %v1094, -1e+30
  %v1111 = vsel %vm343, %v1095, -1e+30
  %v1112 = vsel %vm344, %v1096, -1e+30
  %v1113 = vsel %vm345, %v1097, -1e+30
  %v1114 = vsel %vm346, %v1098, -1e+30
  %v1115 = vld [vmem:[#allocation2] sm:$0xff]
  %v1116 = vld [vmem:[#allocation2 + $0x8] sm:$0xff]
  %v1117 = vld [vmem:[#allocation2 + $0x10] sm:$0xff]
  %v1118 = vld [vmem:[#allocation2 + $0x18] sm:$0xff]
  %v1119 = vld [vmem:[#allocation2 + $0x20] sm:$0xff]
  %v1120 = vld [vmem:[#allocation2 + $0x28] sm:$0xff]
  %v1121 = vld [vmem:[#allocation2 + $0x30] sm:$0xff]
  %v1122 = vld [vmem:[#allocation2 + $0x38] sm:$0xff]
  %v1123 = vld [vmem:[#allocation2 + $0x40] sm:$0xff]
  %v1124 = vld [vmem:[#allocation2 + $0x48] sm:$0xff]
  %v1125 = vld [vmem:[#allocation2 + $0x50] sm:$0xff]
  %v1126 = vld [vmem:[#allocation2 + $0x58] sm:$0xff]
  %v1127 = vld [vmem:[#allocation2 + $0x60] sm:$0xff]
  %v1128 = vld [vmem:[#allocation2 + $0x68] sm:$0xff]
  %v1129 = vld [vmem:[#allocation2 + $0x70] sm:$0xff]
  %v1130 = vld [vmem:[#allocation2 + $0x78] sm:$0xff]
  %1131 = vmax.xlane.f32.xlu0 %v1099
  %v1132 = vpop.xlane.xlu0 %1131
  %1133 = vmax.xlane.f32.xlu0 %v1100
  %v1134 = vpop.xlane.xlu0 %1133
  %1135 = vmax.xlane.f32.xlu0 %v1101
  %v1136 = vpop.xlane.xlu0 %1135
  %1137 = vmax.xlane.f32.xlu0 %v1102
  %v1138 = vpop.xlane.xlu0 %1137
  %1139 = vmax.xlane.f32.xlu0 %v1103
  %v1140 = vpop.xlane.xlu0 %1139
  %1141 = vmax.xlane.f32.xlu0 %v1104
  %v1142 = vpop.xlane.xlu0 %1141
  %1143 = vmax.xlane.f32.xlu0 %v1105
  %v1144 = vpop.xlane.xlu0 %1143
  %1145 = vmax.xlane.f32.xlu0 %v1106
  %v1146 = vpop.xlane.xlu0 %1145
  %1147 = vmax.xlane.f32.xlu0 %v1107
  %v1148 = vpop.xlane.xlu0 %1147
  %1149 = vmax.xlane.f32.xlu0 %v1108
  %v1150 = vpop.xlane.xlu0 %1149
  %1151 = vmax.xlane.f32.xlu0 %v1109
  %v1152 = vpop.xlane.xlu0 %1151
  %1153 = vmax.xlane.f32.xlu0 %v1110
  %v1154 = vpop.xlane.xlu0 %1153
  %1155 = vmax.xlane.f32.xlu0 %v1111
  %v1156 = vpop.xlane.xlu0 %1155
  %1157 = vmax.xlane.f32.xlu0 %v1112
  %v1158 = vpop.xlane.xlu0 %1157
  %1159 = vmax.xlane.f32.xlu0 %v1113
  %v1160 = vpop.xlane.xlu0 %1159
  %1161 = vmax.xlane.f32.xlu0 %v1114
  %v1162 = vpop.xlane.xlu0 %1161
  %v1163 = vmax.f32 %v1115, %v1132
  %v1164 = vmax.f32 %v1116, %v1134
  %v1165 = vmax.f32 %v1117, %v1136
  %v1166 = vmax.f32 %v1118, %v1138
  %v1167 = vmax.f32 %v1119, %v1140
  %v1168 = vmax.f32 %v1120, %v1142
  %v1169 = vmax.f32 %v1121, %v1144
  %v1170 = vmax.f32 %v1122, %v1146
  %v1171 = vmax.f32 %v1123, %v1148
  %v1172 = vmax.f32 %v1124, %v1150
  %v1173 = vmax.f32 %v1125, %v1152
  %v1174 = vmax.f32 %v1126, %v1154
  %v1175 = vmax.f32 %v1127, %v1156
  %v1176 = vmax.f32 %v1128, %v1158
  %v1177 = vmax.f32 %v1129, %v1160
  %v1178 = vmax.f32 %v1130, %v1162
  %v1179 = vsub.f32 %v1115, %v1163
  %v1180 = vsub.f32 %v1116, %v1164
  %v1181 = vsub.f32 %v1117, %v1165
  %v1182 = vsub.f32 %v1118, %v1166
  %v1183 = vsub.f32 %v1119, %v1167
  %v1184 = vsub.f32 %v1120, %v1168
  %v1185 = vsub.f32 %v1121, %v1169
  %v1186 = vsub.f32 %v1122, %v1170
  %v1187 = vsub.f32 %v1123, %v1171
  %v1188 = vsub.f32 %v1124, %v1172
  %v1189 = vsub.f32 %v1125, %v1173
  %v1190 = vsub.f32 %v1126, %v1174
  %v1191 = vsub.f32 %v1127, %v1175
  %v1192 = vsub.f32 %v1128, %v1176
  %v1193 = vsub.f32 %v1129, %v1177
  %v1194 = vsub.f32 %v1130, %v1178
  %v1195 = vmul.f32 %v1179, 1.442695
  %v1196 = vpow.pop %v1195
  %v1197 = vmul.f32 %v1180, 1.442695
  %v1198 = vpow.pop %v1197
  %v1199 = vmul.f32 %v1181, 1.442695
  %v1200 = vpow.pop %v1199
  %v1201 = vmul.f32 %v1182, 1.442695
  %v1202 = vpow.pop %v1201
  %v1203 = vmul.f32 %v1183, 1.442695
  %v1204 = vpow.pop %v1203
  %v1205 = vmul.f32 %v1184, 1.442695
  %v1206 = vpow.pop %v1205
  %v1207 = vmul.f32 %v1185, 1.442695
  %v1208 = vpow.pop %v1207
  %v1209 = vmul.f32 %v1186, 1.442695
  %v1210 = vpow.pop %v1209
  %v1211 = vmul.f32 %v1187, 1.442695
  %v1212 = vpow.pop %v1211
  %v1213 = vmul.f32 %v1188, 1.442695
  %v1214 = vpow.pop %v1213
  %v1215 = vmul.f32 %v1189, 1.442695
  %v1216 = vpow.pop %v1215
  %v1217 = vmul.f32 %v1190, 1.442695
  %v1218 = vpow.pop %v1217
  %v1219 = vmul.f32 %v1191, 1.442695
  %v1220 = vpow.pop %v1219
  %v1221 = vmul.f32 %v1192, 1.442695
  %v1222 = vpow.pop %v1221
  %v1223 = vmul.f32 %v1193, 1.442695
  %v1224 = vpow.pop %v1223
  %v1225 = vmul.f32 %v1194, 1.442695
  %v1226 = vpow.pop %v1225
  %1228 = vset.pattern.permute.xlu0 1
  %1229 = vperm.xlu0 %1228, %v1163
  %v1230 = vpop.permute.xlu0 %1229
  %1233 = vset.pattern.permute.xlu0 1
  %1234 = vperm.xlu0 %1233, %v1164
  %v1235 = vpop.permute.xlu0 %1234
  %1238 = vset.pattern.permute.xlu0 1
  %1239 = vperm.xlu0 %1238, %v1165
  %v1240 = vpop.permute.xlu0 %1239
  %1243 = vset.pattern.permute.xlu0 1
  %1244 = vperm.xlu0 %1243, %v1166
  %v1245 = vpop.permute.xlu0 %1244
  %1248 = vset.pattern.permute.xlu0 1
  %1249 = vperm.xlu0 %1248, %v1167
  %v1250 = vpop.permute.xlu0 %1249
  %1253 = vset.pattern.permute.xlu0 1
  %1254 = vperm.xlu0 %1253, %v1168
  %v1255 = vpop.permute.xlu0 %1254
  %1258 = vset.pattern.permute.xlu0 1
  %1259 = vperm.xlu0 %1258, %v1169
  %v1260 = vpop.permute.xlu0 %1259
  %1263 = vset.pattern.permute.xlu0 1
  %1264 = vperm.xlu0 %1263, %v1170
  %v1265 = vpop.permute.xlu0 %1264
  %1268 = vset.pattern.permute.xlu0 1
  %1269 = vperm.xlu0 %1268, %v1171
  %v1270 = vpop.permute.xlu0 %1269
  %1273 = vset.pattern.permute.xlu0 1
  %1274 = vperm.xlu0 %1273, %v1172
  %v1275 = vpop.permute.xlu0 %1274
  %1278 = vset.pattern.permute.xlu0 1
  %1279 = vperm.xlu0 %1278, %v1173
  %v1280 = vpop.permute.xlu0 %1279
  %1283 = vset.pattern.permute.xlu0 1
  %1284 = vperm.xlu0 %1283, %v1174
  %v1285 = vpop.permute.xlu0 %1284
  %1288 = vset.pattern.permute.xlu0 1
  %1289 = vperm.xlu0 %1288, %v1175
  %v1290 = vpop.permute.xlu0 %1289
  %1293 = vset.pattern.permute.xlu0 1
  %1294 = vperm.xlu0 %1293, %v1176
  %v1295 = vpop.permute.xlu0 %1294
  %1298 = vset.pattern.permute.xlu0 1
  %1299 = vperm.xlu0 %1298, %v1177
  %v1300 = vpop.permute.xlu0 %1299
  %1303 = vset.pattern.permute.xlu0 1
  %1304 = vperm.xlu0 %1303, %v1178
  %v1305 = vpop.permute.xlu0 %1304
  %v1307 = vsub.f32 %v1099, %v1230
  %v1308 = vsub.f32 %v1100, %v1235
  %v1309 = vsub.f32 %v1101, %v1240
  %v1310 = vsub.f32 %v1102, %v1245
  %v1311 = vsub.f32 %v1103, %v1250
  %v1312 = vsub.f32 %v1104, %v1255
  %v1313 = vsub.f32 %v1105, %v1260
  %v1314 = vsub.f32 %v1106, %v1265
  %v1315 = vsub.f32 %v1107, %v1270
  %v1316 = vsub.f32 %v1108, %v1275
  %v1317 = vsub.f32 %v1109, %v1280
  %v1318 = vsub.f32 %v1110, %v1285
  %v1319 = vsub.f32 %v1111, %v1290
  %v1320 = vsub.f32 %v1112, %v1295
  %v1321 = vsub.f32 %v1113, %v1300
  %v1322 = vsub.f32 %v1114, %v1305
  %v1323 = vmul.f32 %v1307, 1.442695
  %v1324 = vpow.pop %v1323
  %v1325 = vmul.f32 %v1308, 1.442695
  %v1326 = vpow.pop %v1325
  %v1327 = vmul.f32 %v1309, 1.442695
  %v1328 = vpow.pop %v1327
  %v1329 = vmul.f32 %v1310, 1.442695
  %v1330 = vpow.pop %v1329
  %v1331 = vmul.f32 %v1311, 1.442695
  %v1332 = vpow.pop %v1331
  %v1333 = vmul.f32 %v1312, 1.442695
  %v1334 = vpow.pop %v1333
  %v1335 = vmul.f32 %v1313, 1.442695
  %v1336 = vpow.pop %v1335
  %v1337 = vmul.f32 %v1314, 1.442695
  %v1338 = vpow.pop %v1337
  %v1339 = vmul.f32 %v1315, 1.442695
  %v1340 = vpow.pop %v1339
  %v1341 = vmul.f32 %v1316, 1.442695
  %v1342 = vpow.pop %v1341
  %v1343 = vmul.f32 %v1317, 1.442695
  %v1344 = vpow.pop %v1343
  %v1345 = vmul.f32 %v1318, 1.442695
  %v1346 = vpow.pop %v1345
  %v1347 = vmul.f32 %v1319, 1.442695
  %v1348 = vpow.pop %v1347
  %v1349 = vmul.f32 %v1320, 1.442695
  %v1350 = vpow.pop %v1349
  %v1351 = vmul.f32 %v1321, 1.442695
  %v1352 = vpow.pop %v1351
  %v1353 = vmul.f32 %v1322, 1.442695
  %v1354 = vpow.pop %v1353
  %v1355 = vld [vmem:[%s3] sm:$0xf]
  %v1356 = vld [vmem:[%s3 + $0x4] sm:$0xf]
  %v1357 = vld [vmem:[%s3 + $0x8] sm:$0xf]
  %v1358 = vld [vmem:[%s3 + $0xc] sm:$0xf]
  %v1359 = vld [vmem:[%s3 + $0x10] sm:$0xf]
  %v1360 = vld [vmem:[%s3 + $0x14] sm:$0xf]
  %v1361 = vld [vmem:[%s3 + $0x18] sm:$0xf]
  %v1362 = vld [vmem:[%s3 + $0x1c] sm:$0xf]
  %v1363 = vld [vmem:[%s3 + $0x20] sm:$0xf]
  %v1364 = vld [vmem:[%s3 + $0x24] sm:$0xf]
  %v1365 = vld [vmem:[%s3 + $0x28] sm:$0xf]
  %v1366 = vld [vmem:[%s3 + $0x2c] sm:$0xf]
  %v1367 = vld [vmem:[%s3 + $0x30] sm:$0xf]
  %v1368 = vld [vmem:[%s3 + $0x34] sm:$0xf]
  %v1369 = vld [vmem:[%s3 + $0x38] sm:$0xf]
  %v1370 = vld [vmem:[%s3 + $0x3c] sm:$0xf]
  %v1371 = vpack.c.bf16 %v1326, %v1324
  %v1372 = vpack.c.bf16 %v1330, %v1328
  %v1373 = vpack.c.bf16 %v1334, %v1332
  %v1374 = vpack.c.bf16 %v1338, %v1336
  %v1375 = vpack.c.bf16 %v1342, %v1340
  %v1376 = vpack.c.bf16 %v1346, %v1344
  %v1377 = vpack.c.bf16 %v1350, %v1348
  %v1378 = vpack.c.bf16 %v1354, %v1352
  %v1395 = vunpack.c.l.b16 %v1355
  %v1396 = vunpack.c.l.b16 %v1356
  %v1397 = vunpack.c.l.b16 %v1357
  %v1398 = vunpack.c.l.b16 %v1358
  %v1399 = vunpack.c.l.b16 %v1359
  %v1400 = vunpack.c.l.b16 %v1360
  %v1401 = vunpack.c.l.b16 %v1361
  %v1402 = vunpack.c.l.b16 %v1362
  %v1403 = vunpack.c.l.b16 %v1363
  %v1404 = vunpack.c.l.b16 %v1364
  %v1405 = vunpack.c.l.b16 %v1365
  %v1406 = vunpack.c.l.b16 %v1366
  %v1407 = vunpack.c.l.b16 %v1367
  %v1408 = vunpack.c.l.b16 %v1368
  %v1409 = vunpack.c.l.b16 %v1369
  %v1410 = vunpack.c.l.b16 %v1370
  %v1411 = vpack.c.b16 %v1396, %v1395
  %v1412 = vpack.c.b16 %v1398, %v1397
  %v1413 = vpack.c.b16 %v1400, %v1399
  %v1414 = vpack.c.b16 %v1402, %v1401
  %v1415 = vpack.c.b16 %v1404, %v1403
  %v1416 = vpack.c.b16 %v1406, %v1405
  %v1417 = vpack.c.b16 %v1408, %v1407
  %v1418 = vpack.c.b16 %v1410, %v1409
  %1419 = vrot.lane.b32.xlu0 %v1411, 119
  %v1420 = vpop.permute.xlu0 %1419
  %1421 = vrot.lane.b32.xlu0 %v1412, 119
  %v1422 = vpop.permute.xlu0 %1421
  %1423 = vrot.lane.b32.xlu0 %v1413, 119
  %v1424 = vpop.permute.xlu0 %1423
  %1425 = vrot.lane.b32.xlu0 %v1414, 119
  %v1426 = vpop.permute.xlu0 %1425
  %1427 = vrot.lane.b32.xlu0 %v1415, 119
  %v1428 = vpop.permute.xlu0 %1427
  %1429 = vrot.lane.b32.xlu0 %v1416, 119
  %v1430 = vpop.permute.xlu0 %1429
  %1431 = vrot.lane.b32.xlu0 %v1417, 119
  %v1432 = vpop.permute.xlu0 %1431
  %1433 = vrot.lane.b32.xlu0 %v1418, 119
  %v1434 = vpop.permute.xlu0 %1433
  %1443 = vmatprep.subr.bf16.mxu0 0
  %1444 = vmatpush1.bf16.msra.mxu0 %v1420
  %1445 = vmatprep.subr.bf16.mxu0 0
  %1446 = vmatpush1.bf16.msra.mxu0 %v1422
  %1447 = vmatprep.subr.bf16.mxu0 0
  %1448 = vmatpush1.bf16.msra.mxu0 %v1424
  %1449 = vmatprep.subr.bf16.mxu0 0
  %1450 = vmatpush1.bf16.msra.mxu0 %v1426
  %1451 = vmatprep.subr.bf16.mxu0 0
  %1452 = vmatpush1.bf16.msra.mxu0 %v1428
  %1453 = vmatprep.subr.bf16.mxu0 0
  %1454 = vmatpush1.bf16.msra.mxu0 %v1430
  %1455 = vmatprep.subr.bf16.mxu0 0
  %1456 = vmatpush1.bf16.msra.mxu0 %v1432
  %1457 = vmatprep.subr.bf16.mxu0 0
  %1458 = vmatpush1.bf16.msra.mxu0 %v1434
  %1459 = vmatprep.subr.bf16.mxu0 0
  %1460 = vmatpush1.bf16.msra.mxu0 0
  %1461 = vmatprep.subr.bf16.mxu0 0
  %1462 = vmatpush1.bf16.msra.mxu0 0
  %1463 = vmatprep.subr.bf16.mxu0 0
  %1464 = vmatpush1.bf16.msra.mxu0 0
  %1465 = vmatprep.subr.bf16.mxu0 0
  %1466 = vmatpush1.bf16.msra.mxu0 0
  %1467 = vmatprep.subr.bf16.mxu0 0
  %1468 = vmatpush1.bf16.msra.mxu0 0
  %1469 = vmatprep.subr.bf16.mxu0 0
  %1470 = vmatpush1.bf16.msra.mxu0 0
  %1471 = vmatprep.subr.bf16.mxu0 0
  %1472 = vmatpush1.bf16.msra.mxu0 0
  %1473 = vmatprep.subr.bf16.mxu0 0
  %1474 = vmatpush1.bf16.msra.mxu0 0
  %1475 = vmatprep.mubr.bf16.mxu0 0
  %1476 = vmatmul.mubr.bf16.gmra.mrb[0].mxu0 %v1371
  %v1477 = vpop.f32.mrb[0].mxu0
  %v1478 = vadd.f32 0.0, %v1477
  %v1479 = vpop.f32.mrb[0].mxu0
  %v1480 = vpop.f32.mrb[0].mxu0
  %v1481 = vadd.f32 0.0, %v1480
  %v1482 = vpop.f32.mrb[0].mxu0
  %1483 = vmatprep.mubr.bf16.mxu0 0
  %1484 = vmatmul.mubr.bf16.gmra.mrb[0].mxu0 %v1372
  %v1485 = vpop.f32.mrb[0].mxu0
  %v1486 = vadd.f32 0.0, %v1485
  %v1487 = vpop.f32.mrb[0].mxu0
  %v1488 = vpop.f32.mrb[0].mxu0
  %v1489 = vadd.f32 0.0, %v1488
  %v1490 = vpop.f32.mrb[0].mxu0
  %1491 = vmatprep.mubr.bf16.mxu0 0
  %1492 = vmatmul.mubr.bf16.gmra.mrb[0].mxu0 %v1373
  %v1493 = vpop.f32.mrb[0].mxu0
  %v1494 = vadd.f32 0.0, %v1493
  %v1495 = vpop.f32.mrb[0].mxu0
  %v1496 = vpop.f32.mrb[0].mxu0
  %v1497 = vadd.f32 0.0, %v1496
  %v1498 = vpop.f32.mrb[0].mxu0
  %1499 = vmatprep.mubr.bf16.mxu0 0
  %1500 = vmatmul.mubr.bf16.gmra.mrb[0].mxu0 %v1374
  %v1501 = vpop.f32.mrb[0].mxu0
  %v1502 = vadd.f32 0.0, %v1501
  %v1503 = vpop.f32.mrb[0].mxu0
  %v1504 = vpop.f32.mrb[0].mxu0
  %v1505 = vadd.f32 0.0, %v1504
  %v1506 = vpop.f32.mrb[0].mxu0
  %1507 = vmatprep.mubr.bf16.mxu0 0
  %1508 = vmatmul.mubr.bf16.gmra.mrb[0].mxu0 %v1375
  %v1509 = vpop.f32.mrb[0].mxu0
  %v1510 = vadd.f32 0.0, %v1509
  %v1511 = vpop.f32.mrb[0].mxu0
  %v1512 = vpop.f32.mrb[0].mxu0
  %v1513 = vadd.f32 0.0, %v1512
  %v1514 = vpop.f32.mrb[0].mxu0
  %1515 = vmatprep.mubr.bf16.mxu0 0
  %1516 = vmatmul.mubr.bf16.gmra.mrb[0].mxu0 %v1376
  %v1517 = vpop.f32.mrb[0].mxu0
  %v1518 = vadd.f32 0.0, %v1517
  %v1519 = vpop.f32.mrb[0].mxu0
  %v1520 = vpop.f32.mrb[0].mxu0
  %v1521 = vadd.f32 0.0, %v1520
  %v1522 = vpop.f32.mrb[0].mxu0
  %1523 = vmatprep.mubr.bf16.mxu0 0
  %1524 = vmatmul.mubr.bf16.gmra.mrb[0].mxu0 %v1377
  %v1525 = vpop.f32.mrb[0].mxu0
  %v1526 = vadd.f32 0.0, %v1525
  %v1527 = vpop.f32.mrb[0].mxu0
  %v1528 = vpop.f32.mrb[0].mxu0
  %v1529 = vadd.f32 0.0, %v1528
  %v1530 = vpop.f32.mrb[0].mxu0
  %1531 = vmatprep.mubr.bf16.mxu0 0
  %1532 = vmatmul.mubr.bf16.gmra.mrb[0].mxu0 %v1378
  %v1533 = vpop.f32.mrb[0].mxu0
  %v1534 = vadd.f32 0.0, %v1533
  %v1535 = vpop.f32.mrb[0].mxu0
  %v1536 = vpop.f32.mrb[0].mxu0
  %v1537 = vadd.f32 0.0, %v1536
  %v1538 = vpop.f32.mrb[0].mxu0
  %1539 = vdwg.mxu0
  %v1540 = vld [vmem:[#allocation3] sm:$0xff]
  %v1541 = vld [vmem:[#allocation3 + $0x8] sm:$0xff]
  %v1542 = vld [vmem:[#allocation3 + $0x10] sm:$0xff]
  %v1543 = vld [vmem:[#allocation3 + $0x18] sm:$0xff]
  %v1544 = vld [vmem:[#allocation3 + $0x20] sm:$0xff]
  %v1545 = vld [vmem:[#allocation3 + $0x28] sm:$0xff]
  %v1546 = vld [vmem:[#allocation3 + $0x30] sm:$0xff]
  %v1547 = vld [vmem:[#allocation3 + $0x38] sm:$0xff]
  %v1548 = vld [vmem:[#allocation3 + $0x40] sm:$0xff]
  %v1549 = vld [vmem:[#allocation3 + $0x48] sm:$0xff]
  %v1550 = vld [vmem:[#allocation3 + $0x50] sm:$0xff]
  %v1551 = vld [vmem:[#allocation3 + $0x58] sm:$0xff]
  %v1552 = vld [vmem:[#allocation3 + $0x60] sm:$0xff]
  %v1553 = vld [vmem:[#allocation3 + $0x68] sm:$0xff]
  %v1554 = vld [vmem:[#allocation3 + $0x70] sm:$0xff]
  %v1555 = vld [vmem:[#allocation3 + $0x78] sm:$0xff]
  %1557 = vset.pattern.permute.xlu0 1
  %1558 = vperm.xlu0 %1557, %v1196
  %v1559 = vpop.permute.xlu0 %1558
  %1562 = vset.pattern.permute.xlu0 1
  %1563 = vperm.xlu0 %1562, %v1198
  %v1564 = vpop.permute.xlu0 %1563
  %1567 = vset.pattern.permute.xlu0 1
  %1568 = vperm.xlu0 %1567, %v1200
  %v1569 = vpop.permute.xlu0 %1568
  %1572 = vset.pattern.permute.xlu0 1
  %1573 = vperm.xlu0 %1572, %v1202
  %v1574 = vpop.permute.xlu0 %1573
  %1577 = vset.pattern.permute.xlu0 1
  %1578 = vperm.xlu0 %1577, %v1204
  %v1579 = vpop.permute.xlu0 %1578
  %1582 = vset.pattern.permute.xlu0 1
  %1583 = vperm.xlu0 %1582, %v1206
  %v1584 = vpop.permute.xlu0 %1583
  %1587 = vset.pattern.permute.xlu0 1
  %1588 = vperm.xlu0 %1587, %v1208
  %v1589 = vpop.permute.xlu0 %1588
  %1592 = vset.pattern.permute.xlu0 1
  %1593 = vperm.xlu0 %1592, %v1210
  %v1594 = vpop.permute.xlu0 %1593
  %1597 = vset.pattern.permute.xlu0 1
  %1598 = vperm.xlu0 %1597, %v1212
  %v1599 = vpop.permute.xlu0 %1598
  %1602 = vset.pattern.permute.xlu0 1
  %1603 = vperm.xlu0 %1602, %v1214
  %v1604 = vpop.permute.xlu0 %1603
  %1607 = vset.pattern.permute.xlu0 1
  %1608 = vperm.xlu0 %1607, %v1216
  %v1609 = vpop.permute.xlu0 %1608
  %1612 = vset.pattern.permute.xlu0 1
  %1613 = vperm.xlu0 %1612, %v1218
  %v1614 = vpop.permute.xlu0 %1613
  %1617 = vset.pattern.permute.xlu0 1
  %1618 = vperm.xlu0 %1617, %v1220
  %v1619 = vpop.permute.xlu0 %1618
  %1622 = vset.pattern.permute.xlu0 1
  %1623 = vperm.xlu0 %1622, %v1222
  %v1624 = vpop.permute.xlu0 %1623
  %1627 = vset.pattern.permute.xlu0 1
  %1628 = vperm.xlu0 %1627, %v1224
  %v1629 = vpop.permute.xlu0 %1628
  %1632 = vset.pattern.permute.xlu0 1
  %1633 = vperm.xlu0 %1632, %v1226
  %v1634 = vpop.permute.xlu0 %1633
  %v1636 = vmul.f32 %v1559, %v1540
  %v1637 = vmul.f32 %v1564, %v1541
  %v1638 = vmul.f32 %v1569, %v1542
  %v1639 = vmul.f32 %v1574, %v1543
  %v1640 = vmul.f32 %v1579, %v1544
  %v1641 = vmul.f32 %v1584, %v1545
  %v1642 = vmul.f32 %v1589, %v1546
  %v1643 = vmul.f32 %v1594, %v1547
  %v1644 = vmul.f32 %v1599, %v1548
  %v1645 = vmul.f32 %v1604, %v1549
  %v1646 = vmul.f32 %v1609, %v1550
  %v1647 = vmul.f32 %v1614, %v1551
  %v1648 = vmul.f32 %v1619, %v1552
  %v1649 = vmul.f32 %v1624, %v1553
  %v1650 = vmul.f32 %v1629, %v1554
  %v1651 = vmul.f32 %v1634, %v1555
  %1668 = vrot.lane.b32.xlu0 %v1478, 9
  %v1669 = vpop.permute.xlu0 %1668
  %1670 = vrot.lane.b32.xlu0 %v1481, 9
  %v1671 = vpop.permute.xlu0 %1670
  %1672 = vrot.lane.b32.xlu0 %v1486, 9
  %v1673 = vpop.permute.xlu0 %1672
  %1674 = vrot.lane.b32.xlu0 %v1489, 9
  %v1675 = vpop.permute.xlu0 %1674
  %1676 = vrot.lane.b32.xlu0 %v1494, 9
  %v1677 = vpop.permute.xlu0 %1676
  %1678 = vrot.lane.b32.xlu0 %v1497, 9
  %v1679 = vpop.permute.xlu0 %1678
  %1680 = vrot.lane.b32.xlu0 %v1502, 9
  %v1681 = vpop.permute.xlu0 %1680
  %1682 = vrot.lane.b32.xlu0 %v1505, 9
  %v1683 = vpop.permute.xlu0 %1682
  %1684 = vrot.lane.b32.xlu0 %v1510, 9
  %v1685 = vpop.permute.xlu0 %1684
  %1686 = vrot.lane.b32.xlu0 %v1513, 9
  %v1687 = vpop.permute.xlu0 %1686
  %1688 = vrot.lane.b32.xlu0 %v1518, 9
  %v1689 = vpop.permute.xlu0 %1688
  %1690 = vrot.lane.b32.xlu0 %v1521, 9
  %v1691 = vpop.permute.xlu0 %1690
  %1692 = vrot.lane.b32.xlu0 %v1526, 9
  %v1693 = vpop.permute.xlu0 %1692
  %1694 = vrot.lane.b32.xlu0 %v1529, 9
  %v1695 = vpop.permute.xlu0 %1694
  %1696 = vrot.lane.b32.xlu0 %v1534, 9
  %v1697 = vpop.permute.xlu0 %1696
  %1698 = vrot.lane.b32.xlu0 %v1537, 9
  %v1699 = vpop.permute.xlu0 %1698
  %v1716 = vadd.f32 %v1636, %v1669
  %v1717 = vadd.f32 %v1637, %v1671
  %v1718 = vadd.f32 %v1638, %v1673
  %v1719 = vadd.f32 %v1639, %v1675
  %v1720 = vadd.f32 %v1640, %v1677
  %v1721 = vadd.f32 %v1641, %v1679
  %v1722 = vadd.f32 %v1642, %v1681
  %v1723 = vadd.f32 %v1643, %v1683
  %v1724 = vadd.f32 %v1644, %v1685
  %v1725 = vadd.f32 %v1645, %v1687
  %v1726 = vadd.f32 %v1646, %v1689
  %v1727 = vadd.f32 %v1647, %v1691
  %v1728 = vadd.f32 %v1648, %v1693
  %v1729 = vadd.f32 %v1649, %v1695
  %v1730 = vadd.f32 %v1650, %v1697
  %v1731 = vadd.f32 %v1651, %v1699
  %vm1732 = vcmask 146504
  %1733 = vst.msk [vmem:[#allocation3] sm:$0xff] %vm1732, %v1716
  %1734 = vst.msk [vmem:[#allocation3 + $0x8] sm:$0xff] %vm1732, %v1717
  %1735 = vst.msk [vmem:[#allocation3 + $0x10] sm:$0xff] %vm1732, %v1718
  %1736 = vst.msk [vmem:[#allocation3 + $0x18] sm:$0xff] %vm1732, %v1719
  %1737 = vst.msk [vmem:[#allocation3 + $0x20] sm:$0xff] %vm1732, %v1720
  %1738 = vst.msk [vmem:[#allocation3 + $0x28] sm:$0xff] %vm1732, %v1721
  %1739 = vst.msk [vmem:[#allocation3 + $0x30] sm:$0xff] %vm1732, %v1722
  %1740 = vst.msk [vmem:[#allocation3 + $0x38] sm:$0xff] %vm1732, %v1723
  %1741 = vst.msk [vmem:[#allocation3 + $0x40] sm:$0xff] %vm1732, %v1724
  %1742 = vst.msk [vmem:[#allocation3 + $0x48] sm:$0xff] %vm1732, %v1725
  %1743 = vst.msk [vmem:[#allocation3 + $0x50] sm:$0xff] %vm1732, %v1726
  %1744 = vst.msk [vmem:[#allocation3 + $0x58] sm:$0xff] %vm1732, %v1727
  %1745 = vst.msk [vmem:[#allocation3 + $0x60] sm:$0xff] %vm1732, %v1728
  %1746 = vst.msk [vmem:[#allocation3 + $0x68] sm:$0xff] %vm1732, %v1729
  %1747 = vst.msk [vmem:[#allocation3 + $0x70] sm:$0xff] %vm1732, %v1730
  %1748 = vst.msk [vmem:[#allocation3 + $0x78] sm:$0xff] %vm1732, %v1731
  %vm1749 = vcmask 15368
  %1750 = vst.msk [vmem:[#allocation2] sm:$0xff] %vm1749, %v1163
  %1751 = vst.msk [vmem:[#allocation2 + $0x8] sm:$0xff] %vm1749, %v1164
  %1752 = vst.msk [vmem:[#allocation2 + $0x10] sm:$0xff] %vm1749, %v1165
  %1753 = vst.msk [vmem:[#allocation2 + $0x18] sm:$0xff] %vm1749, %v1166
  %1754 = vst.msk [vmem:[#allocation2 + $0x20] sm:$0xff] %vm1749, %v1167
  %1755 = vst.msk [vmem:[#allocation2 + $0x28] sm:$0xff] %vm1749, %v1168
  %1756 = vst.msk [vmem:[#allocation2 + $0x30] sm:$0xff] %vm1749, %v1169
  %1757 = vst.msk [vmem:[#allocation2 + $0x38] sm:$0xff] %vm1749, %v1170
  %1758 = vst.msk [vmem:[#allocation2 + $0x40] sm:$0xff] %vm1749, %v1171
  %1759 = vst.msk [vmem:[#allocation2 + $0x48] sm:$0xff] %vm1749, %v1172
  %1760 = vst.msk [vmem:[#allocation2 + $0x50] sm:$0xff] %vm1749, %v1173
  %1761 = vst.msk [vmem:[#allocation2 + $0x58] sm:$0xff] %vm1749, %v1174
  %1762 = vst.msk [vmem:[#allocation2 + $0x60] sm:$0xff] %vm1749, %v1175
  %1763 = vst.msk [vmem:[#allocation2 + $0x68] sm:$0xff] %vm1749, %v1176
  %1764 = vst.msk [vmem:[#allocation2 + $0x70] sm:$0xff] %vm1749, %v1177
  %1765 = vst.msk [vmem:[#allocation2 + $0x78] sm:$0xff] %vm1749, %v1178
  %v1766 = vld [vmem:[%s0] sm:$0xff]
  %v1767 = vld [vmem:[%s0 + $0x8] sm:$0xff]
  %v1768 = vld [vmem:[%s0 + $0x10] sm:$0xff]
  %v1769 = vld [vmem:[%s0 + $0x18] sm:$0xff]
  %v1770 = vld [vmem:[%s0 + $0x20] sm:$0xff]
  %v1771 = vld [vmem:[%s0 + $0x28] sm:$0xff]
  %v1772 = vld [vmem:[%s0 + $0x30] sm:$0xff]
  %v1773 = vld [vmem:[%s0 + $0x38] sm:$0xff]
  %v1774 = vld [vmem:[%s0 + $0x40] sm:$0xff]
  %v1775 = vld [vmem:[%s0 + $0x48] sm:$0xff]
  %v1776 = vld [vmem:[%s0 + $0x50] sm:$0xff]
  %v1777 = vld [vmem:[%s0 + $0x58] sm:$0xff]
  %v1778 = vld [vmem:[%s0 + $0x60] sm:$0xff]
  %v1779 = vld [vmem:[%s0 + $0x68] sm:$0xff]
  %v1780 = vld [vmem:[%s0 + $0x70] sm:$0xff]
  %v1781 = vld [vmem:[%s0 + $0x78] sm:$0xff]
  %v1782 = vld [vmem:[%s1 + $0x2] sm:$0x1]
  %1784 = vset.pattern.permute.xlu0 2
  %1785 = vperm.xlu0 %1784, %v1766
  %v1786 = vpop.permute.xlu0 %1785
  %1789 = vset.pattern.permute.xlu0 2
  %1790 = vperm.xlu0 %1789, %v1767
  %v1791 = vpop.permute.xlu0 %1790
  %1794 = vset.pattern.permute.xlu0 2
  %1795 = vperm.xlu0 %1794, %v1768
  %v1796 = vpop.permute.xlu0 %1795
  %1799 = vset.pattern.permute.xlu0 2
  %1800 = vperm.xlu0 %1799, %v1769
  %v1801 = vpop.permute.xlu0 %1800
  %1804 = vset.pattern.permute.xlu0 2
  %1805 = vperm.xlu0 %1804, %v1770
  %v1806 = vpop.permute.xlu0 %1805
  %1809 = vset.pattern.permute.xlu0 2
  %1810 = vperm.xlu0 %1809, %v1771
  %v1811 = vpop.permute.xlu0 %1810
  %1814 = vset.pattern.permute.xlu0 2
  %1815 = vperm.xlu0 %1814, %v1772
  %v1816 = vpop.permute.xlu0 %1815
  %1819 = vset.pattern.permute.xlu0 2
  %1820 = vperm.xlu0 %1819, %v1773
  %v1821 = vpop.permute.xlu0 %1820
  %1824 = vset.pattern.permute.xlu0 2
  %1825 = vperm.xlu0 %1824, %v1774
  %v1826 = vpop.permute.xlu0 %1825
  %1829 = vset.pattern.permute.xlu0 2
  %1830 = vperm.xlu0 %1829, %v1775
  %v1831 = vpop.permute.xlu0 %1830
  %1834 = vset.pattern.permute.xlu0 2
  %1835 = vperm.xlu0 %1834, %v1776
  %v1836 = vpop.permute.xlu0 %1835
  %1839 = vset.pattern.permute.xlu0 2
  %1840 = vperm.xlu0 %1839, %v1777
  %v1841 = vpop.permute.xlu0 %1840
  %1844 = vset.pattern.permute.xlu0 2
  %1845 = vperm.xlu0 %1844, %v1778
  %v1846 = vpop.permute.xlu0 %1845
  %1849 = vset.pattern.permute.xlu0 2
  %1850 = vperm.xlu0 %1849, %v1779
  %v1851 = vpop.permute.xlu0 %1850
  %1854 = vset.pattern.permute.xlu0 2
  %1855 = vperm.xlu0 %1854, %v1780
  %v1856 = vpop.permute.xlu0 %1855
  %1859 = vset.pattern.permute.xlu0 2
  %1860 = vperm.xlu0 %1859, %v1781
  %v1861 = vpop.permute.xlu0 %1860
  %v1863 = vlaneseq
  %v1864 = vshrl.u32 %v1863, 7
  %v1865 = vsub.s32 0, %v1864
  %v1866 = vrot.slane %v1782, %v1865
  %v1867 = vadd.f32 %v1786, %v1866
  %v1868 = vadd.f32 %v1791, %v1866
  %v1869 = vadd.f32 %v1796, %v1866
  %v1870 = vadd.f32 %v1801, %v1866
  %v1871 = vadd.f32 %v1806, %v1866
  %v1872 = vadd.f32 %v1811, %v1866
  %v1873 = vadd.f32 %v1816, %v1866
  %v1874 = vadd.f32 %v1821, %v1866
  %v1875 = vadd.f32 %v1826, %v1866
  %v1876 = vadd.f32 %v1831, %v1866
  %v1877 = vadd.f32 %v1836, %v1866
  %v1878 = vadd.f32 %v1841, %v1866
  %v1879 = vadd.f32 %v1846, %v1866
  %v1880 = vadd.f32 %v1851, %v1866
  %v1881 = vadd.f32 %v1856, %v1866
  %v1882 = vadd.f32 %v1861, %v1866
  %vm1883 = vcmp.ge.f32.partialorder %v1867, 0.0
  %vm1884 = vcmp.ge.f32.partialorder %v1868, 0.0
  %vm1885 = vcmp.ge.f32.partialorder %v1869, 0.0
  %vm1886 = vcmp.ge.f32.partialorder %v1870, 0.0
  %vm1887 = vcmp.ge.f32.partialorder %v1871, 0.0
  %vm1888 = vcmp.ge.f32.partialorder %v1872, 0.0
  %vm1889 = vcmp.ge.f32.partialorder %v1873, 0.0
  %vm1890 = vcmp.ge.f32.partialorder %v1874, 0.0
  %vm1891 = vcmp.ge.f32.partialorder %v1875, 0.0
  %vm1892 = vcmp.ge.f32.partialorder %v1876, 0.0
  %vm1893 = vcmp.ge.f32.partialorder %v1877, 0.0
  %vm1894 = vcmp.ge.f32.partialorder %v1878, 0.0
  %vm1895 = vcmp.ge.f32.partialorder %v1879, 0.0
  %vm1896 = vcmp.ge.f32.partialorder %v1880, 0.0
  %vm1897 = vcmp.ge.f32.partialorder %v1881, 0.0
  %vm1898 = vcmp.ge.f32.partialorder %v1882, 0.0
  %v1899 = vmul.f32 %v1867, 0.2
  %v1900 = vmul.f32 %v1868, 0.2
  %v1901 = vmul.f32 %v1869, 0.2
  %v1902 = vmul.f32 %v1870, 0.2
  %v1903 = vmul.f32 %v1871, 0.2
  %v1904 = vmul.f32 %v1872, 0.2
  %v1905 = vmul.f32 %v1873, 0.2
  %v1906 = vmul.f32 %v1874, 0.2
  %v1907 = vmul.f32 %v1875, 0.2
  %v1908 = vmul.f32 %v1876, 0.2
  %v1909 = vmul.f32 %v1877, 0.2
  %v1910 = vmul.f32 %v1878, 0.2
  %v1911 = vmul.f32 %v1879, 0.2
  %v1912 = vmul.f32 %v1880, 0.2
  %v1913 = vmul.f32 %v1881, 0.2
  %v1914 = vmul.f32 %v1882, 0.2
  %v1915 = vsel %vm1883, %v1867, %v1899
  %v1916 = vsel %vm1884, %v1868, %v1900
  %v1917 = vsel %vm1885, %v1869, %v1901
  %v1918 = vsel %vm1886, %v1870, %v1902
  %v1919 = vsel %vm1887, %v1871, %v1903
  %v1920 = vsel %vm1888, %v1872, %v1904
  %v1921 = vsel %vm1889, %v1873, %v1905
  %v1922 = vsel %vm1890, %v1874, %v1906
  %v1923 = vsel %vm1891, %v1875, %v1907
  %v1924 = vsel %vm1892, %v1876, %v1908
  %v1925 = vsel %vm1893, %v1877, %v1909
  %v1926 = vsel %vm1894, %v1878, %v1910
  %v1927 = vsel %vm1895, %v1879, %v1911
  %v1928 = vsel %vm1896, %v1880, %v1912
  %v1929 = vsel %vm1897, %v1881, %v1913
  %v1930 = vsel %vm1898, %v1882, %v1914
  %v1931 = vsel %vm331, %v1915, -1e+30
  %v1932 = vsel %vm332, %v1916, -1e+30
  %v1933 = vsel %vm333, %v1917, -1e+30
  %v1934 = vsel %vm334, %v1918, -1e+30
  %v1935 = vsel %vm335, %v1919, -1e+30
  %v1936 = vsel %vm336, %v1920, -1e+30
  %v1937 = vsel %vm337, %v1921, -1e+30
  %v1938 = vsel %vm338, %v1922, -1e+30
  %v1939 = vsel %vm339, %v1923, -1e+30
  %v1940 = vsel %vm340, %v1924, -1e+30
  %v1941 = vsel %vm341, %v1925, -1e+30
  %v1942 = vsel %vm342, %v1926, -1e+30
  %v1943 = vsel %vm343, %v1927, -1e+30
  %v1944 = vsel %vm344, %v1928, -1e+30
  %v1945 = vsel %vm345, %v1929, -1e+30
  %v1946 = vsel %vm346, %v1930, -1e+30
  %v1947 = vld [vmem:[#allocation2] sm:$0xff]
  %v1948 = vld [vmem:[#allocation2 + $0x8] sm:$0xff]
  %v1949 = vld [vmem:[#allocation2 + $0x10] sm:$0xff]
  %v1950 = vld [vmem:[#allocation2 + $0x18] sm:$0xff]
  %v1951 = vld [vmem:[#allocation2 + $0x20] sm:$0xff]
  %v1952 = vld [vmem:[#allocation2 + $0x28] sm:$0xff]
  %v1953 = vld [vmem:[#allocation2 + $0x30] sm:$0xff]
  %v1954 = vld [vmem:[#allocation2 + $0x38] sm:$0xff]
  %v1955 = vld [vmem:[#allocation2 + $0x40] sm:$0xff]
  %v1956 = vld [vmem:[#allocation2 + $0x48] sm:$0xff]
  %v1957 = vld [vmem:[#allocation2 + $0x50] sm:$0xff]
  %v1958 = vld [vmem:[#allocation2 + $0x58] sm:$0xff]
  %v1959 = vld [vmem:[#allocation2 + $0x60] sm:$0xff]
  %v1960 = vld [vmem:[#allocation2 + $0x68] sm:$0xff]
  %v1961 = vld [vmem:[#allocation2 + $0x70] sm:$0xff]
  %v1962 = vld [vmem:[#allocation2 + $0x78] sm:$0xff]
  %1963 = vmax.xlane.f32.xlu0 %v1931
  %v1964 = vpop.xlane.xlu0 %1963
  %1965 = vmax.xlane.f32.xlu0 %v1932
  %v1966 = vpop.xlane.xlu0 %1965
  %1967 = vmax.xlane.f32.xlu0 %v1933
  %v1968 = vpop.xlane.xlu0 %1967
  %1969 = vmax.xlane.f32.xlu0 %v1934
  %v1970 = vpop.xlane.xlu0 %1969
  %1971 = vmax.xlane.f32.xlu0 %v1935
  %v1972 = vpop.xlane.xlu0 %1971
  %1973 = vmax.xlane.f32.xlu0 %v1936
  %v1974 = vpop.xlane.xlu0 %1973
  %1975 = vmax.xlane.f32.xlu0 %v1937
  %v1976 = vpop.xlane.xlu0 %1975
  %1977 = vmax.xlane.f32.xlu0 %v1938
  %v1978 = vpop.xlane.xlu0 %1977
  %1979 = vmax.xlane.f32.xlu0 %v1939
  %v1980 = vpop.xlane.xlu0 %1979
  %1981 = vmax.xlane.f32.xlu0 %v1940
  %v1982 = vpop.xlane.xlu0 %1981
  %1983 = vmax.xlane.f32.xlu0 %v1941
  %v1984 = vpop.xlane.xlu0 %1983
  %1985 = vmax.xlane.f32.xlu0 %v1942
  %v1986 = vpop.xlane.xlu0 %1985
  %1987 = vmax.xlane.f32.xlu0 %v1943
  %v1988 = vpop.xlane.xlu0 %1987
  %1989 = vmax.xlane.f32.xlu0 %v1944
  %v1990 = vpop.xlane.xlu0 %1989
  %1991 = vmax.xlane.f32.xlu0 %v1945
  %v1992 = vpop.xlane.xlu0 %1991
  %1993 = vmax.xlane.f32.xlu0 %v1946
  %v1994 = vpop.xlane.xlu0 %1993
  %v1995 = vmax.f32 %v1947, %v1964
  %v1996 = vmax.f32 %v1948, %v1966
  %v1997 = vmax.f32 %v1949, %v1968
  %v1998 = vmax.f32 %v1950, %v1970
  %v1999 = vmax.f32 %v1951, %v1972
  %v2000 = vmax.f32 %v1952, %v1974
  %v2001 = vmax.f32 %v1953, %v1976
  %v2002 = vmax.f32 %v1954, %v1978
  %v2003 = vmax.f32 %v1955, %v1980
  %v2004 = vmax.f32 %v1956, %v1982
  %v2005 = vmax.f32 %v1957, %v1984
  %v2006 = vmax.f32 %v1958, %v1986
  %v2007 = vmax.f32 %v1959, %v1988
  %v2008 = vmax.f32 %v1960, %v1990
  %v2009 = vmax.f32 %v1961, %v1992
  %v2010 = vmax.f32 %v1962, %v1994
  %v2011 = vsub.f32 %v1947, %v1995
  %v2012 = vsub.f32 %v1948, %v1996
  %v2013 = vsub.f32 %v1949, %v1997
  %v2014 = vsub.f32 %v1950, %v1998
  %v2015 = vsub.f32 %v1951, %v1999
  %v2016 = vsub.f32 %v1952, %v2000
  %v2017 = vsub.f32 %v1953, %v2001
  %v2018 = vsub.f32 %v1954, %v2002
  %v2019 = vsub.f32 %v1955, %v2003
  %v2020 = vsub.f32 %v1956, %v2004
  %v2021 = vsub.f32 %v1957, %v2005
  %v2022 = vsub.f32 %v1958, %v2006
  %v2023 = vsub.f32 %v1959, %v2007
  %v2024 = vsub.f32 %v1960, %v2008
  %v2025 = vsub.f32 %v1961, %v2009
  %v2026 = vsub.f32 %v1962, %v2010
  %v2027 = vmul.f32 %v2011, 1.442695
  %v2028 = vpow.pop %v2027
  %v2029 = vmul.f32 %v2012, 1.442695
  %v2030 = vpow.pop %v2029
  %v2031 = vmul.f32 %v2013, 1.442695
  %v2032 = vpow.pop %v2031
  %v2033 = vmul.f32 %v2014, 1.442695
  %v2034 = vpow.pop %v2033
  %v2035 = vmul.f32 %v2015, 1.442695
  %v2036 = vpow.pop %v2035
  %v2037 = vmul.f32 %v2016, 1.442695
  %v2038 = vpow.pop %v2037
  %v2039 = vmul.f32 %v2017, 1.442695
  %v2040 = vpow.pop %v2039
  %v2041 = vmul.f32 %v2018, 1.442695
  %v2042 = vpow.pop %v2041
  %v2043 = vmul.f32 %v2019, 1.442695
  %v2044 = vpow.pop %v2043
  %v2045 = vmul.f32 %v2020, 1.442695
  %v2046 = vpow.pop %v2045
  %v2047 = vmul.f32 %v2021, 1.442695
  %v2048 = vpow.pop %v2047
  %v2049 = vmul.f32 %v2022, 1.442695
  %v2050 = vpow.pop %v2049
  %v2051 = vmul.f32 %v2023, 1.442695
  %v2052 = vpow.pop %v2051
  %v2053 = vmul.f32 %v2024, 1.442695
  %v2054 = vpow.pop %v2053
  %v2055 = vmul.f32 %v2025, 1.442695
  %v2056 = vpow.pop %v2055
  %v2057 = vmul.f32 %v2026, 1.442695
  %v2058 = vpow.pop %v2057
  %2060 = vset.pattern.permute.xlu0 2
  %2061 = vperm.xlu0 %2060, %v1995
  %v2062 = vpop.permute.xlu0 %2061
  %2065 = vset.pattern.permute.xlu0 2
  %2066 = vperm.xlu0 %2065, %v1996
  %v2067 = vpop.permute.xlu0 %2066
  %2070 = vset.pattern.permute.xlu0 2
  %2071 = vperm.xlu0 %2070, %v1997
  %v2072 = vpop.permute.xlu0 %2071
  %2075 = vset.pattern.permute.xlu0 2
  %2076 = vperm.xlu0 %2075, %v1998
  %v2077 = vpop.permute.xlu0 %2076
  %2080 = vset.pattern.permute.xlu0 2
  %2081 = vperm.xlu0 %2080, %v1999
  %v2082 = vpop.permute.xlu0 %2081
  %2085 = vset.pattern.permute.xlu0 2
  %2086 = vperm.xlu0 %2085, %v2000
  %v2087 = vpop.permute.xlu0 %2086
  %2090 = vset.pattern.permute.xlu0 2
  %2091 = vperm.xlu0 %2090, %v2001
  %v2092 = vpop.permute.xlu0 %2091
  %2095 = vset.pattern.permute.xlu0 2
  %2096 = vperm.xlu0 %2095, %v2002
  %v2097 = vpop.permute.xlu0 %2096
  %2100 = vset.pattern.permute.xlu0 2
  %2101 = vperm.xlu0 %2100, %v2003
  %v2102 = vpop.permute.xlu0 %2101
  %2105 = vset.pattern.permute.xlu0 2
  %2106 = vperm.xlu0 %2105, %v2004
  %v2107 = vpop.permute.xlu0 %2106
  %2110 = vset.pattern.permute.xlu0 2
  %2111 = vperm.xlu0 %2110, %v2005
  %v2112 = vpop.permute.xlu0 %2111
  %2115 = vset.pattern.permute.xlu0 2
  %2116 = vperm.xlu0 %2115, %v2006
  %v2117 = vpop.permute.xlu0 %2116
  %2120 = vset.pattern.permute.xlu0 2
  %2121 = vperm.xlu0 %2120, %v2007
  %v2122 = vpop.permute.xlu0 %2121
  %2125 = vset.pattern.permute.xlu0 2
  %2126 = vperm.xlu0 %2125, %v2008
  %v2127 = vpop.permute.xlu0 %2126
  %2130 = vset.pattern.permute.xlu0 2
  %2131 = vperm.xlu0 %2130, %v2009
  %v2132 = vpop.permute.xlu0 %2131
  %2135 = vset.pattern.permute.xlu0 2
  %2136 = vperm.xlu0 %2135, %v2010
  %v2137 = vpop.permute.xlu0 %2136
  %v2139 = vsub.f32 %v1931, %v2062
  %v2140 = vsub.f32 %v1932, %v2067
  %v2141 = vsub.f32 %v1933, %v2072
  %v2142 = vsub.f32 %v1934, %v2077
  %v2143 = vsub.f32 %v1935, %v2082
  %v2144 = vsub.f32 %v1936, %v2087
  %v2145 = vsub.f32 %v1937, %v2092
  %v2146 = vsub.f32 %v1938, %v2097
  %v2147 = vsub.f32 %v1939, %v2102
  %v2148 = vsub.f32 %v1940, %v2107
  %v2149 = vsub.f32 %v1941, %v2112
  %v2150 = vsub.f32 %v1942, %v2117
  %v2151 = vsub.f32 %v1943, %v2122
  %v2152 = vsub.f32 %v1944, %v2127
  %v2153 = vsub.f32 %v1945, %v2132
  %v2154 = vsub.f32 %v1946, %v2137
  %v2155 = vmul.f32 %v2139, 1.442695
  %v2156 = vpow.pop %v2155
  %v2157 = vmul.f32 %v2140, 1.442695
  %v2158 = vpow.pop %v2157
  %v2159 = vmul.f32 %v2141, 1.442695
  %v2160 = vpow.pop %v2159
  %v2161 = vmul.f32 %v2142, 1.442695
  %v2162 = vpow.pop %v2161
  %v2163 = vmul.f32 %v2143, 1.442695
  %v2164 = vpow.pop %v2163
  %v2165 = vmul.f32 %v2144, 1.442695
  %v2166 = vpow.pop %v2165
  %v2167 = vmul.f32 %v2145, 1.442695
  %v2168 = vpow.pop %v2167
  %v2169 = vmul.f32 %v2146, 1.442695
  %v2170 = vpow.pop %v2169
  %v2171 = vmul.f32 %v2147, 1.442695
  %v2172 = vpow.pop %v2171
  %v2173 = vmul.f32 %v2148, 1.442695
  %v2174 = vpow.pop %v2173
  %v2175 = vmul.f32 %v2149, 1.442695
  %v2176 = vpow.pop %v2175
  %v2177 = vmul.f32 %v2150, 1.442695
  %v2178 = vpow.pop %v2177
  %v2179 = vmul.f32 %v2151, 1.442695
  %v2180 = vpow.pop %v2179
  %v2181 = vmul.f32 %v2152, 1.442695
  %v2182 = vpow.pop %v2181
  %v2183 = vmul.f32 %v2153, 1.442695
  %v2184 = vpow.pop %v2183
  %v2185 = vmul.f32 %v2154, 1.442695
  %v2186 = vpow.pop %v2185
  %v2187 = vld [vmem:[%s3] sm:$0xf]
  %v2188 = vld [vmem:[%s3 + $0x4] sm:$0xf]
  %v2189 = vld [vmem:[%s3 + $0x8] sm:$0xf]
  %v2190 = vld [vmem:[%s3 + $0xc] sm:$0xf]
  %v2191 = vld [vmem:[%s3 + $0x10] sm:$0xf]
  %v2192 = vld [vmem:[%s3 + $0x14] sm:$0xf]
  %v2193 = vld [vmem:[%s3 + $0x18] sm:$0xf]
  %v2194 = vld [vmem:[%s3 + $0x1c] sm:$0xf]
  %v2195 = vld [vmem:[%s3 + $0x20] sm:$0xf]
  %v2196 = vld [vmem:[%s3 + $0x24] sm:$0xf]
  %v2197 = vld [vmem:[%s3 + $0x28] sm:$0xf]
  %v2198 = vld [vmem:[%s3 + $0x2c] sm:$0xf]
  %v2199 = vld [vmem:[%s3 + $0x30] sm:$0xf]
  %v2200 = vld [vmem:[%s3 + $0x34] sm:$0xf]
  %v2201 = vld [vmem:[%s3 + $0x38] sm:$0xf]
  %v2202 = vld [vmem:[%s3 + $0x3c] sm:$0xf]
  %v2203 = vpack.c.bf16 %v2158, %v2156
  %v2204 = vpack.c.bf16 %v2162, %v2160
  %v2205 = vpack.c.bf16 %v2166, %v2164
  %v2206 = vpack.c.bf16 %v2170, %v2168
  %v2207 = vpack.c.bf16 %v2174, %v2172
  %v2208 = vpack.c.bf16 %v2178, %v2176
  %v2209 = vpack.c.bf16 %v2182, %v2180
  %v2210 = vpack.c.bf16 %v2186, %v2184
  %v2227 = vunpack.c.l.b16 %v2187
  %v2228 = vunpack.c.l.b16 %v2188
  %v2229 = vunpack.c.l.b16 %v2189
  %v2230 = vunpack.c.l.b16 %v2190
  %v2231 = vunpack.c.l.b16 %v2191
  %v2232 = vunpack.c.l.b16 %v2192
  %v2233 = vunpack.c.l.b16 %v2193
  %v2234 = vunpack.c.l.b16 %v2194
  %v2235 = vunpack.c.l.b16 %v2195
  %v2236 = vunpack.c.l.b16 %v2196
  %v2237 = vunpack.c.l.b16 %v2197
  %v2238 = vunpack.c.l.b16 %v2198
  %v2239 = vunpack.c.l.b16 %v2199
  %v2240 = vunpack.c.l.b16 %v2200
  %v2241 = vunpack.c.l.b16 %v2201
  %v2242 = vunpack.c.l.b16 %v2202
  %v2243 = vpack.c.b16 %v2228, %v2227
  %v2244 = vpack.c.b16 %v2230, %v2229
  %v2245 = vpack.c.b16 %v2232, %v2231
  %v2246 = vpack.c.b16 %v2234, %v2233
  %v2247 = vpack.c.b16 %v2236, %v2235
  %v2248 = vpack.c.b16 %v2238, %v2237
  %v2249 = vpack.c.b16 %v2240, %v2239
  %v2250 = vpack.c.b16 %v2242, %v2241
  %2251 = vrot.lane.b32.xlu0 %v2243, 110
  %v2252 = vpop.permute.xlu0 %2251
  %2253 = vrot.lane.b32.xlu0 %v2244, 110
  %v2254 = vpop.permute.xlu0 %2253
  %2255 = vrot.lane.b32.xlu0 %v2245, 110
  %v2256 = vpop.permute.xlu0 %2255
  %2257 = vrot.lane.b32.xlu0 %v2246, 110
  %v2258 = vpop.permute.xlu0 %2257
  %2259 = vrot.lane.b32.xlu0 %v2247, 110
  %v2260 = vpop.permute.xlu0 %2259
  %2261 = vrot.lane.b32.xlu0 %v2248, 110
  %v2262 = vpop.permute.xlu0 %2261
  %2263 = vrot.lane.b32.xlu0 %v2249, 110
  %v2264 = vpop.permute.xlu0 %2263
  %2265 = vrot.lane.b32.xlu0 %v2250, 110
  %v2266 = vpop.permute.xlu0 %2265
  %2275 = vmatprep.subr.bf16.mxu0 0
  %2276 = vmatpush1.bf16.msra.mxu0 %v2252
  %2277 = vmatprep.subr.bf16.mxu0 0
  %2278 = vmatpush1.bf16.msra.mxu0 %v2254
  %2279 = vmatprep.subr.bf16.mxu0 0
  %2280 = vmatpush1.bf16.msra.mxu0 %v2256
  %2281 = vmatprep.subr.bf16.mxu0 0
  %2282 = vmatpush1.bf16.msra.mxu0 %v2258
  %2283 = vmatprep.subr.bf16.mxu0 0
  %2284 = vmatpush1.bf16.msra.mxu0 %v2260
  %2285 = vmatprep.subr.bf16.mxu0 0
  %2286 = vmatpush1.bf16.msra.mxu0 %v2262
  %2287 = vmatprep.subr.bf16.mxu0 0
  %2288 = vmatpush1.bf16.msra.mxu0 %v2264
  %2289 = vmatprep.subr.bf16.mxu0 0
  %2290 = vmatpush1.bf16.msra.mxu0 %v2266
  %2291 = vmatprep.subr.bf16.mxu0 0
  %2292 = vmatpush1.bf16.msra.mxu0 0
  %2293 = vmatprep.subr.bf16.mxu0 0
  %2294 = vmatpush1.bf16.msra.mxu0 0
  %2295 = vmatprep.subr.bf16.mxu0 0
  %2296 = vmatpush1.bf16.msra.mxu0 0
  %2297 = vmatprep.subr.bf16.mxu0 0
  %2298 = vmatpush1.bf16.msra.mxu0 0
  %2299 = vmatprep.subr.bf16.mxu0 0
  %2300 = vmatpush1.bf16.msra.mxu0 0
  %2301 = vmatprep.subr.bf16.mxu0 0
  %2302 = vmatpush1.bf16.msra.mxu0 0
  %2303 = vmatprep.subr.bf16.mxu0 0
  %2304 = vmatpush1.bf16.msra.mxu0 0
  %2305 = vmatprep.subr.bf16.mxu0 0
  %2306 = vmatpush1.bf16.msra.mxu0 0
  %2307 = vmatprep.mubr.bf16.mxu0 0
  %2308 = vmatmul.mubr.bf16.gmra.mrb[0].mxu0 %v2203
  %v2309 = vpop.f32.mrb[0].mxu0
  %v2310 = vadd.f32 0.0, %v2309
  %v2311 = vpop.f32.mrb[0].mxu0
  %v2312 = vpop.f32.mrb[0].mxu0
  %v2313 = vadd.f32 0.0, %v2312
  %v2314 = vpop.f32.mrb[0].mxu0
  %2315 = vmatprep.mubr.bf16.mxu0 0
  %2316 = vmatmul.mubr.bf16.gmra.mrb[0].mxu0 %v2204
  %v2317 = vpop.f32.mrb[0].mxu0
  %v2318 = vadd.f32 0.0, %v2317
  %v2319 = vpop.f32.mrb[0].mxu0
  %v2320 = vpop.f32.mrb[0].mxu0
  %v2321 = vadd.f32 0.0, %v2320
  %v2322 = vpop.f32.mrb[0].mxu0
  %2323 = vmatprep.mubr.bf16.mxu0 0
  %2324 = vmatmul.mubr.bf16.gmra.mrb[0].mxu0 %v2205
  %v2325 = vpop.f32.mrb[0].mxu0
  %v2326 = vadd.f32 0.0, %v2325
  %v2327 = vpop.f32.mrb[0].mxu0
  %v2328 = vpop.f32.mrb[0].mxu0
  %v2329 = vadd.f32 0.0, %v2328
  %v2330 = vpop.f32.mrb[0].mxu0
  %2331 = vmatprep.mubr.bf16.mxu0 0
  %2332 = vmatmul.mubr.bf16.gmra.mrb[0].mxu0 %v2206
  %v2333 = vpop.f32.mrb[0].mxu0
  %v2334 = vadd.f32 0.0, %v2333
  %v2335 = vpop.f32.mrb[0].mxu0
  %v2336 = vpop.f32.mrb[0].mxu0
  %v2337 = vadd.f32 0.0, %v2336
  %v2338 = vpop.f32.mrb[0].mxu0
  %2339 = vmatprep.mubr.bf16.mxu0 0
  %2340 = vmatmul.mubr.bf16.gmra.mrb[0].mxu0 %v2207
  %v2341 = vpop.f32.mrb[0].mxu0
  %v2342 = vadd.f32 0.0, %v2341
  %v2343 = vpop.f32.mrb[0].mxu0
  %v2344 = vpop.f32.mrb[0].mxu0
  %v2345 = vadd.f32 0.0, %v2344
  %v2346 = vpop.f32.mrb[0].mxu0
  %2347 = vmatprep.mubr.bf16.mxu0 0
  %2348 = vmatmul.mubr.bf16.gmra.mrb[0].mxu0 %v2208
  %v2349 = vpop.f32.mrb[0].mxu0
  %v2350 = vadd.f32 0.0, %v2349
  %v2351 = vpop.f32.mrb[0].mxu0
  %v2352 = vpop.f32.mrb[0].mxu0
  %v2353 = vadd.f32 0.0, %v2352
  %v2354 = vpop.f32.mrb[0].mxu0
  %2355 = vmatprep.mubr.bf16.mxu0 0
  %2356 = vmatmul.mubr.bf16.gmra.mrb[0].mxu0 %v2209
  %v2357 = vpop.f32.mrb[0].mxu0
  %v2358 = vadd.f32 0.0, %v2357
  %v2359 = vpop.f32.mrb[0].mxu0
  %v2360 = vpop.f32.mrb[0].mxu0
  %v2361 = vadd.f32 0.0, %v2360
  %v2362 = vpop.f32.mrb[0].mxu0
  %2363 = vmatprep.mubr.bf16.mxu0 0
  %2364 = vmatmul.mubr.bf16.gmra.mrb[0].mxu0 %v2210
  %v2365 = vpop.f32.mrb[0].mxu0
  %v2366 = vadd.f32 0.0, %v2365
  %v2367 = vpop.f32.mrb[0].mxu0
  %v2368 = vpop.f32.mrb[0].mxu0
  %v2369 = vadd.f32 0.0, %v2368
  %v2370 = vpop.f32.mrb[0].mxu0
  %2371 = vdwg.mxu0
  %v2372 = vld [vmem:[#allocation3] sm:$0xff]
  %v2373 = vld [vmem:[#allocation3 + $0x8] sm:$0xff]
  %v2374 = vld [vmem:[#allocation3 + $0x10] sm:$0xff]
  %v2375 = vld [vmem:[#allocation3 + $0x18] sm:$0xff]
  %v2376 = vld [vmem:[#allocation3 + $0x20] sm:$0xff]
  %v2377 = vld [vmem:[#allocation3 + $0x28] sm:$0xff]
  %v2378 = vld [vmem:[#allocation3 + $0x30] sm:$0xff]
  %v2379 = vld [vmem:[#allocation3 + $0x38] sm:$0xff]
  %v2380 = vld [vmem:[#allocation3 + $0x40] sm:$0xff]
  %v2381 = vld [vmem:[#allocation3 + $0x48] sm:$0xff]
  %v2382 = vld [vmem:[#allocation3 + $0x50] sm:$0xff]
  %v2383 = vld [vmem:[#allocation3 + $0x58] sm:$0xff]
  %v2384 = vld [vmem:[#allocation3 + $0x60] sm:$0xff]
  %v2385 = vld [vmem:[#allocation3 + $0x68] sm:$0xff]
  %v2386 = vld [vmem:[#allocation3 + $0x70] sm:$0xff]
  %v2387 = vld [vmem:[#allocation3 + $0x78] sm:$0xff]
  %2389 = vset.pattern.permute.xlu0 2
  %2390 = vperm.xlu0 %2389, %v2028
  %v2391 = vpop.permute.xlu0 %2390
  %2394 = vset.pattern.permute.xlu0 2
  %2395 = vperm.xlu0 %2394, %v2030
  %v2396 = vpop.permute.xlu0 %2395
  %2399 = vset.pattern.permute.xlu0 2
  %2400 = vperm.xlu0 %2399, %v2032
  %v2401 = vpop.permute.xlu0 %2400
  %2404 = vset.pattern.permute.xlu0 2
  %2405 = vperm.xlu0 %2404, %v2034
  %v2406 = vpop.permute.xlu0 %2405
  %2409 = vset.pattern.permute.xlu0 2
  %2410 = vperm.xlu0 %2409, %v2036
  %v2411 = vpop.permute.xlu0 %2410
  %2414 = vset.pattern.permute.xlu0 2
  %2415 = vperm.xlu0 %2414, %v2038
  %v2416 = vpop.permute.xlu0 %2415
  %2419 = vset.pattern.permute.xlu0 2
  %2420 = vperm.xlu0 %2419, %v2040
  %v2421 = vpop.permute.xlu0 %2420
  %2424 = vset.pattern.permute.xlu0 2
  %2425 = vperm.xlu0 %2424, %v2042
  %v2426 = vpop.permute.xlu0 %2425
  %2429 = vset.pattern.permute.xlu0 2
  %2430 = vperm.xlu0 %2429, %v2044
  %v2431 = vpop.permute.xlu0 %2430
  %2434 = vset.pattern.permute.xlu0 2
  %2435 = vperm.xlu0 %2434, %v2046
  %v2436 = vpop.permute.xlu0 %2435
  %2439 = vset.pattern.permute.xlu0 2
  %2440 = vperm.xlu0 %2439, %v2048
  %v2441 = vpop.permute.xlu0 %2440
  %2444 = vset.pattern.permute.xlu0 2
  %2445 = vperm.xlu0 %2444, %v2050
  %v2446 = vpop.permute.xlu0 %2445
  %2449 = vset.pattern.permute.xlu0 2
  %2450 = vperm.xlu0 %2449, %v2052
  %v2451 = vpop.permute.xlu0 %2450
  %2454 = vset.pattern.permute.xlu0 2
  %2455 = vperm.xlu0 %2454, %v2054
  %v2456 = vpop.permute.xlu0 %2455
  %2459 = vset.pattern.permute.xlu0 2
  %2460 = vperm.xlu0 %2459, %v2056
  %v2461 = vpop.permute.xlu0 %2460
  %2464 = vset.pattern.permute.xlu0 2
  %2465 = vperm.xlu0 %2464, %v2058
  %v2466 = vpop.permute.xlu0 %2465
  %v2468 = vmul.f32 %v2391, %v2372
  %v2469 = vmul.f32 %v2396, %v2373
  %v2470 = vmul.f32 %v2401, %v2374
  %v2471 = vmul.f32 %v2406, %v2375
  %v2472 = vmul.f32 %v2411, %v2376
  %v2473 = vmul.f32 %v2416, %v2377
  %v2474 = vmul.f32 %v2421, %v2378
  %v2475 = vmul.f32 %v2426, %v2379
  %v2476 = vmul.f32 %v2431, %v2380
  %v2477 = vmul.f32 %v2436, %v2381
  %v2478 = vmul.f32 %v2441, %v2382
  %v2479 = vmul.f32 %v2446, %v2383
  %v2480 = vmul.f32 %v2451, %v2384
  %v2481 = vmul.f32 %v2456, %v2385
  %v2482 = vmul.f32 %v2461, %v2386
  %v2483 = vmul.f32 %v2466, %v2387
  %2500 = vrot.lane.b32.xlu0 %v2310, 18
  %v2501 = vpop.permute.xlu0 %2500
  %2502 = vrot.lane.b32.xlu0 %v2313, 18
  %v2503 = vpop.permute.xlu0 %2502
  %2504 = vrot.lane.b32.xlu0 %v2318, 18
  %v2505 = vpop.permute.xlu0 %2504
  %2506 = vrot.lane.b32.xlu0 %v2321, 18
  %v2507 = vpop.permute.xlu0 %2506
  %2508 = vrot.lane.b32.xlu0 %v2326, 18
  %v2509 = vpop.permute.xlu0 %2508
  %2510 = vrot.lane.b32.xlu0 %v2329, 18
  %v2511 = vpop.permute.xlu0 %2510
  %2512 = vrot.lane.b32.xlu0 %v2334, 18
  %v2513 = vpop.permute.xlu0 %2512
  %2514 = vrot.lane.b32.xlu0 %v2337, 18
  %v2515 = vpop.permute.xlu0 %2514
  %2516 = vrot.lane.b32.xlu0 %v2342, 18
  %v2517 = vpop.permute.xlu0 %2516
  %2518 = vrot.lane.b32.xlu0 %v2345, 18
  %v2519 = vpop.permute.xlu0 %2518
  %2520 = vrot.lane.b32.xlu0 %v2350, 18
  %v2521 = vpop.permute.xlu0 %2520
  %2522 = vrot.lane.b32.xlu0 %v2353, 18
  %v2523 = vpop.permute.xlu0 %2522
  %2524 = vrot.lane.b32.xlu0 %v2358, 18
  %v2525 = vpop.permute.xlu0 %2524
  %2526 = vrot.lane.b32.xlu0 %v2361, 18
  %v2527 = vpop.permute.xlu0 %2526
  %2528 = vrot.lane.b32.xlu0 %v2366, 18
  %v2529 = vpop.permute.xlu0 %2528
  %2530 = vrot.lane.b32.xlu0 %v2369, 18
  %v2531 = vpop.permute.xlu0 %2530
  %v2548 = vadd.f32 %v2468, %v2501
  %v2549 = vadd.f32 %v2469, %v2503
  %v2550 = vadd.f32 %v2470, %v2505
  %v2551 = vadd.f32 %v2471, %v2507
  %v2552 = vadd.f32 %v2472, %v2509
  %v2553 = vadd.f32 %v2473, %v2511
  %v2554 = vadd.f32 %v2474, %v2513
  %v2555 = vadd.f32 %v2475, %v2515
  %v2556 = vadd.f32 %v2476, %v2517
  %v2557 = vadd.f32 %v2477, %v2519
  %v2558 = vadd.f32 %v2478, %v2521
  %v2559 = vadd.f32 %v2479, %v2523
  %v2560 = vadd.f32 %v2480, %v2525
  %v2561 = vadd.f32 %v2481, %v2527
  %v2562 = vadd.f32 %v2482, %v2529
  %v2563 = vadd.f32 %v2483, %v2531
  %vm2564 = vcmask 220304
  %2565 = vst.msk [vmem:[#allocation3] sm:$0xff] %vm2564, %v2548
  %2566 = vst.msk [vmem:[#allocation3 + $0x8] sm:$0xff] %vm2564, %v2549
  %2567 = vst.msk [vmem:[#allocation3 + $0x10] sm:$0xff] %vm2564, %v2550
  %2568 = vst.msk [vmem:[#allocation3 + $0x18] sm:$0xff] %vm2564, %v2551
  %2569 = vst.msk [vmem:[#allocation3 + $0x20] sm:$0xff] %vm2564, %v2552
  %2570 = vst.msk [vmem:[#allocation3 + $0x28] sm:$0xff] %vm2564, %v2553
  %2571 = vst.msk [vmem:[#allocation3 + $0x30] sm:$0xff] %vm2564, %v2554
  %2572 = vst.msk [vmem:[#allocation3 + $0x38] sm:$0xff] %vm2564, %v2555
  %2573 = vst.msk [vmem:[#allocation3 + $0x40] sm:$0xff] %vm2564, %v2556
  %2574 = vst.msk [vmem:[#allocation3 + $0x48] sm:$0xff] %vm2564, %v2557
  %2575 = vst.msk [vmem:[#allocation3 + $0x50] sm:$0xff] %vm2564, %v2558
  %2576 = vst.msk [vmem:[#allocation3 + $0x58] sm:$0xff] %vm2564, %v2559
  %2577 = vst.msk [vmem:[#allocation3 + $0x60] sm:$0xff] %vm2564, %v2560
  %2578 = vst.msk [vmem:[#allocation3 + $0x68] sm:$0xff] %vm2564, %v2561
  %2579 = vst.msk [vmem:[#allocation3 + $0x70] sm:$0xff] %vm2564, %v2562
  %2580 = vst.msk [vmem:[#allocation3 + $0x78] sm:$0xff] %vm2564, %v2563
  %vm2581 = vcmask 23568
  %2582 = vst.msk [vmem:[#allocation2] sm:$0xff] %vm2581, %v1995
  %2583 = vst.msk [vmem:[#allocation2 + $0x8] sm:$0xff] %vm2581, %v1996
  %2584 = vst.msk [vmem:[#allocation2 + $0x10] sm:$0xff] %vm2581, %v1997
  %2585 = vst.msk [vmem:[#allocation2 + $0x18] sm:$0xff] %vm2581, %v1998
  %2586 = vst.msk [vmem:[#allocation2 + $0x20] sm:$0xff] %vm2581, %v1999
  %2587 = vst.msk [vmem:[#allocation2 + $0x28] sm:$0xff] %vm2581, %v2000
  %2588 = vst.msk [vmem:[#allocation2 + $0x30] sm:$0xff] %vm2581, %v2001
  %2589 = vst.msk [vmem:[#allocation2 + $0x38] sm:$0xff] %vm2581, %v2002
  %2590 = vst.msk [vmem:[#allocation2 + $0x40] sm:$0xff] %vm2581, %v2003
  %2591 = vst.msk [vmem:[#allocation2 + $0x48] sm:$0xff] %vm2581, %v2004
  %2592 = vst.msk [vmem:[#allocation2 + $0x50] sm:$0xff] %vm2581, %v2005
  %2593 = vst.msk [vmem:[#allocation2 + $0x58] sm:$0xff] %vm2581, %v2006
  %2594 = vst.msk [vmem:[#allocation2 + $0x60] sm:$0xff] %vm2581, %v2007
  %2595 = vst.msk [vmem:[#allocation2 + $0x68] sm:$0xff] %vm2581, %v2008
  %2596 = vst.msk [vmem:[#allocation2 + $0x70] sm:$0xff] %vm2581, %v2009
  %2597 = vst.msk [vmem:[#allocation2 + $0x78] sm:$0xff] %vm2581, %v2010
  %v2598 = vld [vmem:[%s0] sm:$0xff]
  %v2599 = vld [vmem:[%s0 + $0x8] sm:$0xff]
  %v2600 = vld [vmem:[%s0 + $0x10] sm:$0xff]
  %v2601 = vld [vmem:[%s0 + $0x18] sm:$0xff]
  %v2602 = vld [vmem:[%s0 + $0x20] sm:$0xff]
  %v2603 = vld [vmem:[%s0 + $0x28] sm:$0xff]
  %v2604 = vld [vmem:[%s0 + $0x30] sm:$0xff]
  %v2605 = vld [vmem:[%s0 + $0x38] sm:$0xff]
  %v2606 = vld [vmem:[%s0 + $0x40] sm:$0xff]
  %v2607 = vld [vmem:[%s0 + $0x48] sm:$0xff]
  %v2608 = vld [vmem:[%s0 + $0x50] sm:$0xff]
  %v2609 = vld [vmem:[%s0 + $0x58] sm:$0xff]
  %v2610 = vld [vmem:[%s0 + $0x60] sm:$0xff]
  %v2611 = vld [vmem:[%s0 + $0x68] sm:$0xff]
  %v2612 = vld [vmem:[%s0 + $0x70] sm:$0xff]
  %v2613 = vld [vmem:[%s0 + $0x78] sm:$0xff]
  %v2614 = vld [vmem:[%s1 + $0x3] sm:$0x1]
  %2616 = vset.pattern.permute.xlu0 3
  %2617 = vperm.xlu0 %2616, %v2598
  %v2618 = vpop.permute.xlu0 %2617
  %2621 = vset.pattern.permute.xlu0 3
  %2622 = vperm.xlu0 %2621, %v2599
  %v2623 = vpop.permute.xlu0 %2622
  %2626 = vset.pattern.permute.xlu0 3
  %2627 = vperm.xlu0 %2626, %v2600
  %v2628 = vpop.permute.xlu0 %2627
  %2631 = vset.pattern.permute.xlu0 3
  %2632 = vperm.xlu0 %2631, %v2601
  %v2633 = vpop.permute.xlu0 %2632
  %2636 = vset.pattern.permute.xlu0 3
  %2637 = vperm.xlu0 %2636, %v2602
  %v2638 = vpop.permute.xlu0 %2637
  %2641 = vset.pattern.permute.xlu0 3
  %2642 = vperm.xlu0 %2641, %v2603
  %v2643 = vpop.permute.xlu0 %2642
  %2646 = vset.pattern.permute.xlu0 3
  %2647 = vperm.xlu0 %2646, %v2604
  %v2648 = vpop.permute.xlu0 %2647
  %2651 = vset.pattern.permute.xlu0 3
  %2652 = vperm.xlu0 %2651, %v2605
  %v2653 = vpop.permute.xlu0 %2652
  %2656 = vset.pattern.permute.xlu0 3
  %2657 = vperm.xlu0 %2656, %v2606
  %v2658 = vpop.permute.xlu0 %2657
  %2661 = vset.pattern.permute.xlu0 3
  %2662 = vperm.xlu0 %2661, %v2607
  %v2663 = vpop.permute.xlu0 %2662
  %2666 = vset.pattern.permute.xlu0 3
  %2667 = vperm.xlu0 %2666, %v2608
  %v2668 = vpop.permute.xlu0 %2667
  %2671 = vset.pattern.permute.xlu0 3
  %2672 = vperm.xlu0 %2671, %v2609
  %v2673 = vpop.permute.xlu0 %2672
  %2676 = vset.pattern.permute.xlu0 3
  %2677 = vperm.xlu0 %2676, %v2610
  %v2678 = vpop.permute.xlu0 %2677
  %2681 = vset.pattern.permute.xlu0 3
  %2682 = vperm.xlu0 %2681, %v2611
  %v2683 = vpop.permute.xlu0 %2682
  %2686 = vset.pattern.permute.xlu0 3
  %2687 = vperm.xlu0 %2686, %v2612
  %v2688 = vpop.permute.xlu0 %2687
  %2691 = vset.pattern.permute.xlu0 3
  %2692 = vperm.xlu0 %2691, %v2613
  %v2693 = vpop.permute.xlu0 %2692
  %v2695 = vlaneseq
  %v2696 = vshrl.u32 %v2695, 7
  %v2697 = vsub.s32 0, %v2696
  %v2698 = vrot.slane %v2614, %v2697
  %v2699 = vadd.f32 %v2618, %v2698
  %v2700 = vadd.f32 %v2623, %v2698
  %v2701 = vadd.f32 %v2628, %v2698
  %v2702 = vadd.f32 %v2633, %v2698
  %v2703 = vadd.f32 %v2638, %v2698
  %v2704 = vadd.f32 %v2643, %v2698
  %v2705 = vadd.f32 %v2648, %v2698
  %v2706 = vadd.f32 %v2653, %v2698
  %v2707 = vadd.f32 %v2658, %v2698
  %v2708 = vadd.f32 %v2663, %v2698
  %v2709 = vadd.f32 %v2668, %v2698
  %v2710 = vadd.f32 %v2673, %v2698
  %v2711 = vadd.f32 %v2678, %v2698
  %v2712 = vadd.f32 %v2683, %v2698
  %v2713 = vadd.f32 %v2688, %v2698
  %v2714 = vadd.f32 %v2693, %v2698
  %vm2715 = vcmp.ge.f32.partialorder %v2699, 0.0
  %vm2716 = vcmp.ge.f32.partialorder %v2700, 0.0
  %vm2717 = vcmp.ge.f32.partialorder %v2701, 0.0
  %vm2718 = vcmp.ge.f32.partialorder %v2702, 0.0
  %vm2719 = vcmp.ge.f32.partialorder %v2703, 0.0
  %vm2720 = vcmp.ge.f32.partialorder %v2704, 0.0
  %vm2721 = vcmp.ge.f32.partialorder %v2705, 0.0
  %vm2722 = vcmp.ge.f32.partialorder %v2706, 0.0
  %vm2723 = vcmp.ge.f32.partialorder %v2707, 0.0
  %vm2724 = vcmp.ge.f32.partialorder %v2708, 0.0
  %vm2725 = vcmp.ge.f32.partialorder %v2709, 0.0
  %vm2726 = vcmp.ge.f32.partialorder %v2710, 0.0
  %vm2727 = vcmp.ge.f32.partialorder %v2711, 0.0
  %vm2728 = vcmp.ge.f32.partialorder %v2712, 0.0
  %vm2729 = vcmp.ge.f32.partialorder %v2713, 0.0
  %vm2730 = vcmp.ge.f32.partialorder %v2714, 0.0
  %v2731 = vmul.f32 %v2699, 0.2
  %v2732 = vmul.f32 %v2700, 0.2
  %v2733 = vmul.f32 %v2701, 0.2
  %v2734 = vmul.f32 %v2702, 0.2
  %v2735 = vmul.f32 %v2703, 0.2
  %v2736 = vmul.f32 %v2704, 0.2
  %v2737 = vmul.f32 %v2705, 0.2
  %v2738 = vmul.f32 %v2706, 0.2
  %v2739 = vmul.f32 %v2707, 0.2
  %v2740 = vmul.f32 %v2708, 0.2
  %v2741 = vmul.f32 %v2709, 0.2
  %v2742 = vmul.f32 %v2710, 0.2
  %v2743 = vmul.f32 %v2711, 0.2
  %v2744 = vmul.f32 %v2712, 0.2
  %v2745 = vmul.f32 %v2713, 0.2
  %v2746 = vmul.f32 %v2714, 0.2
  %v2747 = vsel %vm2715, %v2699, %v2731
  %v2748 = vsel %vm2716, %v2700, %v2732
  %v2749 = vsel %vm2717, %v2701, %v2733
  %v2750 = vsel %vm2718, %v2702, %v2734
  %v2751 = vsel %vm2719, %v2703, %v2735
  %v2752 = vsel %vm2720, %v2704, %v2736
  %v2753 = vsel %vm2721, %v2705, %v2737
  %v2754 = vsel %vm2722, %v2706, %v2738
  %v2755 = vsel %vm2723, %v2707, %v2739
  %v2756 = vsel %vm2724, %v2708, %v2740
  %v2757 = vsel %vm2725, %v2709, %v2741
  %v2758 = vsel %vm2726, %v2710, %v2742
  %v2759 = vsel %vm2727, %v2711, %v2743
  %v2760 = vsel %vm2728, %v2712, %v2744
  %v2761 = vsel %vm2729, %v2713, %v2745
  %v2762 = vsel %vm2730, %v2714, %v2746
  %v2763 = vsel %vm331, %v2747, -1e+30
  %v2764 = vsel %vm332, %v2748, -1e+30
  %v2765 = vsel %vm333, %v2749, -1e+30
  %v2766 = vsel %vm334, %v2750, -1e+30
  %v2767 = vsel %vm335, %v2751, -1e+30
  %v2768 = vsel %vm336, %v2752, -1e+30
  %v2769 = vsel %vm337, %v2753, -1e+30
  %v2770 = vsel %vm338, %v2754, -1e+30
  %v2771 = vsel %vm339, %v2755, -1e+30
  %v2772 = vsel %vm340, %v2756, -1e+30
  %v2773 = vsel %vm341, %v2757, -1e+30
  %v2774 = vsel %vm342, %v2758, -1e+30
  %v2775 = vsel %vm343, %v2759, -1e+30
  %v2776 = vsel %vm344, %v2760, -1e+30
  %v2777 = vsel %vm345, %v2761, -1e+30
  %v2778 = vsel %vm346, %v2762, -1e+30
  %v2779 = vld [vmem:[#allocation2] sm:$0xff]
  %v2780 = vld [vmem:[#allocation2 + $0x8] sm:$0xff]
  %v2781 = vld [vmem:[#allocation2 + $0x10] sm:$0xff]
  %v2782 = vld [vmem:[#allocation2 + $0x18] sm:$0xff]
  %v2783 = vld [vmem:[#allocation2 + $0x20] sm:$0xff]
  %v2784 = vld [vmem:[#allocation2 + $0x28] sm:$0xff]
  %v2785 = vld [vmem:[#allocation2 + $0x30] sm:$0xff]
  %v2786 = vld [vmem:[#allocation2 + $0x38] sm:$0xff]
  %v2787 = vld [vmem:[#allocation2 + $0x40] sm:$0xff]
  %v2788 = vld [vmem:[#allocation2 + $0x48] sm:$0xff]
  %v2789 = vld [vmem:[#allocation2 + $0x50] sm:$0xff]
  %v2790 = vld [vmem:[#allocation2 + $0x58] sm:$0xff]
  %v2791 = vld [vmem:[#allocation2 + $0x60] sm:$0xff]
  %v2792 = vld [vmem:[#allocation2 + $0x68] sm:$0xff]
  %v2793 = vld [vmem:[#allocation2 + $0x70] sm:$0xff]
  %v2794 = vld [vmem:[#allocation2 + $0x78] sm:$0xff]
  %2795 = vmax.xlane.f32.xlu0 %v2763
  %v2796 = vpop.xlane.xlu0 %2795
  %2797 = vmax.xlane.f32.xlu0 %v2764
  %v2798 = vpop.xlane.xlu0 %2797
  %2799 = vmax.xlane.f32.xlu0 %v2765
  %v2800 = vpop.xlane.xlu0 %2799
  %2801 = vmax.xlane.f32.xlu0 %v2766
  %v2802 = vpop.xlane.xlu0 %2801
  %2803 = vmax.xlane.f32.xlu0 %v2767
  %v2804 = vpop.xlane.xlu0 %2803
  %2805 = vmax.xlane.f32.xlu0 %v2768
  %v2806 = vpop.xlane.xlu0 %2805
  %2807 = vmax.xlane.f32.xlu0 %v2769
  %v2808 = vpop.xlane.xlu0 %2807
  %2809 = vmax.xlane.f32.xlu0 %v2770
  %v2810 = vpop.xlane.xlu0 %2809
  %2811 = vmax.xlane.f32.xlu0 %v2771
  %v2812 = vpop.xlane.xlu0 %2811
  %2813 = vmax.xlane.f32.xlu0 %v2772
  %v2814 = vpop.xlane.xlu0 %2813
  %2815 = vmax.xlane.f32.xlu0 %v2773
  %v2816 = vpop.xlane.xlu0 %2815
  %2817 = vmax.xlane.f32.xlu0 %v2774
  %v2818 = vpop.xlane.xlu0 %2817
  %2819 = vmax.xlane.f32.xlu0 %v2775
  %v2820 = vpop.xlane.xlu0 %2819
  %2821 = vmax.xlane.f32.xlu0 %v2776
  %v2822 = vpop.xlane.xlu0 %2821
  %2823 = vmax.xlane.f32.xlu0 %v2777
  %v2824 = vpop.xlane.xlu0 %2823
  %2825 = vmax.xlane.f32.xlu0 %v2778
  %v2826 = vpop.xlane.xlu0 %2825
  %v2827 = vmax.f32 %v2779, %v2796
  %v2828 = vmax.f32 %v2780, %v2798
  %v2829 = vmax.f32 %v2781, %v2800
  %v2830 = vmax.f32 %v2782, %v2802
  %v2831 = vmax.f32 %v2783, %v2804
  %v2832 = vmax.f32 %v2784, %v2806
  %v2833 = vmax.f32 %v2785, %v2808
  %v2834 = vmax.f32 %v2786, %v2810
  %v2835 = vmax.f32 %v2787, %v2812
  %v2836 = vmax.f32 %v2788, %v2814
  %v2837 = vmax.f32 %v2789, %v2816
  %v2838 = vmax.f32 %v2790, %v2818
  %v2839 = vmax.f32 %v2791, %v2820
  %v2840 = vmax.f32 %v2792, %v2822
  %v2841 = vmax.f32 %v2793, %v2824
  %v2842 = vmax.f32 %v2794, %v2826
  %v2843 = vsub.f32 %v2779, %v2827
  %v2844 = vsub.f32 %v2780, %v2828
  %v2845 = vsub.f32 %v2781, %v2829
  %v2846 = vsub.f32 %v2782, %v2830
  %v2847 = vsub.f32 %v2783, %v2831
  %v2848 = vsub.f32 %v2784, %v2832
  %v2849 = vsub.f32 %v2785, %v2833
  %v2850 = vsub.f32 %v2786, %v2834
  %v2851 = vsub.f32 %v2787, %v2835
  %v2852 = vsub.f32 %v2788, %v2836
  %v2853 = vsub.f32 %v2789, %v2837
  %v2854 = vsub.f32 %v2790, %v2838
  %v2855 = vsub.f32 %v2791, %v2839
  %v2856 = vsub.f32 %v2792, %v2840
  %v2857 = vsub.f32 %v2793, %v2841
  %v2858 = vsub.f32 %v2794, %v2842
  %v2859 = vmul.f32 %v2843, 1.442695
  %v2860 = vpow.pop %v2859
  %v2861 = vmul.f32 %v2844, 1.442695
  %v2862 = vpow.pop %v2861
  %v2863 = vmul.f32 %v2845, 1.442695
  %v2864 = vpow.pop %v2863
  %v2865 = vmul.f32 %v2846, 1.442695
  %v2866 = vpow.pop %v2865
  %v2867 = vmul.f32 %v2847, 1.442695
  %v2868 = vpow.pop %v2867
  %v2869 = vmul.f32 %v2848, 1.442695
  %v2870 = vpow.pop %v2869
  %v2871 = vmul.f32 %v2849, 1.442695
  %v2872 = vpow.pop %v2871
  %v2873 = vmul.f32 %v2850, 1.442695
  %v2874 = vpow.pop %v2873
  %v2875 = vmul.f32 %v2851, 1.442695
  %v2876 = vpow.pop %v2875
  %v2877 = vmul.f32 %v2852, 1.442695
  %v2878 = vpow.pop %v2877
  %v2879 = vmul.f32 %v2853, 1.442695
  %v2880 = vpow.pop %v2879
  %v2881 = vmul.f32 %v2854, 1.442695
  %v2882 = vpow.pop %v2881
  %v2883 = vmul.f32 %v2855, 1.442695
  %v2884 = vpow.pop %v2883
  %v2885 = vmul.f32 %v2856, 1.442695
  %v2886 = vpow.pop %v2885
  %v2887 = vmul.f32 %v2857, 1.442695
  %v2888 = vpow.pop %v2887
  %v2889 = vmul.f32 %v2858, 1.442695
  %v2890 = vpow.pop %v2889
  %2892 = vset.pattern.permute.xlu0 3
  %2893 = vperm.xlu0 %2892, %v2827
  %v2894 = vpop.permute.xlu0 %2893
  %2897 = vset.pattern.permute.xlu0 3
  %2898 = vperm.xlu0 %2897, %v2828
  %v2899 = vpop.permute.xlu0 %2898
  %2902 = vset.pattern.permute.xlu0 3
  %2903 = vperm.xlu0 %2902, %v2829
  %v2904 = vpop.permute.xlu0 %2903
  %2907 = vset.pattern.permute.xlu0 3
  %2908 = vperm.xlu0 %2907, %v2830
  %v2909 = vpop.permute.xlu0 %2908
  %2912 = vset.pattern.permute.xlu0 3
  %2913 = vperm.xlu0 %2912, %v2831
  %v2914 = vpop.permute.xlu0 %2913
  %2917 = vset.pattern.permute.xlu0 3
  %2918 = vperm.xlu0 %2917, %v2832
  %v2919 = vpop.permute.xlu0 %2918
  %2922 = vset.pattern.permute.xlu0 3
  %2923 = vperm.xlu0 %2922, %v2833
  %v2924 = vpop.permute.xlu0 %2923
  %2927 = vset.pattern.permute.xlu0 3
  %2928 = vperm.xlu0 %2927, %v2834
  %v2929 = vpop.permute.xlu0 %2928
  %2932 = vset.pattern.permute.xlu0 3
  %2933 = vperm.xlu0 %2932, %v2835
  %v2934 = vpop.permute.xlu0 %2933
  %2937 = vset.pattern.permute.xlu0 3
  %2938 = vperm.xlu0 %2937, %v2836
  %v2939 = vpop.permute.xlu0 %2938
  %2942 = vset.pattern.permute.xlu0 3
  %2943 = vperm.xlu0 %2942, %v2837
  %v2944 = vpop.permute.xlu0 %2943
  %2947 = vset.pattern.permute.xlu0 3
  %2948 = vperm.xlu0 %2947, %v2838
  %v2949 = vpop.permute.xlu0 %2948
  %2952 = vset.pattern.permute.xlu0 3
  %2953 = vperm.xlu0 %2952, %v2839
  %v2954 = vpop.permute.xlu0 %2953
  %2957 = vset.pattern.permute.xlu0 3
  %2958 = vperm.xlu0 %2957, %v2840
  %v2959 = vpop.permute.xlu0 %2958
  %2962 = vset.pattern.permute.xlu0 3
  %2963 = vperm.xlu0 %2962, %v2841
  %v2964 = vpop.permute.xlu0 %2963
  %2967 = vset.pattern.permute.xlu0 3
  %2968 = vperm.xlu0 %2967, %v2842
  %v2969 = vpop.permute.xlu0 %2968
  %v2971 = vsub.f32 %v2763, %v2894
  %v2972 = vsub.f32 %v2764, %v2899
  %v2973 = vsub.f32 %v2765, %v2904
  %v2974 = vsub.f32 %v2766, %v2909
  %v2975 = vsub.f32 %v2767, %v2914
  %v2976 = vsub.f32 %v2768, %v2919
  %v2977 = vsub.f32 %v2769, %v2924
  %v2978 = vsub.f32 %v2770, %v2929
  %v2979 = vsub.f32 %v2771, %v2934
  %v2980 = vsub.f32 %v2772, %v2939
  %v2981 = vsub.f32 %v2773, %v2944
  %v2982 = vsub.f32 %v2774, %v2949
  %v2983 = vsub.f32 %v2775, %v2954
  %v2984 = vsub.f32 %v2776, %v2959
  %v2985 = vsub.f32 %v2777, %v2964
  %v2986 = vsub.f32 %v2778, %v2969
  %v2987 = vmul.f32 %v2971, 1.442695
  %v2988 = vpow.pop %v2987
  %v2989 = vmul.f32 %v2972, 1.442695
  %v2990 = vpow.pop %v2989
  %v2991 = vmul.f32 %v2973, 1.442695
  %v2992 = vpow.pop %v2991
  %v2993 = vmul.f32 %v2974, 1.442695
  %v2994 = vpow.pop %v2993
  %v2995 = vmul.f32 %v2975, 1.442695
  %v2996 = vpow.pop %v2995
  %v2997 = vmul.f32 %v2976, 1.442695
  %v2998 = vpow.pop %v2997
  %v2999 = vmul.f32 %v2977, 1.442695
  %v3000 = vpow.pop %v2999
  %v3001 = vmul.f32 %v2978, 1.442695
  %v3002 = vpow.pop %v3001
  %v3003 = vmul.f32 %v2979, 1.442695
  %v3004 = vpow.pop %v3003
  %v3005 = vmul.f32 %v2980, 1.442695
  %v3006 = vpow.pop %v3005
  %v3007 = vmul.f32 %v2981, 1.442695
  %v3008 = vpow.pop %v3007
  %v3009 = vmul.f32 %v2982, 1.442695
  %v3010 = vpow.pop %v3009
  %v3011 = vmul.f32 %v2983, 1.442695
  %v3012 = vpow.pop %v3011
  %v3013 = vmul.f32 %v2984, 1.442695
  %v3014 = vpow.pop %v3013
  %v3015 = vmul.f32 %v2985, 1.442695
  %v3016 = vpow.pop %v3015
  %v3017 = vmul.f32 %v2986, 1.442695
  %v3018 = vpow.pop %v3017
  %v3019 = vld [vmem:[%s3] sm:$0xf]
  %v3020 = vld [vmem:[%s3 + $0x4] sm:$0xf]
  %v3021 = vld [vmem:[%s3 + $0x8] sm:$0xf]
  %v3022 = vld [vmem:[%s3 + $0xc] sm:$0xf]
  %v3023 = vld [vmem:[%s3 + $0x10] sm:$0xf]
  %v3024 = vld [vmem:[%s3 + $0x14] sm:$0xf]
  %v3025 = vld [vmem:[%s3 + $0x18] sm:$0xf]
  %v3026 = vld [vmem:[%s3 + $0x1c] sm:$0xf]
  %v3027 = vld [vmem:[%s3 + $0x20] sm:$0xf]
  %v3028 = vld [vmem:[%s3 + $0x24] sm:$0xf]
  %v3029 = vld [vmem:[%s3 + $0x28] sm:$0xf]
  %v3030 = vld [vmem:[%s3 + $0x2c] sm:$0xf]
  %v3031 = vld [vmem:[%s3 + $0x30] sm:$0xf]
  %v3032 = vld [vmem:[%s3 + $0x34] sm:$0xf]
  %v3033 = vld [vmem:[%s3 + $0x38] sm:$0xf]
  %v3034 = vld [vmem:[%s3 + $0x3c] sm:$0xf]
  %v3035 = vpack.c.bf16 %v2990, %v2988
  %v3036 = vpack.c.bf16 %v2994, %v2992
  %v3037 = vpack.c.bf16 %v2998, %v2996
  %v3038 = vpack.c.bf16 %v3002, %v3000
  %v3039 = vpack.c.bf16 %v3006, %v3004
  %v3040 = vpack.c.bf16 %v3010, %v3008
  %v3041 = vpack.c.bf16 %v3014, %v3012
  %v3042 = vpack.c.bf16 %v3018, %v3016
  %v3059 = vunpack.c.l.b16 %v3019
  %v3060 = vunpack.c.l.b16 %v3020
  %v3061 = vunpack.c.l.b16 %v3021
  %v3062 = vunpack.c.l.b16 %v3022
  %v3063 = vunpack.c.l.b16 %v3023
  %v3064 = vunpack.c.l.b16 %v3024
  %v3065 = vunpack.c.l.b16 %v3025
  %v3066 = vunpack.c.l.b16 %v3026
  %v3067 = vunpack.c.l.b16 %v3027
  %v3068 = vunpack.c.l.b16 %v3028
  %v3069 = vunpack.c.l.b16 %v3029
  %v3070 = vunpack.c.l.b16 %v3030
  %v3071 = vunpack.c.l.b16 %v3031
  %v3072 = vunpack.c.l.b16 %v3032
  %v3073 = vunpack.c.l.b16 %v3033
  %v3074 = vunpack.c.l.b16 %v3034
  %v3075 = vpack.c.b16 %v3060, %v3059
  %v3076 = vpack.c.b16 %v3062, %v3061
  %v3077 = vpack.c.b16 %v3064, %v3063
  %v3078 = vpack.c.b16 %v3066, %v3065
  %v3079 = vpack.c.b16 %v3068, %v3067
  %v3080 = vpack.c.b16 %v3070, %v3069
  %v3081 = vpack.c.b16 %v3072, %v3071
  %v3082 = vpack.c.b16 %v3074, %v3073
  %3083 = vrot.lane.b32.xlu0 %v3075, 101
  %v3084 = vpop.permute.xlu0 %3083
  %3085 = vrot.lane.b32.xlu0 %v3076, 101
  %v3086 = vpop.permute.xlu0 %3085
  %3087 = vrot.lane.b32.xlu0 %v3077, 101
  %v3088 = vpop.permute.xlu0 %3087
  %3089 = vrot.lane.b32.xlu0 %v3078, 101
  %v3090 = vpop.permute.xlu0 %3089
  %3091 = vrot.lane.b32.xlu0 %v3079, 101
  %v3092 = vpop.permute.xlu0 %3091
  %3093 = vrot.lane.b32.xlu0 %v3080, 101
  %v3094 = vpop.permute.xlu0 %3093
  %3095 = vrot.lane.b32.xlu0 %v3081, 101
  %v3096 = vpop.permute.xlu0 %3095
  %3097 = vrot.lane.b32.xlu0 %v3082, 101
  %v3098 = vpop.permute.xlu0 %3097
  %3107 = vmatprep.subr.bf16.mxu0 0
  %3108 = vmatpush1.bf16.msra.mxu0 %v3084
  %3109 = vmatprep.subr.bf16.mxu0 0
  %3110 = vmatpush1.bf16.msra.mxu0 %v3086
  %3111 = vmatprep.subr.bf16.mxu0 0
  %3112 = vmatpush1.bf16.msra.mxu0 %v3088
  %3113 = vmatprep.subr.bf16.mxu0 0
  %3114 = vmatpush1.bf16.msra.mxu0 %v3090
  %3115 = vmatprep.subr.bf16.mxu0 0
  %3116 = vmatpush1.bf16.msra.mxu0 %v3092
  %3117 = vmatprep.subr.bf16.mxu0 0
  %3118 = vmatpush1.bf16.msra.mxu0 %v3094
  %3119 = vmatprep.subr.bf16.mxu0 0
  %3120 = vmatpush1.bf16.msra.mxu0 %v3096
  %3121 = vmatprep.subr.bf16.mxu0 0
  %3122 = vmatpush1.bf16.msra.mxu0 %v3098
  %3123 = vmatprep.subr.bf16.mxu0 0
  %3124 = vmatpush1.bf16.msra.mxu0 0
  %3125 = vmatprep.subr.bf16.mxu0 0
  %3126 = vmatpush1.bf16.msra.mxu0 0
  %3127 = vmatprep.subr.bf16.mxu0 0
  %3128 = vmatpush1.bf16.msra.mxu0 0
  %3129 = vmatprep.subr.bf16.mxu0 0
  %3130 = vmatpush1.bf16.msra.mxu0 0
  %3131 = vmatprep.subr.bf16.mxu0 0
  %3132 = vmatpush1.bf16.msra.mxu0 0
  %3133 = vmatprep.subr.bf16.mxu0 0
  %3134 = vmatpush1.bf16.msra.mxu0 0
  %3135 = vmatprep.subr.bf16.mxu0 0
  %3136 = vmatpush1.bf16.msra.mxu0 0
  %3137 = vmatprep.subr.bf16.mxu0 0
  %3138 = vmatpush1.bf16.msra.mxu0 0
  %3139 = vmatprep.mubr.bf16.mxu0 0
  %3140 = vmatmul.mubr.bf16.gmra.mrb[0].mxu0 %v3035
  %v3141 = vpop.f32.mrb[0].mxu0
  %v3142 = vadd.f32 0.0, %v3141
  %v3143 = vpop.f32.mrb[0].mxu0
  %v3144 = vpop.f32.mrb[0].mxu0
  %v3145 = vadd.f32 0.0, %v3144
  %v3146 = vpop.f32.mrb[0].mxu0
  %3147 = vmatprep.mubr.bf16.mxu0 0
  %3148 = vmatmul.mubr.bf16.gmra.mrb[0].mxu0 %v3036
  %v3149 = vpop.f32.mrb[0].mxu0
  %v3150 = vadd.f32 0.0, %v3149
  %v3151 = vpop.f32.mrb[0].mxu0
  %v3152 = vpop.f32.mrb[0].mxu0
  %v3153 = vadd.f32 0.0, %v3152
  %v3154 = vpop.f32.mrb[0].mxu0
  %3155 = vmatprep.mubr.bf16.mxu0 0
  %3156 = vmatmul.mubr.bf16.gmra.mrb[0].mxu0 %v3037
  %v3157 = vpop.f32.mrb[0].mxu0
  %v3158 = vadd.f32 0.0, %v3157
  %v3159 = vpop.f32.mrb[0].mxu0
  %v3160 = vpop.f32.mrb[0].mxu0
  %v3161 = vadd.f32 0.0, %v3160
  %v3162 = vpop.f32.mrb[0].mxu0
  %3163 = vmatprep.mubr.bf16.mxu0 0
  %3164 = vmatmul.mubr.bf16.gmra.mrb[0].mxu0 %v3038
  %v3165 = vpop.f32.mrb[0].mxu0
  %v3166 = vadd.f32 0.0, %v3165
  %v3167 = vpop.f32.mrb[0].mxu0
  %v3168 = vpop.f32.mrb[0].mxu0
  %v3169 = vadd.f32 0.0, %v3168
  %v3170 = vpop.f32.mrb[0].mxu0
  %3171 = vmatprep.mubr.bf16.mxu0 0
  %3172 = vmatmul.mubr.bf16.gmra.mrb[0].mxu0 %v3039
  %v3173 = vpop.f32.mrb[0].mxu0
  %v3174 = vadd.f32 0.0, %v3173
  %v3175 = vpop.f32.mrb[0].mxu0
  %v3176 = vpop.f32.mrb[0].mxu0
  %v3177 = vadd.f32 0.0, %v3176
  %v3178 = vpop.f32.mrb[0].mxu0
  %3179 = vmatprep.mubr.bf16.mxu0 0
  %3180 = vmatmul.mubr.bf16.gmra.mrb[0].mxu0 %v3040
  %v3181 = vpop.f32.mrb[0].mxu0
  %v3182 = vadd.f32 0.0, %v3181
  %v3183 = vpop.f32.mrb[0].mxu0
  %v3184 = vpop.f32.mrb[0].mxu0
  %v3185 = vadd.f32 0.0, %v3184
  %v3186 = vpop.f32.mrb[0].mxu0
  %3187 = vmatprep.mubr.bf16.mxu0 0
  %3188 = vmatmul.mubr.bf16.gmra.mrb[0].mxu0 %v3041
  %v3189 = vpop.f32.mrb[0].mxu0
  %v3190 = vadd.f32 0.0, %v3189
  %v3191 = vpop.f32.mrb[0].mxu0
  %v3192 = vpop.f32.mrb[0].mxu0
  %v3193 = vadd.f32 0.0, %v3192
  %v3194 = vpop.f32.mrb[0].mxu0
  %3195 = vmatprep.mubr.bf16.mxu0 0
  %3196 = vmatmul.mubr.bf16.gmra.mrb[0].mxu0 %v3042
  %v3197 = vpop.f32.mrb[0].mxu0
  %v3198 = vadd.f32 0.0, %v3197
  %v3199 = vpop.f32.mrb[0].mxu0
  %v3200 = vpop.f32.mrb[0].mxu0
  %v3201 = vadd.f32 0.0, %v3200
  %v3202 = vpop.f32.mrb[0].mxu0
  %3203 = vdwg.mxu0
  %v3204 = vld [vmem:[#allocation3] sm:$0xff]
  %v3205 = vld [vmem:[#allocation3 + $0x8] sm:$0xff]
  %v3206 = vld [vmem:[#allocation3 + $0x10] sm:$0xff]
  %v3207 = vld [vmem:[#allocation3 + $0x18] sm:$0xff]
  %v3208 = vld [vmem:[#allocation3 + $0x20] sm:$0xff]
  %v3209 = vld [vmem:[#allocation3 + $0x28] sm:$0xff]
  %v3210 = vld [vmem:[#allocation3 + $0x30] sm:$0xff]
  %v3211 = vld [vmem:[#allocation3 + $0x38] sm:$0xff]
  %v3212 = vld [vmem:[#allocation3 + $0x40] sm:$0xff]
  %v3213 = vld [vmem:[#allocation3 + $0x48] sm:$0xff]
  %v3214 = vld [vmem:[#allocation3 + $0x50] sm:$0xff]
  %v3215 = vld [vmem:[#allocation3 + $0x58] sm:$0xff]
  %v3216 = vld [vmem:[#allocation3 + $0x60] sm:$0xff]
  %v3217 = vld [vmem:[#allocation3 + $0x68] sm:$0xff]
  %v3218 = vld [vmem:[#allocation3 + $0x70] sm:$0xff]
  %v3219 = vld [vmem:[#allocation3 + $0x78] sm:$0xff]
  %3221 = vset.pattern.permute.xlu0 3
  %3222 = vperm.xlu0 %3221, %v2860
  %v3223 = vpop.permute.xlu0 %3222
  %3226 = vset.pattern.permute.xlu0 3
  %3227 = vperm.xlu0 %3226, %v2862
  %v3228 = vpop.permute.xlu0 %3227
  %3231 = vset.pattern.permute.xlu0 3
  %3232 = vperm.xlu0 %3231, %v2864
  %v3233 = vpop.permute.xlu0 %3232
  %3236 = vset.pattern.permute.xlu0 3
  %3237 = vperm.xlu0 %3236, %v2866
  %v3238 = vpop.permute.xlu0 %3237
  %3241 = vset.pattern.permute.xlu0 3
  %3242 = vperm.xlu0 %3241, %v2868
  %v3243 = vpop.permute.xlu0 %3242
  %3246 = vset.pattern.permute.xlu0 3
  %3247 = vperm.xlu0 %3246, %v2870
  %v3248 = vpop.permute.xlu0 %3247
  %3251 = vset.pattern.permute.xlu0 3
  %3252 = vperm.xlu0 %3251, %v2872
  %v3253 = vpop.permute.xlu0 %3252
  %3256 = vset.pattern.permute.xlu0 3
  %3257 = vperm.xlu0 %3256, %v2874
  %v3258 = vpop.permute.xlu0 %3257
  %3261 = vset.pattern.permute.xlu0 3
  %3262 = vperm.xlu0 %3261, %v2876
  %v3263 = vpop.permute.xlu0 %3262
  %3266 = vset.pattern.permute.xlu0 3
  %3267 = vperm.xlu0 %3266, %v2878
  %v3268 = vpop.permute.xlu0 %3267
  %3271 = vset.pattern.permute.xlu0 3
  %3272 = vperm.xlu0 %3271, %v2880
  %v3273 = vpop.permute.xlu0 %3272
  %3276 = vset.pattern.permute.xlu0 3
  %3277 = vperm.xlu0 %3276, %v2882
  %v3278 = vpop.permute.xlu0 %3277
  %3281 = vset.pattern.permute.xlu0 3
  %3282 = vperm.xlu0 %3281, %v2884
  %v3283 = vpop.permute.xlu0 %3282
  %3286 = vset.pattern.permute.xlu0 3
  %3287 = vperm.xlu0 %3286, %v2886
  %v3288 = vpop.permute.xlu0 %3287
  %3291 = vset.pattern.permute.xlu0 3
  %3292 = vperm.xlu0 %3291, %v2888
  %v3293 = vpop.permute.xlu0 %3292
  %3296 = vset.pattern.permute.xlu0 3
  %3297 = vperm.xlu0 %3296, %v2890
  %v3298 = vpop.permute.xlu0 %3297
  %v3300 = vmul.f32 %v3223, %v3204
  %v3301 = vmul.f32 %v3228, %v3205
  %v3302 = vmul.f32 %v3233, %v3206
  %v3303 = vmul.f32 %v3238, %v3207
  %v3304 = vmul.f32 %v3243, %v3208
  %v3305 = vmul.f32 %v3248, %v3209
  %v3306 = vmul.f32 %v3253, %v3210
  %v3307 = vmul.f32 %v3258, %v3211
  %v3308 = vmul.f32 %v3263, %v3212
  %v3309 = vmul.f32 %v3268, %v3213
  %v3310 = vmul.f32 %v3273, %v3214
  %v3311 = vmul.f32 %v3278, %v3215
  %v3312 = vmul.f32 %v3283, %v3216
  %v3313 = vmul.f32 %v3288, %v3217
  %v3314 = vmul.f32 %v3293, %v3218
  %v3315 = vmul.f32 %v3298, %v3219
  %3332 = vrot.lane.b32.xlu0 %v3142, 27
  %v3333 = vpop.permute.xlu0 %3332
  %3334 = vrot.lane.b32.xlu0 %v3145, 27
  %v3335 = vpop.permute.xlu0 %3334
  %3336 = vrot.lane.b32.xlu0 %v3150, 27
  %v3337 = vpop.permute.xlu0 %3336
  %3338 = vrot.lane.b32.xlu0 %v3153, 27
  %v3339 = vpop.permute.xlu0 %3338
  %3340 = vrot.lane.b32.xlu0 %v3158, 27
  %v3341 = vpop.permute.xlu0 %3340
  %3342 = vrot.lane.b32.xlu0 %v3161, 27
  %v3343 = vpop.permute.xlu0 %3342
  %3344 = vrot.lane.b32.xlu0 %v3166, 27
  %v3345 = vpop.permute.xlu0 %3344
  %3346 = vrot.lane.b32.xlu0 %v3169, 27
  %v3347 = vpop.permute.xlu0 %3346
  %3348 = vrot.lane.b32.xlu0 %v3174, 27
  %v3349 = vpop.permute.xlu0 %3348
  %3350 = vrot.lane.b32.xlu0 %v3177, 27
  %v3351 = vpop.permute.xlu0 %3350
  %3352 = vrot.lane.b32.xlu0 %v3182, 27
  %v3353 = vpop.permute.xlu0 %3352
  %3354 = vrot.lane.b32.xlu0 %v3185, 27
  %v3355 = vpop.permute.xlu0 %3354
  %3356 = vrot.lane.b32.xlu0 %v3190, 27
  %v3357 = vpop.permute.xlu0 %3356
  %3358 = vrot.lane.b32.xlu0 %v3193, 27
  %v3359 = vpop.permute.xlu0 %3358
  %3360 = vrot.lane.b32.xlu0 %v3198, 27
  %v3361 = vpop.permute.xlu0 %3360
  %3362 = vrot.lane.b32.xlu0 %v3201, 27
  %v3363 = vpop.permute.xlu0 %3362
  %v3380 = vadd.f32 %v3300, %v3333
  %v3381 = vadd.f32 %v3301, %v3335
  %v3382 = vadd.f32 %v3302, %v3337
  %v3383 = vadd.f32 %v3303, %v3339
  %v3384 = vadd.f32 %v3304, %v3341
  %v3385 = vadd.f32 %v3305, %v3343
  %v3386 = vadd.f32 %v3306, %v3345
  %v3387 = vadd.f32 %v3307, %v3347
  %v3388 = vadd.f32 %v3308, %v3349
  %v3389 = vadd.f32 %v3309, %v3351
  %v3390 = vadd.f32 %v3310, %v3353
  %v3391 = vadd.f32 %v3311, %v3355
  %v3392 = vadd.f32 %v3312, %v3357
  %v3393 = vadd.f32 %v3313, %v3359
  %v3394 = vadd.f32 %v3314, %v3361
  %v3395 = vadd.f32 %v3315, %v3363
  %vm3396 = vcmask 294104
  %3397 = vst.msk [vmem:[#allocation3] sm:$0xff] %vm3396, %v3380
  %3398 = vst.msk [vmem:[#allocation3 + $0x8] sm:$0xff] %vm3396, %v3381
  %3399 = vst.msk [vmem:[#allocation3 + $0x10] sm:$0xff] %vm3396, %v3382
  %3400 = vst.msk [vmem:[#allocation3 + $0x18] sm:$0xff] %vm3396, %v3383
  %3401 = vst.msk [vmem:[#allocation3 + $0x20] sm:$0xff] %vm3396, %v3384
  %3402 = vst.msk [vmem:[#allocation3 + $0x28] sm:$0xff] %vm3396, %v3385
  %3403 = vst.msk [vmem:[#allocation3 + $0x30] sm:$0xff] %vm3396, %v3386
  %3404 = vst.msk [vmem:[#allocation3 + $0x38] sm:$0xff] %vm3396, %v3387
  %3405 = vst.msk [vmem:[#allocation3 + $0x40] sm:$0xff] %vm3396, %v3388
  %3406 = vst.msk [vmem:[#allocation3 + $0x48] sm:$0xff] %vm3396, %v3389
  %3407 = vst.msk [vmem:[#allocation3 + $0x50] sm:$0xff] %vm3396, %v3390
  %3408 = vst.msk [vmem:[#allocation3 + $0x58] sm:$0xff] %vm3396, %v3391
  %3409 = vst.msk [vmem:[#allocation3 + $0x60] sm:$0xff] %vm3396, %v3392
  %3410 = vst.msk [vmem:[#allocation3 + $0x68] sm:$0xff] %vm3396, %v3393
  %3411 = vst.msk [vmem:[#allocation3 + $0x70] sm:$0xff] %vm3396, %v3394
  %3412 = vst.msk [vmem:[#allocation3 + $0x78] sm:$0xff] %vm3396, %v3395
  %vm3413 = vcmask 31768
  %3414 = vst.msk [vmem:[#allocation2] sm:$0xff] %vm3413, %v2827
  %3415 = vst.msk [vmem:[#allocation2 + $0x8] sm:$0xff] %vm3413, %v2828
  %3416 = vst.msk [vmem:[#allocation2 + $0x10] sm:$0xff] %vm3413, %v2829
  %3417 = vst.msk [vmem:[#allocation2 + $0x18] sm:$0xff] %vm3413, %v2830
  %3418 = vst.msk [vmem:[#allocation2 + $0x20] sm:$0xff] %vm3413, %v2831
  %3419 = vst.msk [vmem:[#allocation2 + $0x28] sm:$0xff] %vm3413, %v2832
  %3420 = vst.msk [vmem:[#allocation2 + $0x30] sm:$0xff] %vm3413, %v2833
  %3421 = vst.msk [vmem:[#allocation2 + $0x38] sm:$0xff] %vm3413, %v2834
  %3422 = vst.msk [vmem:[#allocation2 + $0x40] sm:$0xff] %vm3413, %v2835
  %3423 = vst.msk [vmem:[#allocation2 + $0x48] sm:$0xff] %vm3413, %v2836
  %3424 = vst.msk [vmem:[#allocation2 + $0x50] sm:$0xff] %vm3413, %v2837
  %3425 = vst.msk [vmem:[#allocation2 + $0x58] sm:$0xff] %vm3413, %v2838
  %3426 = vst.msk [vmem:[#allocation2 + $0x60] sm:$0xff] %vm3413, %v2839
  %3427 = vst.msk [vmem:[#allocation2 + $0x68] sm:$0xff] %vm3413, %v2840
  %3428 = vst.msk [vmem:[#allocation2 + $0x70] sm:$0xff] %vm3413, %v2841
  %3429 = vst.msk [vmem:[#allocation2 + $0x78] sm:$0xff] %vm3413, %v2842
  // Predicated region
  $region22: #{gat_forward.3} parent=0 // pred_check
    %p3430 = pneg %p20
  $region23: #{gat_forward.3} parent=0 // pred_check_branch
    %3432 = sbr.rel (%p3430) target = $region25
  $region24: #{gat_forward.3} parent=0 // pred_region
    %v3433 = vld [vmem:[#allocation3] sm:$0xff]
    %v3434 = vld [vmem:[#allocation3 + $0x8] sm:$0xff]
    %v3435 = vld [vmem:[#allocation3 + $0x10] sm:$0xff]
    %v3436 = vld [vmem:[#allocation3 + $0x18] sm:$0xff]
    %v3437 = vld [vmem:[#allocation3 + $0x20] sm:$0xff]
    %v3438 = vld [vmem:[#allocation3 + $0x28] sm:$0xff]
    %v3439 = vld [vmem:[#allocation3 + $0x30] sm:$0xff]
    %v3440 = vld [vmem:[#allocation3 + $0x38] sm:$0xff]
    %v3441 = vld [vmem:[#allocation3 + $0x40] sm:$0xff]
    %v3442 = vld [vmem:[#allocation3 + $0x48] sm:$0xff]
    %v3443 = vld [vmem:[#allocation3 + $0x50] sm:$0xff]
    %v3444 = vld [vmem:[#allocation3 + $0x58] sm:$0xff]
    %v3445 = vld [vmem:[#allocation3 + $0x60] sm:$0xff]
    %v3446 = vld [vmem:[#allocation3 + $0x68] sm:$0xff]
    %v3447 = vld [vmem:[#allocation3 + $0x70] sm:$0xff]
    %v3448 = vld [vmem:[#allocation3 + $0x78] sm:$0xff]
    %v3449 = vld [vmem:[#allocation2] sm:$0xff]
    %v3450 = vld [vmem:[#allocation2 + $0x8] sm:$0xff]
    %v3451 = vld [vmem:[#allocation2 + $0x10] sm:$0xff]
    %v3452 = vld [vmem:[#allocation2 + $0x18] sm:$0xff]
    %v3453 = vld [vmem:[#allocation2 + $0x20] sm:$0xff]
    %v3454 = vld [vmem:[#allocation2 + $0x28] sm:$0xff]
    %v3455 = vld [vmem:[#allocation2 + $0x30] sm:$0xff]
    %v3456 = vld [vmem:[#allocation2 + $0x38] sm:$0xff]
    %v3457 = vld [vmem:[#allocation2 + $0x40] sm:$0xff]
    %v3458 = vld [vmem:[#allocation2 + $0x48] sm:$0xff]
    %v3459 = vld [vmem:[#allocation2 + $0x50] sm:$0xff]
    %v3460 = vld [vmem:[#allocation2 + $0x58] sm:$0xff]
    %v3461 = vld [vmem:[#allocation2 + $0x60] sm:$0xff]
    %v3462 = vld [vmem:[#allocation2 + $0x68] sm:$0xff]
    %v3463 = vld [vmem:[#allocation2 + $0x70] sm:$0xff]
    %v3464 = vld [vmem:[#allocation2 + $0x78] sm:$0xff]
    %vm3465 = vcmp.gt.f32.partialorder %v3449, -5e+29
    %vm3466 = vcmp.gt.f32.partialorder %v3450, -5e+29
    %vm3467 = vcmp.gt.f32.partialorder %v3451, -5e+29
    %vm3468 = vcmp.gt.f32.partialorder %v3452, -5e+29
    %vm3469 = vcmp.gt.f32.partialorder %v3453, -5e+29
    %vm3470 = vcmp.gt.f32.partialorder %v3454, -5e+29
    %vm3471 = vcmp.gt.f32.partialorder %v3455, -5e+29
    %vm3472 = vcmp.gt.f32.partialorder %v3456, -5e+29
    %vm3473 = vcmp.gt.f32.partialorder %v3457, -5e+29
    %vm3474 = vcmp.gt.f32.partialorder %v3458, -5e+29
    %vm3475 = vcmp.gt.f32.partialorder %v3459, -5e+29
    %vm3476 = vcmp.gt.f32.partialorder %v3460, -5e+29
    %vm3477 = vcmp.gt.f32.partialorder %v3461, -5e+29
    %vm3478 = vcmp.gt.f32.partialorder %v3462, -5e+29
    %vm3479 = vcmp.gt.f32.partialorder %v3463, -5e+29
    %vm3480 = vcmp.gt.f32.partialorder %v3464, -5e+29
    %vm3481 = vcmp.gt.f32.partialorder %v3433, 0.0
    %vm3482 = vcmp.gt.f32.partialorder %v3434, 0.0
    %vm3483 = vcmp.gt.f32.partialorder %v3435, 0.0
    %vm3484 = vcmp.gt.f32.partialorder %v3436, 0.0
    %vm3485 = vcmp.gt.f32.partialorder %v3437, 0.0
    %vm3486 = vcmp.gt.f32.partialorder %v3438, 0.0
    %vm3487 = vcmp.gt.f32.partialorder %v3439, 0.0
    %vm3488 = vcmp.gt.f32.partialorder %v3440, 0.0
    %vm3489 = vcmp.gt.f32.partialorder %v3441, 0.0
    %vm3490 = vcmp.gt.f32.partialorder %v3442, 0.0
    %vm3491 = vcmp.gt.f32.partialorder %v3443, 0.0
    %vm3492 = vcmp.gt.f32.partialorder %v3444, 0.0
    %vm3493 = vcmp.gt.f32.partialorder %v3445, 0.0
    %vm3494 = vcmp.gt.f32.partialorder %v3446, 0.0
    %vm3495 = vcmp.gt.f32.partialorder %v3447, 0.0
    %vm3496 = vcmp.gt.f32.partialorder %v3448, 0.0
    %v3497 = vsel %vm3481, %v3433, 1.0
    %v3498 = vsel %vm3482, %v3434, 1.0
    %v3499 = vsel %vm3483, %v3435, 1.0
    %v3500 = vsel %vm3484, %v3436, 1.0
    %v3501 = vsel %vm3485, %v3437, 1.0
    %v3502 = vsel %vm3486, %v3438, 1.0
    %v3503 = vsel %vm3487, %v3439, 1.0
    %v3504 = vsel %vm3488, %v3440, 1.0
    %v3505 = vsel %vm3489, %v3441, 1.0
    %v3506 = vsel %vm3490, %v3442, 1.0
    %v3507 = vsel %vm3491, %v3443, 1.0
    %v3508 = vsel %vm3492, %v3444, 1.0
    %v3509 = vsel %vm3493, %v3445, 1.0
    %v3510 = vsel %vm3494, %v3446, 1.0
    %v3511 = vsel %vm3495, %v3447, 1.0
    %v3512 = vsel %vm3496, %v3448, 1.0
    %v3513 = vrcp.pop %v3497
    %v3514 = vrcp.pop %v3498
    %v3515 = vrcp.pop %v3499
    %v3516 = vrcp.pop %v3500
    %v3517 = vrcp.pop %v3501
    %v3518 = vrcp.pop %v3502
    %v3519 = vrcp.pop %v3503
    %v3520 = vrcp.pop %v3504
    %v3521 = vrcp.pop %v3505
    %v3522 = vrcp.pop %v3506
    %v3523 = vrcp.pop %v3507
    %v3524 = vrcp.pop %v3508
    %v3525 = vrcp.pop %v3509
    %v3526 = vrcp.pop %v3510
    %v3527 = vrcp.pop %v3511
    %v3528 = vrcp.pop %v3512
    %3530 = vset.pattern.permute.xlu0 8
    %3531 = vperm.xlu0 %3530, %v3513
    %v3532 = vpop.permute.xlu0 %3531
    %3535 = vset.pattern.permute.xlu0 8
    %3536 = vperm.xlu0 %3535, %v3514
    %v3537 = vpop.permute.xlu0 %3536
    %3540 = vset.pattern.permute.xlu0 8
    %3541 = vperm.xlu0 %3540, %v3515
    %v3542 = vpop.permute.xlu0 %3541
    %3545 = vset.pattern.permute.xlu0 8
    %3546 = vperm.xlu0 %3545, %v3516
    %v3547 = vpop.permute.xlu0 %3546
    %3550 = vset.pattern.permute.xlu0 8
    %3551 = vperm.xlu0 %3550, %v3517
    %v3552 = vpop.permute.xlu0 %3551
    %3555 = vset.pattern.permute.xlu0 8
    %3556 = vperm.xlu0 %3555, %v3518
    %v3557 = vpop.permute.xlu0 %3556
    %3560 = vset.pattern.permute.xlu0 8
    %3561 = vperm.xlu0 %3560, %v3519
    %v3562 = vpop.permute.xlu0 %3561
    %3565 = vset.pattern.permute.xlu0 8
    %3566 = vperm.xlu0 %3565, %v3520
    %v3567 = vpop.permute.xlu0 %3566
    %3570 = vset.pattern.permute.xlu0 8
    %3571 = vperm.xlu0 %3570, %v3521
    %v3572 = vpop.permute.xlu0 %3571
    %3575 = vset.pattern.permute.xlu0 8
    %3576 = vperm.xlu0 %3575, %v3522
    %v3577 = vpop.permute.xlu0 %3576
    %3580 = vset.pattern.permute.xlu0 8
    %3581 = vperm.xlu0 %3580, %v3523
    %v3582 = vpop.permute.xlu0 %3581
    %3585 = vset.pattern.permute.xlu0 8
    %3586 = vperm.xlu0 %3585, %v3524
    %v3587 = vpop.permute.xlu0 %3586
    %3590 = vset.pattern.permute.xlu0 8
    %3591 = vperm.xlu0 %3590, %v3525
    %v3592 = vpop.permute.xlu0 %3591
    %3595 = vset.pattern.permute.xlu0 8
    %3596 = vperm.xlu0 %3595, %v3526
    %v3597 = vpop.permute.xlu0 %3596
    %3600 = vset.pattern.permute.xlu0 8
    %3601 = vperm.xlu0 %3600, %v3527
    %v3602 = vpop.permute.xlu0 %3601
    %3605 = vset.pattern.permute.xlu0 8
    %3606 = vperm.xlu0 %3605, %v3528
    %v3607 = vpop.permute.xlu0 %3606
    %v3609 = vmul.f32 %v3433, %v3532
    %v3610 = vmul.f32 %v3434, %v3537
    %v3611 = vmul.f32 %v3435, %v3542
    %v3612 = vmul.f32 %v3436, %v3547
    %v3613 = vmul.f32 %v3437, %v3552
    %v3614 = vmul.f32 %v3438, %v3557
    %v3615 = vmul.f32 %v3439, %v3562
    %v3616 = vmul.f32 %v3440, %v3567
    %v3617 = vmul.f32 %v3441, %v3572
    %v3618 = vmul.f32 %v3442, %v3577
    %v3619 = vmul.f32 %v3443, %v3582
    %v3620 = vmul.f32 %v3444, %v3587
    %v3621 = vmul.f32 %v3445, %v3592
    %v3622 = vmul.f32 %v3446, %v3597
    %v3623 = vmul.f32 %v3447, %v3602
    %v3624 = vmul.f32 %v3448, %v3607
    %v3625 = vsel %vm3465, 1, 0
    %v3626 = vsel %vm3466, 1, 0
    %v3627 = vsel %vm3467, 1, 0
    %v3628 = vsel %vm3468, 1, 0
    %v3629 = vsel %vm3469, 1, 0
    %v3630 = vsel %vm3470, 1, 0
    %v3631 = vsel %vm3471, 1, 0
    %v3632 = vsel %vm3472, 1, 0
    %v3633 = vsel %vm3473, 1, 0
    %v3634 = vsel %vm3474, 1, 0
    %v3635 = vsel %vm3475, 1, 0
    %v3636 = vsel %vm3476, 1, 0
    %v3637 = vsel %vm3477, 1, 0
    %v3638 = vsel %vm3478, 1, 0
    %v3639 = vsel %vm3479, 1, 0
    %v3640 = vsel %vm3480, 1, 0
    %3641 = vset.pattern.permute.xlu0 0
    %3642 = vperm.xlu0 %3641, %v3625
    %v3643 = vpop.permute.xlu0 %3642
    %3644 = vset.pattern.permute.xlu0 0
    %3645 = vperm.xlu0 %3644, %v3626
    %v3646 = vpop.permute.xlu0 %3645
    %3647 = vset.pattern.permute.xlu0 0
    %3648 = vperm.xlu0 %3647, %v3627
    %v3649 = vpop.permute.xlu0 %3648
    %3650 = vset.pattern.permute.xlu0 0
    %3651 = vperm.xlu0 %3650, %v3628
    %v3652 = vpop.permute.xlu0 %3651
    %3653 = vset.pattern.permute.xlu0 0
    %3654 = vperm.xlu0 %3653, %v3629
    %v3655 = vpop.permute.xlu0 %3654
    %3656 = vset.pattern.permute.xlu0 0
    %3657 = vperm.xlu0 %3656, %v3630
    %v3658 = vpop.permute.xlu0 %3657
    %3659 = vset.pattern.permute.xlu0 0
    %3660 = vperm.xlu0 %3659, %v3631
    %v3661 = vpop.permute.xlu0 %3660
    %3662 = vset.pattern.permute.xlu0 0
    %3663 = vperm.xlu0 %3662, %v3632
    %v3664 = vpop.permute.xlu0 %3663
    %3665 = vset.pattern.permute.xlu0 0
    %3666 = vperm.xlu0 %3665, %v3633
    %v3667 = vpop.permute.xlu0 %3666
    %3668 = vset.pattern.permute.xlu0 0
    %3669 = vperm.xlu0 %3668, %v3634
    %v3670 = vpop.permute.xlu0 %3669
    %3671 = vset.pattern.permute.xlu0 0
    %3672 = vperm.xlu0 %3671, %v3635
    %v3673 = vpop.permute.xlu0 %3672
    %3674 = vset.pattern.permute.xlu0 0
    %3675 = vperm.xlu0 %3674, %v3636
    %v3676 = vpop.permute.xlu0 %3675
    %3677 = vset.pattern.permute.xlu0 0
    %3678 = vperm.xlu0 %3677, %v3637
    %v3679 = vpop.permute.xlu0 %3678
    %3680 = vset.pattern.permute.xlu0 0
    %3681 = vperm.xlu0 %3680, %v3638
    %v3682 = vpop.permute.xlu0 %3681
    %3683 = vset.pattern.permute.xlu0 0
    %3684 = vperm.xlu0 %3683, %v3639
    %v3685 = vpop.permute.xlu0 %3684
    %3686 = vset.pattern.permute.xlu0 0
    %3687 = vperm.xlu0 %3686, %v3640
    %v3688 = vpop.permute.xlu0 %3687
    %vm3689 = vcmp.eq.s32.totalorder %v3643, 1
    %vm3690 = vcmp.eq.s32.totalorder %v3646, 1
    %vm3691 = vcmp.eq.s32.totalorder %v3649, 1
    %vm3692 = vcmp.eq.s32.totalorder %v3652, 1
    %vm3693 = vcmp.eq.s32.totalorder %v3655, 1
    %vm3694 = vcmp.eq.s32.totalorder %v3658, 1
    %vm3695 = vcmp.eq.s32.totalorder %v3661, 1
    %vm3696 = vcmp.eq.s32.totalorder %v3664, 1
    %vm3697 = vcmp.eq.s32.totalorder %v3667, 1
    %vm3698 = vcmp.eq.s32.totalorder %v3670, 1
    %vm3699 = vcmp.eq.s32.totalorder %v3673, 1
    %vm3700 = vcmp.eq.s32.totalorder %v3676, 1
    %vm3701 = vcmp.eq.s32.totalorder %v3679, 1
    %vm3702 = vcmp.eq.s32.totalorder %v3682, 1
    %vm3703 = vcmp.eq.s32.totalorder %v3685, 1
    %vm3704 = vcmp.eq.s32.totalorder %v3688, 1
    %v3705 = vsel %vm3689, %v3609, 0.0
    %v3706 = vsel %vm3690, %v3610, 0.0
    %v3707 = vsel %vm3691, %v3611, 0.0
    %v3708 = vsel %vm3692, %v3612, 0.0
    %v3709 = vsel %vm3693, %v3613, 0.0
    %v3710 = vsel %vm3694, %v3614, 0.0
    %v3711 = vsel %vm3695, %v3615, 0.0
    %v3712 = vsel %vm3696, %v3616, 0.0
    %v3713 = vsel %vm3697, %v3617, 0.0
    %v3714 = vsel %vm3698, %v3618, 0.0
    %v3715 = vsel %vm3699, %v3619, 0.0
    %v3716 = vsel %vm3700, %v3620, 0.0
    %v3717 = vsel %vm3701, %v3621, 0.0
    %v3718 = vsel %vm3702, %v3622, 0.0
    %v3719 = vsel %vm3703, %v3623, 0.0
    %v3720 = vsel %vm3704, %v3624, 0.0
    %vm3721 = vcmask 64512
    %3722 = vst.msk [vmem:[%s4] sm:$0xff] %vm3721, %v3705
    %3723 = vst.msk [vmem:[%s4 + $0x8] sm:$0xff] %vm3721, %v3706
    %3724 = vst.msk [vmem:[%s4 + $0x10] sm:$0xff] %vm3721, %v3707
    %3725 = vst.msk [vmem:[%s4 + $0x18] sm:$0xff] %vm3721, %v3708
    %3726 = vst.msk [vmem:[%s4 + $0x20] sm:$0xff] %vm3721, %v3709
    %3727 = vst.msk [vmem:[%s4 + $0x28] sm:$0xff] %vm3721, %v3710
    %3728 = vst.msk [vmem:[%s4 + $0x30] sm:$0xff] %vm3721, %v3711
    %3729 = vst.msk [vmem:[%s4 + $0x38] sm:$0xff] %vm3721, %v3712
    %3730 = vst.msk [vmem:[%s4 + $0x40] sm:$0xff] %vm3721, %v3713
    %3731 = vst.msk [vmem:[%s4 + $0x48] sm:$0xff] %vm3721, %v3714
    %3732 = vst.msk [vmem:[%s4 + $0x50] sm:$0xff] %vm3721, %v3715
    %3733 = vst.msk [vmem:[%s4 + $0x58] sm:$0xff] %vm3721, %v3716
    %3734 = vst.msk [vmem:[%s4 + $0x60] sm:$0xff] %vm3721, %v3717
    %3735 = vst.msk [vmem:[%s4 + $0x68] sm:$0xff] %vm3721, %v3718
    %3736 = vst.msk [vmem:[%s4 + $0x70] sm:$0xff] %vm3721, %v3719
    %3737 = vst.msk [vmem:[%s4 + $0x78] sm:$0xff] %vm3721, %v3720
    %v3738 = vld [vmem:[#allocation3] sm:$0xff]
    %v3739 = vld [vmem:[#allocation3 + $0x8] sm:$0xff]
    %v3740 = vld [vmem:[#allocation3 + $0x10] sm:$0xff]
    %v3741 = vld [vmem:[#allocation3 + $0x18] sm:$0xff]
    %v3742 = vld [vmem:[#allocation3 + $0x20] sm:$0xff]
    %v3743 = vld [vmem:[#allocation3 + $0x28] sm:$0xff]
    %v3744 = vld [vmem:[#allocation3 + $0x30] sm:$0xff]
    %v3745 = vld [vmem:[#allocation3 + $0x38] sm:$0xff]
    %v3746 = vld [vmem:[#allocation3 + $0x40] sm:$0xff]
    %v3747 = vld [vmem:[#allocation3 + $0x48] sm:$0xff]
    %v3748 = vld [vmem:[#allocation3 + $0x50] sm:$0xff]
    %v3749 = vld [vmem:[#allocation3 + $0x58] sm:$0xff]
    %v3750 = vld [vmem:[#allocation3 + $0x60] sm:$0xff]
    %v3751 = vld [vmem:[#allocation3 + $0x68] sm:$0xff]
    %v3752 = vld [vmem:[#allocation3 + $0x70] sm:$0xff]
    %v3753 = vld [vmem:[#allocation3 + $0x78] sm:$0xff]
    %v3754 = vld [vmem:[#allocation2] sm:$0xff]
    %v3755 = vld [vmem:[#allocation2 + $0x8] sm:$0xff]
    %v3756 = vld [vmem:[#allocation2 + $0x10] sm:$0xff]
    %v3757 = vld [vmem:[#allocation2 + $0x18] sm:$0xff]
    %v3758 = vld [vmem:[#allocation2 + $0x20] sm:$0xff]
    %v3759 = vld [vmem:[#allocation2 + $0x28] sm:$0xff]
    %v3760 = vld [vmem:[#allocation2 + $0x30] sm:$0xff]
    %v3761 = vld [vmem:[#allocation2 + $0x38] sm:$0xff]
    %v3762 = vld [vmem:[#allocation2 + $0x40] sm:$0xff]
    %v3763 = vld [vmem:[#allocation2 + $0x48] sm:$0xff]
    %v3764 = vld [vmem:[#allocation2 + $0x50] sm:$0xff]
    %v3765 = vld [vmem:[#allocation2 + $0x58] sm:$0xff]
    %v3766 = vld [vmem:[#allocation2 + $0x60] sm:$0xff]
    %v3767 = vld [vmem:[#allocation2 + $0x68] sm:$0xff]
    %v3768 = vld [vmem:[#allocation2 + $0x70] sm:$0xff]
    %v3769 = vld [vmem:[#allocation2 + $0x78] sm:$0xff]
    %vm3770 = vcmp.gt.f32.partialorder %v3754, -5e+29
    %vm3771 = vcmp.gt.f32.partialorder %v3755, -5e+29
    %vm3772 = vcmp.gt.f32.partialorder %v3756, -5e+29
    %vm3773 = vcmp.gt.f32.partialorder %v3757, -5e+29
    %vm3774 = vcmp.gt.f32.partialorder %v3758, -5e+29
    %vm3775 = vcmp.gt.f32.partialorder %v3759, -5e+29
    %vm3776 = vcmp.gt.f32.partialorder %v3760, -5e+29
    %vm3777 = vcmp.gt.f32.partialorder %v3761, -5e+29
    %vm3778 = vcmp.gt.f32.partialorder %v3762, -5e+29
    %vm3779 = vcmp.gt.f32.partialorder %v3763, -5e+29
    %vm3780 = vcmp.gt.f32.partialorder %v3764, -5e+29
    %vm3781 = vcmp.gt.f32.partialorder %v3765, -5e+29
    %vm3782 = vcmp.gt.f32.partialorder %v3766, -5e+29
    %vm3783 = vcmp.gt.f32.partialorder %v3767, -5e+29
    %vm3784 = vcmp.gt.f32.partialorder %v3768, -5e+29
    %vm3785 = vcmp.gt.f32.partialorder %v3769, -5e+29
    %vm3786 = vcmp.gt.f32.partialorder %v3738, 0.0
    %vm3787 = vcmp.gt.f32.partialorder %v3739, 0.0
    %vm3788 = vcmp.gt.f32.partialorder %v3740, 0.0
    %vm3789 = vcmp.gt.f32.partialorder %v3741, 0.0
    %vm3790 = vcmp.gt.f32.partialorder %v3742, 0.0
    %vm3791 = vcmp.gt.f32.partialorder %v3743, 0.0
    %vm3792 = vcmp.gt.f32.partialorder %v3744, 0.0
    %vm3793 = vcmp.gt.f32.partialorder %v3745, 0.0
    %vm3794 = vcmp.gt.f32.partialorder %v3746, 0.0
    %vm3795 = vcmp.gt.f32.partialorder %v3747, 0.0
    %vm3796 = vcmp.gt.f32.partialorder %v3748, 0.0
    %vm3797 = vcmp.gt.f32.partialorder %v3749, 0.0
    %vm3798 = vcmp.gt.f32.partialorder %v3750, 0.0
    %vm3799 = vcmp.gt.f32.partialorder %v3751, 0.0
    %vm3800 = vcmp.gt.f32.partialorder %v3752, 0.0
    %vm3801 = vcmp.gt.f32.partialorder %v3753, 0.0
    %v3802 = vsel %vm3786, %v3738, 1.0
    %v3803 = vsel %vm3787, %v3739, 1.0
    %v3804 = vsel %vm3788, %v3740, 1.0
    %v3805 = vsel %vm3789, %v3741, 1.0
    %v3806 = vsel %vm3790, %v3742, 1.0
    %v3807 = vsel %vm3791, %v3743, 1.0
    %v3808 = vsel %vm3792, %v3744, 1.0
    %v3809 = vsel %vm3793, %v3745, 1.0
    %v3810 = vsel %vm3794, %v3746, 1.0
    %v3811 = vsel %vm3795, %v3747, 1.0
    %v3812 = vsel %vm3796, %v3748, 1.0
    %v3813 = vsel %vm3797, %v3749, 1.0
    %v3814 = vsel %vm3798, %v3750, 1.0
    %v3815 = vsel %vm3799, %v3751, 1.0
    %v3816 = vsel %vm3800, %v3752, 1.0
    %v3817 = vsel %vm3801, %v3753, 1.0
    %v3818 = vrcp.pop %v3802
    %v3819 = vrcp.pop %v3803
    %v3820 = vrcp.pop %v3804
    %v3821 = vrcp.pop %v3805
    %v3822 = vrcp.pop %v3806
    %v3823 = vrcp.pop %v3807
    %v3824 = vrcp.pop %v3808
    %v3825 = vrcp.pop %v3809
    %v3826 = vrcp.pop %v3810
    %v3827 = vrcp.pop %v3811
    %v3828 = vrcp.pop %v3812
    %v3829 = vrcp.pop %v3813
    %v3830 = vrcp.pop %v3814
    %v3831 = vrcp.pop %v3815
    %v3832 = vrcp.pop %v3816
    %v3833 = vrcp.pop %v3817
    %3835 = vset.pattern.permute.xlu0 17
    %3836 = vperm.xlu0 %3835, %v3818
    %v3837 = vpop.permute.xlu0 %3836
    %3840 = vset.pattern.permute.xlu0 17
    %3841 = vperm.xlu0 %3840, %v3819
    %v3842 = vpop.permute.xlu0 %3841
    %3845 = vset.pattern.permute.xlu0 17
    %3846 = vperm.xlu0 %3845, %v3820
    %v3847 = vpop.permute.xlu0 %3846
    %3850 = vset.pattern.permute.xlu0 17
    %3851 = vperm.xlu0 %3850, %v3821
    %v3852 = vpop.permute.xlu0 %3851
    %3855 = vset.pattern.permute.xlu0 17
    %3856 = vperm.xlu0 %3855, %v3822
    %v3857 = vpop.permute.xlu0 %3856
    %3860 = vset.pattern.permute.xlu0 17
    %3861 = vperm.xlu0 %3860, %v3823
    %v3862 = vpop.permute.xlu0 %3861
    %3865 = vset.pattern.permute.xlu0 17
    %3866 = vperm.xlu0 %3865, %v3824
    %v3867 = vpop.permute.xlu0 %3866
    %3870 = vset.pattern.permute.xlu0 17
    %3871 = vperm.xlu0 %3870, %v3825
    %v3872 = vpop.permute.xlu0 %3871
    %3875 = vset.pattern.permute.xlu0 17
    %3876 = vperm.xlu0 %3875, %v3826
    %v3877 = vpop.permute.xlu0 %3876
    %3880 = vset.pattern.permute.xlu0 17
    %3881 = vperm.xlu0 %3880, %v3827
    %v3882 = vpop.permute.xlu0 %3881
    %3885 = vset.pattern.permute.xlu0 17
    %3886 = vperm.xlu0 %3885, %v3828
    %v3887 = vpop.permute.xlu0 %3886
    %3890 = vset.pattern.permute.xlu0 17
    %3891 = vperm.xlu0 %3890, %v3829
    %v3892 = vpop.permute.xlu0 %3891
    %3895 = vset.pattern.permute.xlu0 17
    %3896 = vperm.xlu0 %3895, %v3830
    %v3897 = vpop.permute.xlu0 %3896
    %3900 = vset.pattern.permute.xlu0 17
    %3901 = vperm.xlu0 %3900, %v3831
    %v3902 = vpop.permute.xlu0 %3901
    %3905 = vset.pattern.permute.xlu0 17
    %3906 = vperm.xlu0 %3905, %v3832
    %v3907 = vpop.permute.xlu0 %3906
    %3910 = vset.pattern.permute.xlu0 17
    %3911 = vperm.xlu0 %3910, %v3833
    %v3912 = vpop.permute.xlu0 %3911
    %v3914 = vmul.f32 %v3738, %v3837
    %v3915 = vmul.f32 %v3739, %v3842
    %v3916 = vmul.f32 %v3740, %v3847
    %v3917 = vmul.f32 %v3741, %v3852
    %v3918 = vmul.f32 %v3742, %v3857
    %v3919 = vmul.f32 %v3743, %v3862
    %v3920 = vmul.f32 %v3744, %v3867
    %v3921 = vmul.f32 %v3745, %v3872
    %v3922 = vmul.f32 %v3746, %v3877
    %v3923 = vmul.f32 %v3747, %v3882
    %v3924 = vmul.f32 %v3748, %v3887
    %v3925 = vmul.f32 %v3749, %v3892
    %v3926 = vmul.f32 %v3750, %v3897
    %v3927 = vmul.f32 %v3751, %v3902
    %v3928 = vmul.f32 %v3752, %v3907
    %v3929 = vmul.f32 %v3753, %v3912
    %v3930 = vsel %vm3770, 1, 0
    %v3931 = vsel %vm3771, 1, 0
    %v3932 = vsel %vm3772, 1, 0
    %v3933 = vsel %vm3773, 1, 0
    %v3934 = vsel %vm3774, 1, 0
    %v3935 = vsel %vm3775, 1, 0
    %v3936 = vsel %vm3776, 1, 0
    %v3937 = vsel %vm3777, 1, 0
    %v3938 = vsel %vm3778, 1, 0
    %v3939 = vsel %vm3779, 1, 0
    %v3940 = vsel %vm3780, 1, 0
    %v3941 = vsel %vm3781, 1, 0
    %v3942 = vsel %vm3782, 1, 0
    %v3943 = vsel %vm3783, 1, 0
    %v3944 = vsel %vm3784, 1, 0
    %v3945 = vsel %vm3785, 1, 0
    %3946 = vset.pattern.permute.xlu0 1
    %3947 = vperm.xlu0 %3946, %v3930
    %v3948 = vpop.permute.xlu0 %3947
    %3949 = vset.pattern.permute.xlu0 1
    %3950 = vperm.xlu0 %3949, %v3931
    %v3951 = vpop.permute.xlu0 %3950
    %3952 = vset.pattern.permute.xlu0 1
    %3953 = vperm.xlu0 %3952, %v3932
    %v3954 = vpop.permute.xlu0 %3953
    %3955 = vset.pattern.permute.xlu0 1
    %3956 = vperm.xlu0 %3955, %v3933
    %v3957 = vpop.permute.xlu0 %3956
    %3958 = vset.pattern.permute.xlu0 1
    %3959 = vperm.xlu0 %3958, %v3934
    %v3960 = vpop.permute.xlu0 %3959
    %3961 = vset.pattern.permute.xlu0 1
    %3962 = vperm.xlu0 %3961, %v3935
    %v3963 = vpop.permute.xlu0 %3962
    %3964 = vset.pattern.permute.xlu0 1
    %3965 = vperm.xlu0 %3964, %v3936
    %v3966 = vpop.permute.xlu0 %3965
    %3967 = vset.pattern.permute.xlu0 1
    %3968 = vperm.xlu0 %3967, %v3937
    %v3969 = vpop.permute.xlu0 %3968
    %3970 = vset.pattern.permute.xlu0 1
    %3971 = vperm.xlu0 %3970, %v3938
    %v3972 = vpop.permute.xlu0 %3971
    %3973 = vset.pattern.permute.xlu0 1
    %3974 = vperm.xlu0 %3973, %v3939
    %v3975 = vpop.permute.xlu0 %3974
    %3976 = vset.pattern.permute.xlu0 1
    %3977 = vperm.xlu0 %3976, %v3940
    %v3978 = vpop.permute.xlu0 %3977
    %3979 = vset.pattern.permute.xlu0 1
    %3980 = vperm.xlu0 %3979, %v3941
    %v3981 = vpop.permute.xlu0 %3980
    %3982 = vset.pattern.permute.xlu0 1
    %3983 = vperm.xlu0 %3982, %v3942
    %v3984 = vpop.permute.xlu0 %3983
    %3985 = vset.pattern.permute.xlu0 1
    %3986 = vperm.xlu0 %3985, %v3943
    %v3987 = vpop.permute.xlu0 %3986
    %3988 = vset.pattern.permute.xlu0 1
    %3989 = vperm.xlu0 %3988, %v3944
    %v3990 = vpop.permute.xlu0 %3989
    %3991 = vset.pattern.permute.xlu0 1
    %3992 = vperm.xlu0 %3991, %v3945
    %v3993 = vpop.permute.xlu0 %3992
    %vm3994 = vcmp.eq.s32.totalorder %v3948, 1
    %vm3995 = vcmp.eq.s32.totalorder %v3951, 1
    %vm3996 = vcmp.eq.s32.totalorder %v3954, 1
    %vm3997 = vcmp.eq.s32.totalorder %v3957, 1
    %vm3998 = vcmp.eq.s32.totalorder %v3960, 1
    %vm3999 = vcmp.eq.s32.totalorder %v3963, 1
    %vm4000 = vcmp.eq.s32.totalorder %v3966, 1
    %vm4001 = vcmp.eq.s32.totalorder %v3969, 1
    %vm4002 = vcmp.eq.s32.totalorder %v3972, 1
    %vm4003 = vcmp.eq.s32.totalorder %v3975, 1
    %vm4004 = vcmp.eq.s32.totalorder %v3978, 1
    %vm4005 = vcmp.eq.s32.totalorder %v3981, 1
    %vm4006 = vcmp.eq.s32.totalorder %v3984, 1
    %vm4007 = vcmp.eq.s32.totalorder %v3987, 1
    %vm4008 = vcmp.eq.s32.totalorder %v3990, 1
    %vm4009 = vcmp.eq.s32.totalorder %v3993, 1
    %v4010 = vsel %vm3994, %v3914, 0.0
    %v4011 = vsel %vm3995, %v3915, 0.0
    %v4012 = vsel %vm3996, %v3916, 0.0
    %v4013 = vsel %vm3997, %v3917, 0.0
    %v4014 = vsel %vm3998, %v3918, 0.0
    %v4015 = vsel %vm3999, %v3919, 0.0
    %v4016 = vsel %vm4000, %v3920, 0.0
    %v4017 = vsel %vm4001, %v3921, 0.0
    %v4018 = vsel %vm4002, %v3922, 0.0
    %v4019 = vsel %vm4003, %v3923, 0.0
    %v4020 = vsel %vm4004, %v3924, 0.0
    %v4021 = vsel %vm4005, %v3925, 0.0
    %v4022 = vsel %vm4006, %v3926, 0.0
    %v4023 = vsel %vm4007, %v3927, 0.0
    %v4024 = vsel %vm4008, %v3928, 0.0
    %v4025 = vsel %vm4009, %v3929, 0.0
    %4042 = vrot.lane.b32.xlu0 %v4010, 127
    %v4043 = vpop.permute.xlu0 %4042
    %4044 = vrot.lane.b32.xlu0 %v4011, 127
    %v4045 = vpop.permute.xlu0 %4044
    %4046 = vrot.lane.b32.xlu0 %v4012, 127
    %v4047 = vpop.permute.xlu0 %4046
    %4048 = vrot.lane.b32.xlu0 %v4013, 127
    %v4049 = vpop.permute.xlu0 %4048
    %4050 = vrot.lane.b32.xlu0 %v4014, 127
    %v4051 = vpop.permute.xlu0 %4050
    %4052 = vrot.lane.b32.xlu0 %v4015, 127
    %v4053 = vpop.permute.xlu0 %4052
    %4054 = vrot.lane.b32.xlu0 %v4016, 127
    %v4055 = vpop.permute.xlu0 %4054
    %4056 = vrot.lane.b32.xlu0 %v4017, 127
    %v4057 = vpop.permute.xlu0 %4056
    %4058 = vrot.lane.b32.xlu0 %v4018, 127
    %v4059 = vpop.permute.xlu0 %4058
    %4060 = vrot.lane.b32.xlu0 %v4019, 127
    %v4061 = vpop.permute.xlu0 %4060
    %4062 = vrot.lane.b32.xlu0 %v4020, 127
    %v4063 = vpop.permute.xlu0 %4062
    %4064 = vrot.lane.b32.xlu0 %v4021, 127
    %v4065 = vpop.permute.xlu0 %4064
    %4066 = vrot.lane.b32.xlu0 %v4022, 127
    %v4067 = vpop.permute.xlu0 %4066
    %4068 = vrot.lane.b32.xlu0 %v4023, 127
    %v4069 = vpop.permute.xlu0 %4068
    %4070 = vrot.lane.b32.xlu0 %v4024, 127
    %v4071 = vpop.permute.xlu0 %4070
    %4072 = vrot.lane.b32.xlu0 %v4025, 127
    %v4073 = vpop.permute.xlu0 %4072
    %vm4090 = vcmask 130112
    %4091 = vst.msk [vmem:[%s4] sm:$0xff] %vm4090, %v4043
    %4092 = vst.msk [vmem:[%s4 + $0x8] sm:$0xff] %vm4090, %v4045
    %4093 = vst.msk [vmem:[%s4 + $0x10] sm:$0xff] %vm4090, %v4047
    %4094 = vst.msk [vmem:[%s4 + $0x18] sm:$0xff] %vm4090, %v4049
    %4095 = vst.msk [vmem:[%s4 + $0x20] sm:$0xff] %vm4090, %v4051
    %4096 = vst.msk [vmem:[%s4 + $0x28] sm:$0xff] %vm4090, %v4053
    %4097 = vst.msk [vmem:[%s4 + $0x30] sm:$0xff] %vm4090, %v4055
    %4098 = vst.msk [vmem:[%s4 + $0x38] sm:$0xff] %vm4090, %v4057
    %4099 = vst.msk [vmem:[%s4 + $0x40] sm:$0xff] %vm4090, %v4059
    %4100 = vst.msk [vmem:[%s4 + $0x48] sm:$0xff] %vm4090, %v4061
    %4101 = vst.msk [vmem:[%s4 + $0x50] sm:$0xff] %vm4090, %v4063
    %4102 = vst.msk [vmem:[%s4 + $0x58] sm:$0xff] %vm4090, %v4065
    %4103 = vst.msk [vmem:[%s4 + $0x60] sm:$0xff] %vm4090, %v4067
    %4104 = vst.msk [vmem:[%s4 + $0x68] sm:$0xff] %vm4090, %v4069
    %4105 = vst.msk [vmem:[%s4 + $0x70] sm:$0xff] %vm4090, %v4071
    %4106 = vst.msk [vmem:[%s4 + $0x78] sm:$0xff] %vm4090, %v4073
    %v4107 = vld [vmem:[#allocation3] sm:$0xff]
    %v4108 = vld [vmem:[#allocation3 + $0x8] sm:$0xff]
    %v4109 = vld [vmem:[#allocation3 + $0x10] sm:$0xff]
    %v4110 = vld [vmem:[#allocation3 + $0x18] sm:$0xff]
    %v4111 = vld [vmem:[#allocation3 + $0x20] sm:$0xff]
    %v4112 = vld [vmem:[#allocation3 + $0x28] sm:$0xff]
    %v4113 = vld [vmem:[#allocation3 + $0x30] sm:$0xff]
    %v4114 = vld [vmem:[#allocation3 + $0x38] sm:$0xff]
    %v4115 = vld [vmem:[#allocation3 + $0x40] sm:$0xff]
    %v4116 = vld [vmem:[#allocation3 + $0x48] sm:$0xff]
    %v4117 = vld [vmem:[#allocation3 + $0x50] sm:$0xff]
    %v4118 = vld [vmem:[#allocation3 + $0x58] sm:$0xff]
    %v4119 = vld [vmem:[#allocation3 + $0x60] sm:$0xff]
    %v4120 = vld [vmem:[#allocation3 + $0x68] sm:$0xff]
    %v4121 = vld [vmem:[#allocation3 + $0x70] sm:$0xff]
    %v4122 = vld [vmem:[#allocation3 + $0x78] sm:$0xff]
    %v4123 = vld [vmem:[#allocation2] sm:$0xff]
    %v4124 = vld [vmem:[#allocation2 + $0x8] sm:$0xff]
    %v4125 = vld [vmem:[#allocation2 + $0x10] sm:$0xff]
    %v4126 = vld [vmem:[#allocation2 + $0x18] sm:$0xff]
    %v4127 = vld [vmem:[#allocation2 + $0x20] sm:$0xff]
    %v4128 = vld [vmem:[#allocation2 + $0x28] sm:$0xff]
    %v4129 = vld [vmem:[#allocation2 + $0x30] sm:$0xff]
    %v4130 = vld [vmem:[#allocation2 + $0x38] sm:$0xff]
    %v4131 = vld [vmem:[#allocation2 + $0x40] sm:$0xff]
    %v4132 = vld [vmem:[#allocation2 + $0x48] sm:$0xff]
    %v4133 = vld [vmem:[#allocation2 + $0x50] sm:$0xff]
    %v4134 = vld [vmem:[#allocation2 + $0x58] sm:$0xff]
    %v4135 = vld [vmem:[#allocation2 + $0x60] sm:$0xff]
    %v4136 = vld [vmem:[#allocation2 + $0x68] sm:$0xff]
    %v4137 = vld [vmem:[#allocation2 + $0x70] sm:$0xff]
    %v4138 = vld [vmem:[#allocation2 + $0x78] sm:$0xff]
    %vm4139 = vcmp.gt.f32.partialorder %v4123, -5e+29
    %vm4140 = vcmp.gt.f32.partialorder %v4124, -5e+29
    %vm4141 = vcmp.gt.f32.partialorder %v4125, -5e+29
    %vm4142 = vcmp.gt.f32.partialorder %v4126, -5e+29
    %vm4143 = vcmp.gt.f32.partialorder %v4127, -5e+29
    %vm4144 = vcmp.gt.f32.partialorder %v4128, -5e+29
    %vm4145 = vcmp.gt.f32.partialorder %v4129, -5e+29
    %vm4146 = vcmp.gt.f32.partialorder %v4130, -5e+29
    %vm4147 = vcmp.gt.f32.partialorder %v4131, -5e+29
    %vm4148 = vcmp.gt.f32.partialorder %v4132, -5e+29
    %vm4149 = vcmp.gt.f32.partialorder %v4133, -5e+29
    %vm4150 = vcmp.gt.f32.partialorder %v4134, -5e+29
    %vm4151 = vcmp.gt.f32.partialorder %v4135, -5e+29
    %vm4152 = vcmp.gt.f32.partialorder %v4136, -5e+29
    %vm4153 = vcmp.gt.f32.partialorder %v4137, -5e+29
    %vm4154 = vcmp.gt.f32.partialorder %v4138, -5e+29
    %vm4155 = vcmp.gt.f32.partialorder %v4107, 0.0
    %vm4156 = vcmp.gt.f32.partialorder %v4108, 0.0
    %vm4157 = vcmp.gt.f32.partialorder %v4109, 0.0
    %vm4158 = vcmp.gt.f32.partialorder %v4110, 0.0
    %vm4159 = vcmp.gt.f32.partialorder %v4111, 0.0
    %vm4160 = vcmp.gt.f32.partialorder %v4112, 0.0
    %vm4161 = vcmp.gt.f32.partialorder %v4113, 0.0
    %vm4162 = vcmp.gt.f32.partialorder %v4114, 0.0
    %vm4163 = vcmp.gt.f32.partialorder %v4115, 0.0
    %vm4164 = vcmp.gt.f32.partialorder %v4116, 0.0
    %vm4165 = vcmp.gt.f32.partialorder %v4117, 0.0
    %vm4166 = vcmp.gt.f32.partialorder %v4118, 0.0
    %vm4167 = vcmp.gt.f32.partialorder %v4119, 0.0
    %vm4168 = vcmp.gt.f32.partialorder %v4120, 0.0
    %vm4169 = vcmp.gt.f32.partialorder %v4121, 0.0
    %vm4170 = vcmp.gt.f32.partialorder %v4122, 0.0
    %v4171 = vsel %vm4155, %v4107, 1.0
    %v4172 = vsel %vm4156, %v4108, 1.0
    %v4173 = vsel %vm4157, %v4109, 1.0
    %v4174 = vsel %vm4158, %v4110, 1.0
    %v4175 = vsel %vm4159, %v4111, 1.0
    %v4176 = vsel %vm4160, %v4112, 1.0
    %v4177 = vsel %vm4161, %v4113, 1.0
    %v4178 = vsel %vm4162, %v4114, 1.0
    %v4179 = vsel %vm4163, %v4115, 1.0
    %v4180 = vsel %vm4164, %v4116, 1.0
    %v4181 = vsel %vm4165, %v4117, 1.0
    %v4182 = vsel %vm4166, %v4118, 1.0
    %v4183 = vsel %vm4167, %v4119, 1.0
    %v4184 = vsel %vm4168, %v4120, 1.0
    %v4185 = vsel %vm4169, %v4121, 1.0
    %v4186 = vsel %vm4170, %v4122, 1.0
    %v4187 = vrcp.pop %v4171
    %v4188 = vrcp.pop %v4172
    %v4189 = vrcp.pop %v4173
    %v4190 = vrcp.pop %v4174
    %v4191 = vrcp.pop %v4175
    %v4192 = vrcp.pop %v4176
    %v4193 = vrcp.pop %v4177
    %v4194 = vrcp.pop %v4178
    %v4195 = vrcp.pop %v4179
    %v4196 = vrcp.pop %v4180
    %v4197 = vrcp.pop %v4181
    %v4198 = vrcp.pop %v4182
    %v4199 = vrcp.pop %v4183
    %v4200 = vrcp.pop %v4184
    %v4201 = vrcp.pop %v4185
    %v4202 = vrcp.pop %v4186
    %4204 = vset.pattern.permute.xlu0 26
    %4205 = vperm.xlu0 %4204, %v4187
    %v4206 = vpop.permute.xlu0 %4205
    %4209 = vset.pattern.permute.xlu0 26
    %4210 = vperm.xlu0 %4209, %v4188
    %v4211 = vpop.permute.xlu0 %4210
    %4214 = vset.pattern.permute.xlu0 26
    %4215 = vperm.xlu0 %4214, %v4189
    %v4216 = vpop.permute.xlu0 %4215
    %4219 = vset.pattern.permute.xlu0 26
    %4220 = vperm.xlu0 %4219, %v4190
    %v4221 = vpop.permute.xlu0 %4220
    %4224 = vset.pattern.permute.xlu0 26
    %4225 = vperm.xlu0 %4224, %v4191
    %v4226 = vpop.permute.xlu0 %4225
    %4229 = vset.pattern.permute.xlu0 26
    %4230 = vperm.xlu0 %4229, %v4192
    %v4231 = vpop.permute.xlu0 %4230
    %4234 = vset.pattern.permute.xlu0 26
    %4235 = vperm.xlu0 %4234, %v4193
    %v4236 = vpop.permute.xlu0 %4235
    %4239 = vset.pattern.permute.xlu0 26
    %4240 = vperm.xlu0 %4239, %v4194
    %v4241 = vpop.permute.xlu0 %4240
    %4244 = vset.pattern.permute.xlu0 26
    %4245 = vperm.xlu0 %4244, %v4195
    %v4246 = vpop.permute.xlu0 %4245
    %4249 = vset.pattern.permute.xlu0 26
    %4250 = vperm.xlu0 %4249, %v4196
    %v4251 = vpop.permute.xlu0 %4250
    %4254 = vset.pattern.permute.xlu0 26
    %4255 = vperm.xlu0 %4254, %v4197
    %v4256 = vpop.permute.xlu0 %4255
    %4259 = vset.pattern.permute.xlu0 26
    %4260 = vperm.xlu0 %4259, %v4198
    %v4261 = vpop.permute.xlu0 %4260
    %4264 = vset.pattern.permute.xlu0 26
    %4265 = vperm.xlu0 %4264, %v4199
    %v4266 = vpop.permute.xlu0 %4265
    %4269 = vset.pattern.permute.xlu0 26
    %4270 = vperm.xlu0 %4269, %v4200
    %v4271 = vpop.permute.xlu0 %4270
    %4274 = vset.pattern.permute.xlu0 26
    %4275 = vperm.xlu0 %4274, %v4201
    %v4276 = vpop.permute.xlu0 %4275
    %4279 = vset.pattern.permute.xlu0 26
    %4280 = vperm.xlu0 %4279, %v4202
    %v4281 = vpop.permute.xlu0 %4280
    %v4283 = vmul.f32 %v4107, %v4206
    %v4284 = vmul.f32 %v4108, %v4211
    %v4285 = vmul.f32 %v4109, %v4216
    %v4286 = vmul.f32 %v4110, %v4221
    %v4287 = vmul.f32 %v4111, %v4226
    %v4288 = vmul.f32 %v4112, %v4231
    %v4289 = vmul.f32 %v4113, %v4236
    %v4290 = vmul.f32 %v4114, %v4241
    %v4291 = vmul.f32 %v4115, %v4246
    %v4292 = vmul.f32 %v4116, %v4251
    %v4293 = vmul.f32 %v4117, %v4256
    %v4294 = vmul.f32 %v4118, %v4261
    %v4295 = vmul.f32 %v4119, %v4266
    %v4296 = vmul.f32 %v4120, %v4271
    %v4297 = vmul.f32 %v4121, %v4276
    %v4298 = vmul.f32 %v4122, %v4281
    %v4299 = vsel %vm4139, 1, 0
    %v4300 = vsel %vm4140, 1, 0
    %v4301 = vsel %vm4141, 1, 0
    %v4302 = vsel %vm4142, 1, 0
    %v4303 = vsel %vm4143, 1, 0
    %v4304 = vsel %vm4144, 1, 0
    %v4305 = vsel %vm4145, 1, 0
    %v4306 = vsel %vm4146, 1, 0
    %v4307 = vsel %vm4147, 1, 0
    %v4308 = vsel %vm4148, 1, 0
    %v4309 = vsel %vm4149, 1, 0
    %v4310 = vsel %vm4150, 1, 0
    %v4311 = vsel %vm4151, 1, 0
    %v4312 = vsel %vm4152, 1, 0
    %v4313 = vsel %vm4153, 1, 0
    %v4314 = vsel %vm4154, 1, 0
    %4315 = vset.pattern.permute.xlu0 2
    %4316 = vperm.xlu0 %4315, %v4299
    %v4317 = vpop.permute.xlu0 %4316
    %4318 = vset.pattern.permute.xlu0 2
    %4319 = vperm.xlu0 %4318, %v4300
    %v4320 = vpop.permute.xlu0 %4319
    %4321 = vset.pattern.permute.xlu0 2
    %4322 = vperm.xlu0 %4321, %v4301
    %v4323 = vpop.permute.xlu0 %4322
    %4324 = vset.pattern.permute.xlu0 2
    %4325 = vperm.xlu0 %4324, %v4302
    %v4326 = vpop.permute.xlu0 %4325
    %4327 = vset.pattern.permute.xlu0 2
    %4328 = vperm.xlu0 %4327, %v4303
    %v4329 = vpop.permute.xlu0 %4328
    %4330 = vset.pattern.permute.xlu0 2
    %4331 = vperm.xlu0 %4330, %v4304
    %v4332 = vpop.permute.xlu0 %4331
    %4333 = vset.pattern.permute.xlu0 2
    %4334 = vperm.xlu0 %4333, %v4305
    %v4335 = vpop.permute.xlu0 %4334
    %4336 = vset.pattern.permute.xlu0 2
    %4337 = vperm.xlu0 %4336, %v4306
    %v4338 = vpop.permute.xlu0 %4337
    %4339 = vset.pattern.permute.xlu0 2
    %4340 = vperm.xlu0 %4339, %v4307
    %v4341 = vpop.permute.xlu0 %4340
    %4342 = vset.pattern.permute.xlu0 2
    %4343 = vperm.xlu0 %4342, %v4308
    %v4344 = vpop.permute.xlu0 %4343
    %4345 = vset.pattern.permute.xlu0 2
    %4346 = vperm.xlu0 %4345, %v4309
    %v4347 = vpop.permute.xlu0 %4346
    %4348 = vset.pattern.permute.xlu0 2
    %4349 = vperm.xlu0 %4348, %v4310
    %v4350 = vpop.permute.xlu0 %4349
    %4351 = vset.pattern.permute.xlu0 2
    %4352 = vperm.xlu0 %4351, %v4311
    %v4353 = vpop.permute.xlu0 %4352
    %4354 = vset.pattern.permute.xlu0 2
    %4355 = vperm.xlu0 %4354, %v4312
    %v4356 = vpop.permute.xlu0 %4355
    %4357 = vset.pattern.permute.xlu0 2
    %4358 = vperm.xlu0 %4357, %v4313
    %v4359 = vpop.permute.xlu0 %4358
    %4360 = vset.pattern.permute.xlu0 2
    %4361 = vperm.xlu0 %4360, %v4314
    %v4362 = vpop.permute.xlu0 %4361
    %vm4363 = vcmp.eq.s32.totalorder %v4317, 1
    %vm4364 = vcmp.eq.s32.totalorder %v4320, 1
    %vm4365 = vcmp.eq.s32.totalorder %v4323, 1
    %vm4366 = vcmp.eq.s32.totalorder %v4326, 1
    %vm4367 = vcmp.eq.s32.totalorder %v4329, 1
    %vm4368 = vcmp.eq.s32.totalorder %v4332, 1
    %vm4369 = vcmp.eq.s32.totalorder %v4335, 1
    %vm4370 = vcmp.eq.s32.totalorder %v4338, 1
    %vm4371 = vcmp.eq.s32.totalorder %v4341, 1
    %vm4372 = vcmp.eq.s32.totalorder %v4344, 1
    %vm4373 = vcmp.eq.s32.totalorder %v4347, 1
    %vm4374 = vcmp.eq.s32.totalorder %v4350, 1
    %vm4375 = vcmp.eq.s32.totalorder %v4353, 1
    %vm4376 = vcmp.eq.s32.totalorder %v4356, 1
    %vm4377 = vcmp.eq.s32.totalorder %v4359, 1
    %vm4378 = vcmp.eq.s32.totalorder %v4362, 1
    %v4379 = vsel %vm4363, %v4283, 0.0
    %v4380 = vsel %vm4364, %v4284, 0.0
    %v4381 = vsel %vm4365, %v4285, 0.0
    %v4382 = vsel %vm4366, %v4286, 0.0
    %v4383 = vsel %vm4367, %v4287, 0.0
    %v4384 = vsel %vm4368, %v4288, 0.0
    %v4385 = vsel %vm4369, %v4289, 0.0
    %v4386 = vsel %vm4370, %v4290, 0.0
    %v4387 = vsel %vm4371, %v4291, 0.0
    %v4388 = vsel %vm4372, %v4292, 0.0
    %v4389 = vsel %vm4373, %v4293, 0.0
    %v4390 = vsel %vm4374, %v4294, 0.0
    %v4391 = vsel %vm4375, %v4295, 0.0
    %v4392 = vsel %vm4376, %v4296, 0.0
    %v4393 = vsel %vm4377, %v4297, 0.0
    %v4394 = vsel %vm4378, %v4298, 0.0
    %4411 = vrot.lane.b32.xlu0 %v4379, 126
    %v4412 = vpop.permute.xlu0 %4411
    %4413 = vrot.lane.b32.xlu0 %v4380, 126
    %v4414 = vpop.permute.xlu0 %4413
    %4415 = vrot.lane.b32.xlu0 %v4381, 126
    %v4416 = vpop.permute.xlu0 %4415
    %4417 = vrot.lane.b32.xlu0 %v4382, 126
    %v4418 = vpop.permute.xlu0 %4417
    %4419 = vrot.lane.b32.xlu0 %v4383, 126
    %v4420 = vpop.permute.xlu0 %4419
    %4421 = vrot.lane.b32.xlu0 %v4384, 126
    %v4422 = vpop.permute.xlu0 %4421
    %4423 = vrot.lane.b32.xlu0 %v4385, 126
    %v4424 = vpop.permute.xlu0 %4423
    %4425 = vrot.lane.b32.xlu0 %v4386, 126
    %v4426 = vpop.permute.xlu0 %4425
    %4427 = vrot.lane.b32.xlu0 %v4387, 126
    %v4428 = vpop.permute.xlu0 %4427
    %4429 = vrot.lane.b32.xlu0 %v4388, 126
    %v4430 = vpop.permute.xlu0 %4429
    %4431 = vrot.lane.b32.xlu0 %v4389, 126
    %v4432 = vpop.permute.xlu0 %4431
    %4433 = vrot.lane.b32.xlu0 %v4390, 126
    %v4434 = vpop.permute.xlu0 %4433
    %4435 = vrot.lane.b32.xlu0 %v4391, 126
    %v4436 = vpop.permute.xlu0 %4435
    %4437 = vrot.lane.b32.xlu0 %v4392, 126
    %v4438 = vpop.permute.xlu0 %4437
    %4439 = vrot.lane.b32.xlu0 %v4393, 126
    %v4440 = vpop.permute.xlu0 %4439
    %4441 = vrot.lane.b32.xlu0 %v4394, 126
    %v4442 = vpop.permute.xlu0 %4441
    %vm4459 = vcmask 195712
    %4460 = vst.msk [vmem:[%s4] sm:$0xff] %vm4459, %v4412
    %4461 = vst.msk [vmem:[%s4 + $0x8] sm:$0xff] %vm4459, %v4414
    %4462 = vst.msk [vmem:[%s4 + $0x10] sm:$0xff] %vm4459, %v4416
    %4463 = vst.msk [vmem:[%s4 + $0x18] sm:$0xff] %vm4459, %v4418
    %4464 = vst.msk [vmem:[%s4 + $0x20] sm:$0xff] %vm4459, %v4420
    %4465 = vst.msk [vmem:[%s4 + $0x28] sm:$0xff] %vm4459, %v4422
    %4466 = vst.msk [vmem:[%s4 + $0x30] sm:$0xff] %vm4459, %v4424
    %4467 = vst.msk [vmem:[%s4 + $0x38] sm:$0xff] %vm4459, %v4426
    %4468 = vst.msk [vmem:[%s4 + $0x40] sm:$0xff] %vm4459, %v4428
    %4469 = vst.msk [vmem:[%s4 + $0x48] sm:$0xff] %vm4459, %v4430
    %4470 = vst.msk [vmem:[%s4 + $0x50] sm:$0xff] %vm4459, %v4432
    %4471 = vst.msk [vmem:[%s4 + $0x58] sm:$0xff] %vm4459, %v4434
    %4472 = vst.msk [vmem:[%s4 + $0x60] sm:$0xff] %vm4459, %v4436
    %4473 = vst.msk [vmem:[%s4 + $0x68] sm:$0xff] %vm4459, %v4438
    %4474 = vst.msk [vmem:[%s4 + $0x70] sm:$0xff] %vm4459, %v4440
    %4475 = vst.msk [vmem:[%s4 + $0x78] sm:$0xff] %vm4459, %v4442
    %v4476 = vld [vmem:[#allocation3] sm:$0xff]
    %v4477 = vld [vmem:[#allocation3 + $0x8] sm:$0xff]
    %v4478 = vld [vmem:[#allocation3 + $0x10] sm:$0xff]
    %v4479 = vld [vmem:[#allocation3 + $0x18] sm:$0xff]
    %v4480 = vld [vmem:[#allocation3 + $0x20] sm:$0xff]
    %v4481 = vld [vmem:[#allocation3 + $0x28] sm:$0xff]
    %v4482 = vld [vmem:[#allocation3 + $0x30] sm:$0xff]
    %v4483 = vld [vmem:[#allocation3 + $0x38] sm:$0xff]
    %v4484 = vld [vmem:[#allocation3 + $0x40] sm:$0xff]
    %v4485 = vld [vmem:[#allocation3 + $0x48] sm:$0xff]
    %v4486 = vld [vmem:[#allocation3 + $0x50] sm:$0xff]
    %v4487 = vld [vmem:[#allocation3 + $0x58] sm:$0xff]
    %v4488 = vld [vmem:[#allocation3 + $0x60] sm:$0xff]
    %v4489 = vld [vmem:[#allocation3 + $0x68] sm:$0xff]
    %v4490 = vld [vmem:[#allocation3 + $0x70] sm:$0xff]
    %v4491 = vld [vmem:[#allocation3 + $0x78] sm:$0xff]
    %v4492 = vld [vmem:[#allocation2] sm:$0xff]
    %v4493 = vld [vmem:[#allocation2 + $0x8] sm:$0xff]
    %v4494 = vld [vmem:[#allocation2 + $0x10] sm:$0xff]
    %v4495 = vld [vmem:[#allocation2 + $0x18] sm:$0xff]
    %v4496 = vld [vmem:[#allocation2 + $0x20] sm:$0xff]
    %v4497 = vld [vmem:[#allocation2 + $0x28] sm:$0xff]
    %v4498 = vld [vmem:[#allocation2 + $0x30] sm:$0xff]
    %v4499 = vld [vmem:[#allocation2 + $0x38] sm:$0xff]
    %v4500 = vld [vmem:[#allocation2 + $0x40] sm:$0xff]
    %v4501 = vld [vmem:[#allocation2 + $0x48] sm:$0xff]
    %v4502 = vld [vmem:[#allocation2 + $0x50] sm:$0xff]
    %v4503 = vld [vmem:[#allocation2 + $0x58] sm:$0xff]
    %v4504 = vld [vmem:[#allocation2 + $0x60] sm:$0xff]
    %v4505 = vld [vmem:[#allocation2 + $0x68] sm:$0xff]
    %v4506 = vld [vmem:[#allocation2 + $0x70] sm:$0xff]
    %v4507 = vld [vmem:[#allocation2 + $0x78] sm:$0xff]
    %vm4508 = vcmp.gt.f32.partialorder %v4492, -5e+29
    %vm4509 = vcmp.gt.f32.partialorder %v4493, -5e+29
    %vm4510 = vcmp.gt.f32.partialorder %v4494, -5e+29
    %vm4511 = vcmp.gt.f32.partialorder %v4495, -5e+29
    %vm4512 = vcmp.gt.f32.partialorder %v4496, -5e+29
    %vm4513 = vcmp.gt.f32.partialorder %v4497, -5e+29
    %vm4514 = vcmp.gt.f32.partialorder %v4498, -5e+29
    %vm4515 = vcmp.gt.f32.partialorder %v4499, -5e+29
    %vm4516 = vcmp.gt.f32.partialorder %v4500, -5e+29
    %vm4517 = vcmp.gt.f32.partialorder %v4501, -5e+29
    %vm4518 = vcmp.gt.f32.partialorder %v4502, -5e+29
    %vm4519 = vcmp.gt.f32.partialorder %v4503, -5e+29
    %vm4520 = vcmp.gt.f32.partialorder %v4504, -5e+29
    %vm4521 = vcmp.gt.f32.partialorder %v4505, -5e+29
    %vm4522 = vcmp.gt.f32.partialorder %v4506, -5e+29
    %vm4523 = vcmp.gt.f32.partialorder %v4507, -5e+29
    %vm4524 = vcmp.gt.f32.partialorder %v4476, 0.0
    %vm4525 = vcmp.gt.f32.partialorder %v4477, 0.0
    %vm4526 = vcmp.gt.f32.partialorder %v4478, 0.0
    %vm4527 = vcmp.gt.f32.partialorder %v4479, 0.0
    %vm4528 = vcmp.gt.f32.partialorder %v4480, 0.0
    %vm4529 = vcmp.gt.f32.partialorder %v4481, 0.0
    %vm4530 = vcmp.gt.f32.partialorder %v4482, 0.0
    %vm4531 = vcmp.gt.f32.partialorder %v4483, 0.0
    %vm4532 = vcmp.gt.f32.partialorder %v4484, 0.0
    %vm4533 = vcmp.gt.f32.partialorder %v4485, 0.0
    %vm4534 = vcmp.gt.f32.partialorder %v4486, 0.0
    %vm4535 = vcmp.gt.f32.partialorder %v4487, 0.0
    %vm4536 = vcmp.gt.f32.partialorder %v4488, 0.0
    %vm4537 = vcmp.gt.f32.partialorder %v4489, 0.0
    %vm4538 = vcmp.gt.f32.partialorder %v4490, 0.0
    %vm4539 = vcmp.gt.f32.partialorder %v4491, 0.0
    %v4540 = vsel %vm4524, %v4476, 1.0
    %v4541 = vsel %vm4525, %v4477, 1.0
    %v4542 = vsel %vm4526, %v4478, 1.0
    %v4543 = vsel %vm4527, %v4479, 1.0
    %v4544 = vsel %vm4528, %v4480, 1.0
    %v4545 = vsel %vm4529, %v4481, 1.0
    %v4546 = vsel %vm4530, %v4482, 1.0
    %v4547 = vsel %vm4531, %v4483, 1.0
    %v4548 = vsel %vm4532, %v4484, 1.0
    %v4549 = vsel %vm4533, %v4485, 1.0
    %v4550 = vsel %vm4534, %v4486, 1.0
    %v4551 = vsel %vm4535, %v4487, 1.0
    %v4552 = vsel %vm4536, %v4488, 1.0
    %v4553 = vsel %vm4537, %v4489, 1.0
    %v4554 = vsel %vm4538, %v4490, 1.0
    %v4555 = vsel %vm4539, %v4491, 1.0
    %v4556 = vrcp.pop %v4540
    %v4557 = vrcp.pop %v4541
    %v4558 = vrcp.pop %v4542
    %v4559 = vrcp.pop %v4543
    %v4560 = vrcp.pop %v4544
    %v4561 = vrcp.pop %v4545
    %v4562 = vrcp.pop %v4546
    %v4563 = vrcp.pop %v4547
    %v4564 = vrcp.pop %v4548
    %v4565 = vrcp.pop %v4549
    %v4566 = vrcp.pop %v4550
    %v4567 = vrcp.pop %v4551
    %v4568 = vrcp.pop %v4552
    %v4569 = vrcp.pop %v4553
    %v4570 = vrcp.pop %v4554
    %v4571 = vrcp.pop %v4555
    %4573 = vset.pattern.permute.xlu0 35
    %4574 = vperm.xlu0 %4573, %v4556
    %v4575 = vpop.permute.xlu0 %4574
    %4578 = vset.pattern.permute.xlu0 35
    %4579 = vperm.xlu0 %4578, %v4557
    %v4580 = vpop.permute.xlu0 %4579
    %4583 = vset.pattern.permute.xlu0 35
    %4584 = vperm.xlu0 %4583, %v4558
    %v4585 = vpop.permute.xlu0 %4584
    %4588 = vset.pattern.permute.xlu0 35
    %4589 = vperm.xlu0 %4588, %v4559
    %v4590 = vpop.permute.xlu0 %4589
    %4593 = vset.pattern.permute.xlu0 35
    %4594 = vperm.xlu0 %4593, %v4560
    %v4595 = vpop.permute.xlu0 %4594
    %4598 = vset.pattern.permute.xlu0 35
    %4599 = vperm.xlu0 %4598, %v4561
    %v4600 = vpop.permute.xlu0 %4599
    %4603 = vset.pattern.permute.xlu0 35
    %4604 = vperm.xlu0 %4603, %v4562
    %v4605 = vpop.permute.xlu0 %4604
    %4608 = vset.pattern.permute.xlu0 35
    %4609 = vperm.xlu0 %4608, %v4563
    %v4610 = vpop.permute.xlu0 %4609
    %4613 = vset.pattern.permute.xlu0 35
    %4614 = vperm.xlu0 %4613, %v4564
    %v4615 = vpop.permute.xlu0 %4614
    %4618 = vset.pattern.permute.xlu0 35
    %4619 = vperm.xlu0 %4618, %v4565
    %v4620 = vpop.permute.xlu0 %4619
    %4623 = vset.pattern.permute.xlu0 35
    %4624 = vperm.xlu0 %4623, %v4566
    %v4625 = vpop.permute.xlu0 %4624
    %4628 = vset.pattern.permute.xlu0 35
    %4629 = vperm.xlu0 %4628, %v4567
    %v4630 = vpop.permute.xlu0 %4629
    %4633 = vset.pattern.permute.xlu0 35
    %4634 = vperm.xlu0 %4633, %v4568
    %v4635 = vpop.permute.xlu0 %4634
    %4638 = vset.pattern.permute.xlu0 35
    %4639 = vperm.xlu0 %4638, %v4569
    %v4640 = vpop.permute.xlu0 %4639
    %4643 = vset.pattern.permute.xlu0 35
    %4644 = vperm.xlu0 %4643, %v4570
    %v4645 = vpop.permute.xlu0 %4644
    %4648 = vset.pattern.permute.xlu0 35
    %4649 = vperm.xlu0 %4648, %v4571
    %v4650 = vpop.permute.xlu0 %4649
    %v4652 = vmul.f32 %v4476, %v4575
    %v4653 = vmul.f32 %v4477, %v4580
    %v4654 = vmul.f32 %v4478, %v4585
    %v4655 = vmul.f32 %v4479, %v4590
    %v4656 = vmul.f32 %v4480, %v4595
    %v4657 = vmul.f32 %v4481, %v4600
    %v4658 = vmul.f32 %v4482, %v4605
    %v4659 = vmul.f32 %v4483, %v4610
    %v4660 = vmul.f32 %v4484, %v4615
    %v4661 = vmul.f32 %v4485, %v4620
    %v4662 = vmul.f32 %v4486, %v4625
    %v4663 = vmul.f32 %v4487, %v4630
    %v4664 = vmul.f32 %v4488, %v4635
    %v4665 = vmul.f32 %v4489, %v4640
    %v4666 = vmul.f32 %v4490, %v4645
    %v4667 = vmul.f32 %v4491, %v4650
    %v4668 = vsel %vm4508, 1, 0
    %v4669 = vsel %vm4509, 1, 0
    %v4670 = vsel %vm4510, 1, 0
    %v4671 = vsel %vm4511, 1, 0
    %v4672 = vsel %vm4512, 1, 0
    %v4673 = vsel %vm4513, 1, 0
    %v4674 = vsel %vm4514, 1, 0
    %v4675 = vsel %vm4515, 1, 0
    %v4676 = vsel %vm4516, 1, 0
    %v4677 = vsel %vm4517, 1, 0
    %v4678 = vsel %vm4518, 1, 0
    %v4679 = vsel %vm4519, 1, 0
    %v4680 = vsel %vm4520, 1, 0
    %v4681 = vsel %vm4521, 1, 0
    %v4682 = vsel %vm4522, 1, 0
    %v4683 = vsel %vm4523, 1, 0
    %4684 = vset.pattern.permute.xlu0 3
    %4685 = vperm.xlu0 %4684, %v4668
    %v4686 = vpop.permute.xlu0 %4685
    %4687 = vset.pattern.permute.xlu0 3
    %4688 = vperm.xlu0 %4687, %v4669
    %v4689 = vpop.permute.xlu0 %4688
    %4690 = vset.pattern.permute.xlu0 3
    %4691 = vperm.xlu0 %4690, %v4670
    %v4692 = vpop.permute.xlu0 %4691
    %4693 = vset.pattern.permute.xlu0 3
    %4694 = vperm.xlu0 %4693, %v4671
    %v4695 = vpop.permute.xlu0 %4694
    %4696 = vset.pattern.permute.xlu0 3
    %4697 = vperm.xlu0 %4696, %v4672
    %v4698 = vpop.permute.xlu0 %4697
    %4699 = vset.pattern.permute.xlu0 3
    %4700 = vperm.xlu0 %4699, %v4673
    %v4701 = vpop.permute.xlu0 %4700
    %4702 = vset.pattern.permute.xlu0 3
    %4703 = vperm.xlu0 %4702, %v4674
    %v4704 = vpop.permute.xlu0 %4703
    %4705 = vset.pattern.permute.xlu0 3
    %4706 = vperm.xlu0 %4705, %v4675
    %v4707 = vpop.permute.xlu0 %4706
    %4708 = vset.pattern.permute.xlu0 3
    %4709 = vperm.xlu0 %4708, %v4676
    %v4710 = vpop.permute.xlu0 %4709
    %4711 = vset.pattern.permute.xlu0 3
    %4712 = vperm.xlu0 %4711, %v4677
    %v4713 = vpop.permute.xlu0 %4712
    %4714 = vset.pattern.permute.xlu0 3
    %4715 = vperm.xlu0 %4714, %v4678
    %v4716 = vpop.permute.xlu0 %4715
    %4717 = vset.pattern.permute.xlu0 3
    %4718 = vperm.xlu0 %4717, %v4679
    %v4719 = vpop.permute.xlu0 %4718
    %4720 = vset.pattern.permute.xlu0 3
    %4721 = vperm.xlu0 %4720, %v4680
    %v4722 = vpop.permute.xlu0 %4721
    %4723 = vset.pattern.permute.xlu0 3
    %4724 = vperm.xlu0 %4723, %v4681
    %v4725 = vpop.permute.xlu0 %4724
    %4726 = vset.pattern.permute.xlu0 3
    %4727 = vperm.xlu0 %4726, %v4682
    %v4728 = vpop.permute.xlu0 %4727
    %4729 = vset.pattern.permute.xlu0 3
    %4730 = vperm.xlu0 %4729, %v4683
    %v4731 = vpop.permute.xlu0 %4730
    %vm4732 = vcmp.eq.s32.totalorder %v4686, 1
    %vm4733 = vcmp.eq.s32.totalorder %v4689, 1
    %vm4734 = vcmp.eq.s32.totalorder %v4692, 1
    %vm4735 = vcmp.eq.s32.totalorder %v4695, 1
    %vm4736 = vcmp.eq.s32.totalorder %v4698, 1
    %vm4737 = vcmp.eq.s32.totalorder %v4701, 1
    %vm4738 = vcmp.eq.s32.totalorder %v4704, 1
    %vm4739 = vcmp.eq.s32.totalorder %v4707, 1
    %vm4740 = vcmp.eq.s32.totalorder %v4710, 1
    %vm4741 = vcmp.eq.s32.totalorder %v4713, 1
    %vm4742 = vcmp.eq.s32.totalorder %v4716, 1
    %vm4743 = vcmp.eq.s32.totalorder %v4719, 1
    %vm4744 = vcmp.eq.s32.totalorder %v4722, 1
    %vm4745 = vcmp.eq.s32.totalorder %v4725, 1
    %vm4746 = vcmp.eq.s32.totalorder %v4728, 1
    %vm4747 = vcmp.eq.s32.totalorder %v4731, 1
    %v4748 = vsel %vm4732, %v4652, 0.0
    %v4749 = vsel %vm4733, %v4653, 0.0
    %v4750 = vsel %vm4734, %v4654, 0.0
    %v4751 = vsel %vm4735, %v4655, 0.0
    %v4752 = vsel %vm4736, %v4656, 0.0
    %v4753 = vsel %vm4737, %v4657, 0.0
    %v4754 = vsel %vm4738, %v4658, 0.0
    %v4755 = vsel %vm4739, %v4659, 0.0
    %v4756 = vsel %vm4740, %v4660, 0.0
    %v4757 = vsel %vm4741, %v4661, 0.0
    %v4758 = vsel %vm4742, %v4662, 0.0
    %v4759 = vsel %vm4743, %v4663, 0.0
    %v4760 = vsel %vm4744, %v4664, 0.0
    %v4761 = vsel %vm4745, %v4665, 0.0
    %v4762 = vsel %vm4746, %v4666, 0.0
    %v4763 = vsel %vm4747, %v4667, 0.0
    %4780 = vrot.lane.b32.xlu0 %v4748, 125
    %v4781 = vpop.permute.xlu0 %4780
    %4782 = vrot.lane.b32.xlu0 %v4749, 125
    %v4783 = vpop.permute.xlu0 %4782
    %4784 = vrot.lane.b32.xlu0 %v4750, 125
    %v4785 = vpop.permute.xlu0 %4784
    %4786 = vrot.lane.b32.xlu0 %v4751, 125
    %v4787 = vpop.permute.xlu0 %4786
    %4788 = vrot.lane.b32.xlu0 %v4752, 125
    %v4789 = vpop.permute.xlu0 %4788
    %4790 = vrot.lane.b32.xlu0 %v4753, 125
    %v4791 = vpop.permute.xlu0 %4790
    %4792 = vrot.lane.b32.xlu0 %v4754, 125
    %v4793 = vpop.permute.xlu0 %4792
    %4794 = vrot.lane.b32.xlu0 %v4755, 125
    %v4795 = vpop.permute.xlu0 %4794
    %4796 = vrot.lane.b32.xlu0 %v4756, 125
    %v4797 = vpop.permute.xlu0 %4796
    %4798 = vrot.lane.b32.xlu0 %v4757, 125
    %v4799 = vpop.permute.xlu0 %4798
    %4800 = vrot.lane.b32.xlu0 %v4758, 125
    %v4801 = vpop.permute.xlu0 %4800
    %4802 = vrot.lane.b32.xlu0 %v4759, 125
    %v4803 = vpop.permute.xlu0 %4802
    %4804 = vrot.lane.b32.xlu0 %v4760, 125
    %v4805 = vpop.permute.xlu0 %4804
    %4806 = vrot.lane.b32.xlu0 %v4761, 125
    %v4807 = vpop.permute.xlu0 %4806
    %4808 = vrot.lane.b32.xlu0 %v4762, 125
    %v4809 = vpop.permute.xlu0 %4808
    %4810 = vrot.lane.b32.xlu0 %v4763, 125
    %v4811 = vpop.permute.xlu0 %4810
    %vm4828 = vcmask 261312
    %4829 = vst.msk [vmem:[%s4] sm:$0xff] %vm4828, %v4781
    %4830 = vst.msk [vmem:[%s4 + $0x8] sm:$0xff] %vm4828, %v4783
    %4831 = vst.msk [vmem:[%s4 + $0x10] sm:$0xff] %vm4828, %v4785
    %4832 = vst.msk [vmem:[%s4 + $0x18] sm:$0xff] %vm4828, %v4787
    %4833 = vst.msk [vmem:[%s4 + $0x20] sm:$0xff] %vm4828, %v4789
    %4834 = vst.msk [vmem:[%s4 + $0x28] sm:$0xff] %vm4828, %v4791
    %4835 = vst.msk [vmem:[%s4 + $0x30] sm:$0xff] %vm4828, %v4793
    %4836 = vst.msk [vmem:[%s4 + $0x38] sm:$0xff] %vm4828, %v4795
    %4837 = vst.msk [vmem:[%s4 + $0x40] sm:$0xff] %vm4828, %v4797
    %4838 = vst.msk [vmem:[%s4 + $0x48] sm:$0xff] %vm4828, %v4799
    %4839 = vst.msk [vmem:[%s4 + $0x50] sm:$0xff] %vm4828, %v4801
    %4840 = vst.msk [vmem:[%s4 + $0x58] sm:$0xff] %vm4828, %v4803
    %4841 = vst.msk [vmem:[%s4 + $0x60] sm:$0xff] %vm4828, %v4805
    %4842 = vst.msk [vmem:[%s4 + $0x68] sm:$0xff] %vm4828, %v4807
    %4843 = vst.msk [vmem:[%s4 + $0x70] sm:$0xff] %vm4828, %v4809
    %4844 = vst.msk [vmem:[%s4 + $0x78] sm:$0xff] %vm4828, %v4811
  $region25: #{gat_forward.3} parent=0 // pred_fallthru
    _
  // Predicated region
  $region26: #{gat_forward.3} parent=0 // pred_check
    _
  $region27: #{gat_forward.3} parent=0 // pred_check_branch
    %4846 = sbr.rel (0) target = $region29
  $region28: #{gat_forward.3} parent=0 // pred_region
    _
  $region29: #{gat_forward.3} parent=0 // pred_fallthru
    _
  // Predicated region
  $region30: #{gat_forward.3} parent=0 // pred_check
    _
  $region31: #{gat_forward.3} parent=0 // pred_check_branch
    %4848 = sbr.rel (0) target = $region33
  $region32: #{gat_forward.3} parent=0 // pred_region
    _
  $region33: #{gat_forward.3} parent=0 // pred_fallthru
    _

</llo_original>
